<compile_context>
chip_gen: v7x
topology: tpu7x:2x2x1
jax: 0.10.0
libtpu: 0.0.40
codegen_flags: <defaults>
</compile_context>

<pallas_src>
from functools import partial

import jax
import jax.numpy as jnp
from jax.experimental import pallas as pl
from jax.experimental.pallas import tpu as pltpu

LANE = 128      # TPU lane width (last dim)
SUBLANE = 8     # TPU sublane width (second-to-last dim)
MASK_NEG = -1e30


def _ceil_to(v, m):
    return ((v + m - 1) // m) * m


def _full_spec(a):
    """Whole-array block for a grid=(1,) pallas_call."""
    if a.ndim == 2:
        return pl.BlockSpec(a.shape, lambda i: (0, 0))
    return pl.BlockSpec(a.shape, lambda i: (0, 0, 0))


# ---------------------------------------------------------------------------
# In-kernel helper: one dense GATConv attention block, batched over heads.
# ---------------------------------------------------------------------------
def _gat_attention(h, att_stk, adj_mask, bias):
    """h: (H,N,C) f32, att_stk: (H,2,C) f32 (row0=dst, row1=src),
    adj_mask: (N,N) bool (adj_mask[i,j] = edge j->i incl. self loops),
    bias: (H,1,C) f32  ->  (H,N,C) f32."""
    bf16 = jnp.bfloat16
    # Both per-node attention logits from ONE tiny batched matmul (k = 2).
    logits = jnp.einsum('hnc,hkc->hnk', h, att_stk,
                        preferred_element_type=jnp.float32)           # (H, N, 2)
    a_dst = logits[:, :, 0:1]                                         # (H, N, 1)
    a_src = jnp.transpose(logits, (0, 2, 1))[:, 1:2, :]               # (H, 1, N)
    e = a_dst + a_src                                                 # (H, N, N)
    e = jnp.where(e > 0.0, e, 0.2 * e)                                # LeakyReLU(0.2)
    # Masked softmax over source nodes j: max over MASKED logits, so real edges
    # never underflow and non-edges contribute exactly 0 (every row has a self
    # loop, so the max is finite and s >= 1).
    e = jnp.where(adj_mask[None, :, :], e, MASK_NEG)
    m = jnp.max(e, axis=-1, keepdims=True)
    p = jnp.exp(e - m)                                                # (H, N, N)
    s = jnp.sum(p, axis=-1, keepdims=True)                            # (H, N, 1)
    agg = jnp.einsum('hij,hjc->hic', p.astype(bf16), h.astype(bf16),
                     preferred_element_type=jnp.float32)              # (H, N, C)
    # Deferred normalization: one EUP reciprocal per (head, node), not per edge.
    return agg * pl.reciprocal(s, approx=True) + bias


# ---------------------------------------------------------------------------
# Fused kernel: gcn1 + ELU + gcn2 + ReLU + global max pool + fc_g1 + ReLU.
# ---------------------------------------------------------------------------
def gatnet_kernel(x_ref, adj_ref, w1_ref, att1_ref, b1_ref,
                  w2_ref, att2_ref, b2_ref, mask_ref, wf_ref, bf_ref,
                  o_ref, *, heads):
    f32, bf16 = jnp.float32, jnp.bfloat16
    adj_mask = adj_ref[...] > 0.5                                     # (N, N) bool

    # ------- Layer 1: GATConv(f_in -> c1, heads=H), then ELU --------------------
    # One wide bf16 matmul; head h occupies lane-aligned columns [h*Cp,(h+1)*Cp).
    h1w = jnp.dot(x_ref[...], w1_ref[...],
                  preferred_element_type=f32)                         # (N, H*Cp)
    c1p = h1w.shape[1] // heads
    h1 = jnp.stack([h1w[:, h * c1p:(h + 1) * c1p] for h in range(heads)],
                   axis=0)                                            # (H, N, Cp)
    x1 = _gat_attention(h1, att1_ref[...], adj_mask, b1_ref[...])
    x1 = jnp.where(x1 > 0.0, x1,
                   jnp.exp(jnp.minimum(x1, 0.0)) - 1.0)               # safe ELU

    # ------- Layer 2: GATConv(H*c1 -> d2, heads=1), then ReLU -------------------
    # Lane-aligned concat over heads, then ONE K = H*Cp contraction on the MXU.
    x1w = jnp.concatenate([x1[h].astype(bf16) for h in range(heads)],
                          axis=1)                                     # (N, H*Cp)
    h2 = jnp.dot(x1w, w2_ref[...], preferred_element_type=f32)        # (N, D)
    x2 = _gat_attention(h2[None, :, :], att2_ref[...], adj_mask, b2_ref[...])
    x2 = jnp.maximum(x2[0], 0.0)                                      # (N, D), >= 0

    # ------- global max pool per graph + fc_g1 + ReLU ---------------------------
    # x2 >= 0 after ReLU, so masking by multiply gives the exact per-graph max
    # (and 0 for empty/padded graphs). Static loop over Gp avoids the (Gp,N,D)
    # broadcast; padded graphs are sliced off on the host.
    mask = mask_ref[...]                                              # (N, Gp)
    gp = mask.shape[1]
    rows = []
    for g in range(gp):
        masked = x2 * mask[:, g:g + 1]                                # (N, D)
        rows.append(jnp.max(masked, axis=0, keepdims=True))           # (1, D)
    pooled = jnp.concatenate(rows, axis=0)                            # (Gp, D)
    out = jnp.dot(pooled.astype(bf16), wf_ref[...],
                  preferred_element_type=f32) + bf_ref[...]
    o_ref[...] = jnp.maximum(out, 0.0)                                # (Gp, D)


# ---------------------------------------------------------------------------
# Host wrapper: pad / restructure params, call the fused kernel once.
# ---------------------------------------------------------------------------
def gatnet_forward(x, adj, batch, params, *, num_graphs):
    n, f_in = x.shape
    heads, c1 = params["att_src1"].shape          # (10, 78)
    d2 = params["w2"].shape[1]                    # 128
    fp = _ceil_to(f_in, LANE)                     # 128
    c1p = _ceil_to(c1, LANE)                      # 128
    gp = _ceil_to(num_graphs, SUBLANE)            # 8

    f32, bf16 = jnp.float32, jnp.bfloat16

    x_p = jnp.pad(x.astype(f32), ((0, 0), (0, fp - f_in))).astype(bf16)
    adj_b = adj.astype(bf16)

    # gcn1: wide (Fp, H*Cp) weight; stacked (H,2,Cp) attention; (H,1,Cp) bias.
    w1w = jnp.pad(params["w1"].reshape(f_in, heads, c1),
                  ((0, fp - f_in), (0, 0), (0, c1p - c1))
                  ).reshape(fp, heads * c1p).astype(bf16)
    ad1 = jnp.pad(params["att_dst1"], ((0, 0), (0, c1p - c1)))
    as1 = jnp.pad(params["att_src1"], ((0, 0), (0, c1p - c1)))
    att1 = jnp.stack([ad1, as1], axis=1).astype(f32)                  # (H, 2, Cp)
    b1 = jnp.pad(params["b1"].reshape(heads, c1),
                 ((0, 0), (0, c1p - c1)))[:, None, :].astype(f32)     # (H, 1, Cp)

    # gcn2: wide (H*Cp, D) weight (padded rows zero); (1,2,D) attention; (1,1,D) bias.
    w2w = jnp.pad(params["w2"].reshape(heads, c1, d2),
                  ((0, 0), (0, c1p - c1), (0, 0))
                  ).reshape(heads * c1p, d2).astype(bf16)
    att2 = jnp.stack([params["att_dst2"], params["att_src2"]],
                     axis=1).astype(f32)                              # (1, 2, D)
    b2 = params["b2"][:, None, :].astype(f32)                         # (1, 1, D)

    # graph membership mask, lane-friendly 2-D layout (N, Gp)
    mask_t = (batch[:, None] == jnp.arange(gp, dtype=batch.dtype)[None, :]
              ).astype(f32)

    args = (x_p, adj_b, w1w, att1, b1, w2w, att2, b2, mask_t,
            params["wf"].astype(bf16), params["bf"].astype(f32))

    out = pl.pallas_call(
        partial(gatnet_kernel, heads=heads),
        out_shape=jax.ShapeDtypeStruct((gp, d2), jnp.float32),
        grid=(1,),
        in_specs=[_full_spec(a) for a in args],
        out_specs=pl.BlockSpec((gp, d2), lambda i: (0, 0)),
        compiler_params=pltpu.CompilerParams(
            dimension_semantics=("arbitrary",),
            vmem_limit_bytes=32 * 1024 * 1024),
    )(*args)
    return out[:num_graphs]


if __name__ == "__main__":
    # ---- problem sizes (small, consistent with the module) ----
    N = 16                 # total nodes across the batch
    E = 40                 # random edges
    G = 2                  # graphs in the batch
    F_IN = 78              # graph_features_dim
    HEADS = 10
    D_OUT = 128            # graph_output_dim

    key = jax.random.PRNGKey(0)
    ks = jax.random.split(key, 12)

    # node features
    x = jax.random.normal(ks[0], (N, F_IN), dtype=jnp.float32)

    # random edge_index (2, E): row 0 = source, row 1 = target
    src = jax.random.randint(ks[1], (E,), 0, N)
    dst = jax.random.randint(ks[2], (E,), 0, N)

    # dense adjacency mask adj[i, j] = 1 iff edge j -> i, plus self loops
    # (PyG GATConv default add_self_loops=True)
    adj = jnp.zeros((N, N), jnp.float32)
    adj = adj.at[dst, src].set(1.0)
    adj = adj.at[jnp.arange(N), jnp.arange(N)].set(1.0)

    # batch assignment: first half graph 0, second half graph 1
    batch = jnp.concatenate([jnp.zeros(N // 2, jnp.int32),
                             jnp.ones(N - N // 2, jnp.int32)])

    # ---- deterministic synthetic parameters (shapes from __init__) ----
    def glorot(k, shape):
        fan = sum(shape)
        return jax.random.normal(k, shape, jnp.float32) * jnp.sqrt(2.0 / fan)

    params = {
        # gcn1: GATConv(78, 78, heads=10)
        "w1": glorot(ks[3], (F_IN, HEADS * F_IN)),
        "att_src1": glorot(ks[4], (HEADS, F_IN)),
        "att_dst1": glorot(ks[5], (HEADS, F_IN)),
        "b1": jnp.zeros((1, HEADS * F_IN), jnp.float32),
        # gcn2: GATConv(780, 128, heads=1)
        "w2": glorot(ks[6], (HEADS * F_IN, D_OUT)),
        "att_src2": glorot(ks[7], (1, D_OUT)),
        "att_dst2": glorot(ks[8], (1, D_OUT)),
        "b2": jnp.zeros((1, D_OUT), jnp.float32),
        # fc_g1: Linear(128, 128)
        "wf": glorot(ks[9], (D_OUT, D_OUT)),
        "bf": glorot(ks[10], (1, D_OUT)),
    }

    out = gatnet_forward(x, adj, batch, params, num_graphs=G)
    out = jax.block_until_ready(out)

    assert out.shape == (G, D_OUT), out.shape
    assert bool(jnp.all(jnp.isfinite(out)))
    print("KERNEL_OK")
</pallas_src>

<mosaic_0001>
module attributes {stable_mosaic.version = 11 : i64} {
  func.func @gatnet_kernel(%arg0: i32, %arg1: memref<16x128xbf16, #tpu.memory_space<vmem>>, %arg2: memref<16x16xbf16, #tpu.memory_space<vmem>>, %arg3: memref<128x1280xbf16, #tpu.memory_space<vmem>>, %arg4: memref<10x2x128xf32, #tpu.memory_space<vmem>>, %arg5: memref<10x1x128xf32, #tpu.memory_space<vmem>>, %arg6: memref<1280x128xbf16, #tpu.memory_space<vmem>>, %arg7: memref<1x2x128xf32, #tpu.memory_space<vmem>>, %arg8: memref<1x1x128xf32, #tpu.memory_space<vmem>>, %arg9: memref<16x8xf32, #tpu.memory_space<vmem>>, %arg10: memref<128x128xbf16, #tpu.memory_space<vmem>>, %arg11: memref<1x128xf32, #tpu.memory_space<vmem>>, %arg12: memref<8x128xf32, #tpu.memory_space<vmem>>) attributes {dimension_semantics = [#tpu.dimension_semantics<arbitrary>], iteration_bounds = array<i64: 1>, scalar_prefetch = 0 : i64, scratch_operands = 0 : i64, tpu.core_type = #tpu.core_type<tc>, window_params = [{pipeline_mode = #tpu.pipeline_mode<synchronous>, transform_indices = @transform_0, window_bounds = array<i64: 16, 128>}, {pipeline_mode = #tpu.pipeline_mode<synchronous>, transform_indices = @transform_1, window_bounds = array<i64: 16, 16>}, {pipeline_mode = #tpu.pipeline_mode<synchronous>, transform_indices = @transform_2, window_bounds = array<i64: 128, 1280>}, {pipeline_mode = #tpu.pipeline_mode<synchronous>, transform_indices = @transform_3, window_bounds = array<i64: 10, 2, 128>}, {pipeline_mode = #tpu.pipeline_mode<synchronous>, transform_indices = @transform_4, window_bounds = array<i64: 10, 1, 128>}, {pipeline_mode = #tpu.pipeline_mode<synchronous>, transform_indices = @transform_5, window_bounds = array<i64: 1280, 128>}, {pipeline_mode = #tpu.pipeline_mode<synchronous>, transform_indices = @transform_6, window_bounds = array<i64: 1, 2, 128>}, {pipeline_mode = #tpu.pipeline_mode<synchronous>, transform_indices = @transform_7, window_bounds = array<i64: 1, 1, 128>}, {pipeline_mode = #tpu.pipeline_mode<synchronous>, transform_indices = @transform_8, window_bounds = array<i64: 16, 8>}, {pipeline_mode = #tpu.pipeline_mode<synchronous>, transform_indices = @transform_9, window_bounds = array<i64: 128, 128>}, {pipeline_mode = #tpu.pipeline_mode<synchronous>, transform_indices = @transform_10, window_bounds = array<i64: 1, 128>}, {pipeline_mode = #tpu.pipeline_mode<synchronous>, transform_indices = @transform_11, window_bounds = array<i64: 8, 128>}]} {
    %c0 = arith.constant 0 : index
    %c0_0 = arith.constant 0 : index
    %0 = vector.load %arg2[%c0, %c0_0] : memref<16x16xbf16, #tpu.memory_space<vmem>>, vector<16x16xbf16>
    %cst = arith.constant 5.000000e-01 : bf16
    %1 = vector.broadcast %cst : bf16 to vector<16x16xbf16>
    %2 = arith.cmpf ogt, %0, %1 : vector<16x16xbf16>
    %c0_1 = arith.constant 0 : index
    %c0_2 = arith.constant 0 : index
    %3 = vector.load %arg1[%c0_1, %c0_2] : memref<16x128xbf16, #tpu.memory_space<vmem>>, vector<16x128xbf16>
    %c0_3 = arith.constant 0 : index
    %c0_4 = arith.constant 0 : index
    %4 = vector.load %arg3[%c0_3, %c0_4] : memref<128x1280xbf16, #tpu.memory_space<vmem>>, vector<128x1280xbf16>
    %cst_5 = arith.constant dense<0.000000e+00> : vector<16x1280xf32>
    %5 = tpu.matmul %3, %4, %cst_5 {dimension_numbers = #tpu.dot_dimension_numbers<[1], [0], [0], [1], [0, 0, 1, 1], [], []>} : vector<16x128xbf16>, vector<128x1280xbf16>, vector<16x1280xf32> -> vector<16x1280xf32>
    %6 = vector.extract_strided_slice %5 {offsets = [0, 0], sizes = [16, 128], strides = [1, 1]} : vector<16x1280xf32> to vector<16x128xf32>
    %7 = vector.extract_strided_slice %5 {offsets = [0, 128], sizes = [16, 128], strides = [1, 1]} : vector<16x1280xf32> to vector<16x128xf32>
    %8 = vector.extract_strided_slice %5 {offsets = [0, 256], sizes = [16, 128], strides = [1, 1]} : vector<16x1280xf32> to vector<16x128xf32>
    %9 = vector.extract_strided_slice %5 {offsets = [0, 384], sizes = [16, 128], strides = [1, 1]} : vector<16x1280xf32> to vector<16x128xf32>
    %10 = vector.extract_strided_slice %5 {offsets = [0, 512], sizes = [16, 128], strides = [1, 1]} : vector<16x1280xf32> to vector<16x128xf32>
    %11 = vector.extract_strided_slice %5 {offsets = [0, 640], sizes = [16, 128], strides = [1, 1]} : vector<16x1280xf32> to vector<16x128xf32>
    %12 = vector.extract_strided_slice %5 {offsets = [0, 768], sizes = [16, 128], strides = [1, 1]} : vector<16x1280xf32> to vector<16x128xf32>
    %13 = vector.extract_strided_slice %5 {offsets = [0, 896], sizes = [16, 128], strides = [1, 1]} : vector<16x1280xf32> to vector<16x128xf32>
    %14 = vector.extract_strided_slice %5 {offsets = [0, 1024], sizes = [16, 128], strides = [1, 1]} : vector<16x1280xf32> to vector<16x128xf32>
    %15 = vector.extract_strided_slice %5 {offsets = [0, 1152], sizes = [16, 128], strides = [1, 1]} : vector<16x1280xf32> to vector<16x128xf32>
    %16 = vector.shape_cast %6 : vector<16x128xf32> to vector<1x16x128xf32>
    %17 = vector.shape_cast %7 : vector<16x128xf32> to vector<1x16x128xf32>
    %18 = vector.shape_cast %8 : vector<16x128xf32> to vector<1x16x128xf32>
    %19 = vector.shape_cast %9 : vector<16x128xf32> to vector<1x16x128xf32>
    %20 = vector.shape_cast %10 : vector<16x128xf32> to vector<1x16x128xf32>
    %21 = vector.shape_cast %11 : vector<16x128xf32> to vector<1x16x128xf32>
    %22 = vector.shape_cast %12 : vector<16x128xf32> to vector<1x16x128xf32>
    %23 = vector.shape_cast %13 : vector<16x128xf32> to vector<1x16x128xf32>
    %24 = vector.shape_cast %14 : vector<16x128xf32> to vector<1x16x128xf32>
    %25 = vector.shape_cast %15 : vector<16x128xf32> to vector<1x16x128xf32>
    %26 = tpu.concatenate %16, %17, %18, %19, %20, %21, %22, %23, %24, %25 in 0 : vector<1x16x128xf32>, vector<1x16x128xf32>, vector<1x16x128xf32>, vector<1x16x128xf32>, vector<1x16x128xf32>, vector<1x16x128xf32>, vector<1x16x128xf32>, vector<1x16x128xf32>, vector<1x16x128xf32>, vector<1x16x128xf32> -> vector<10x16x128xf32>
    %c0_6 = arith.constant 0 : index
    %c0_7 = arith.constant 0 : index
    %c0_8 = arith.constant 0 : index
    %27 = vector.load %arg4[%c0_6, %c0_7, %c0_8] : memref<10x2x128xf32, #tpu.memory_space<vmem>>, vector<10x2x128xf32>
    %c0_9 = arith.constant 0 : index
    %c0_10 = arith.constant 0 : index
    %c0_11 = arith.constant 0 : index
    %28 = vector.load %arg5[%c0_9, %c0_10, %c0_11] : memref<10x1x128xf32, #tpu.memory_space<vmem>>, vector<10x1x128xf32>
    "tpu.trace_start"() <{level = 10 : i32, message = "hnc,hkc->hnk"}> : () -> ()
    %cst_12 = arith.constant dense<0.000000e+00> : vector<10x16x2xf32>
    %29 = tpu.matmul %26, %27, %cst_12 {dimension_numbers = #tpu.dot_dimension_numbers<[2], [2], [1], [1], [0, 0, 0, 1, 1, 1], [0], [0]>} : vector<10x16x128xf32>, vector<10x2x128xf32>, vector<10x16x2xf32> -> vector<10x16x2xf32>
    "tpu.trace_stop"() : () -> ()
    %30 = vector.extract_strided_slice %29 {offsets = [0, 0, 0], sizes = [10, 16, 1], strides = [1, 1, 1]} : vector<10x16x2xf32> to vector<10x16x1xf32>
    %31 = tpu.transpose %29, [0, 2, 1] : vector<10x16x2xf32> -> vector<10x2x16xf32>
    %32 = vector.extract_strided_slice %31 {offsets = [0, 1, 0], sizes = [10, 1, 16], strides = [1, 1, 1]} : vector<10x2x16xf32> to vector<10x1x16xf32>
    %33 = vector.broadcast %30 : vector<10x16x1xf32> to vector<10x16x16xf32>
    %34 = vector.broadcast %32 : vector<10x1x16xf32> to vector<10x16x16xf32>
    %35 = arith.addf %33, %34 : vector<10x16x16xf32>
    %cst_13 = arith.constant 0.000000e+00 : f32
    %36 = vector.broadcast %cst_13 : f32 to vector<10x16x16xf32>
    %37 = arith.cmpf ogt, %35, %36 : vector<10x16x16xf32>
    %cst_14 = arith.constant 2.000000e-01 : f32
    %38 = vector.broadcast %cst_14 : f32 to vector<10x16x16xf32>
    %39 = arith.mulf %38, %35 : vector<10x16x16xf32>
    %40 = arith.select %37, %35, %39 : vector<10x16x16xi1>, vector<10x16x16xf32>
    %41 = vector.shape_cast %2 : vector<16x16xi1> to vector<1x16x16xi1>
    %cst_15 = arith.constant -1.000000e+30 : f32
    %42 = vector.shape_cast %41 : vector<1x16x16xi1> to vector<1x16x16xi1>
    %43 = vector.broadcast %42 : vector<1x16x16xi1> to vector<10x16x16xi1>
    %44 = vector.broadcast %cst_15 : f32 to vector<10x16x16xf32>
    %45 = arith.select %43, %40, %44 : vector<10x16x16xi1>, vector<10x16x16xf32>
    %cst_16 = arith.constant dense<0xFF800000> : vector<10x16xf32>
    %46 = vector.multi_reduction <maximumf>, %45, %cst_16 [2] : vector<10x16x16xf32> to vector<10x16xf32>
    %47 = vector.shape_cast %46 : vector<10x16xf32> to vector<10x16x1xf32>
    %48 = vector.broadcast %47 : vector<10x16x1xf32> to vector<10x16x16xf32>
    %49 = arith.subf %45, %48 : vector<10x16x16xf32>
    %50 = math.exp %49 : vector<10x16x16xf32>
    %cst_17 = arith.constant dense<0.000000e+00> : vector<10x16xf32>
    %51 = vector.multi_reduction <add>, %50, %cst_17 [2] : vector<10x16x16xf32> to vector<10x16xf32>
    %52 = vector.shape_cast %51 : vector<10x16xf32> to vector<10x16x1xf32>
    %53 = arith.truncf %50 : vector<10x16x16xf32> to vector<10x16x16xbf16>
    %54 = arith.truncf %26 : vector<10x16x128xf32> to vector<10x16x128xbf16>
    "tpu.trace_start"() <{level = 10 : i32, message = "hij,hjc->hic"}> : () -> ()
    %cst_18 = arith.constant dense<0.000000e+00> : vector<10x16x128xf32>
    %55 = tpu.matmul %53, %54, %cst_18 {dimension_numbers = #tpu.dot_dimension_numbers<[2], [1], [1], [2], [0, 0, 0, 1, 1, 2], [0], [0]>} : vector<10x16x16xbf16>, vector<10x16x128xbf16>, vector<10x16x128xf32> -> vector<10x16x128xf32>
    "tpu.trace_stop"() : () -> ()
    %56 = tpu.reciprocal %52 {approx = true} : vector<10x16x1xf32> -> vector<10x16x1xf32>
    %57 = vector.broadcast %56 : vector<10x16x1xf32> to vector<10x16x128xf32>
    %58 = arith.mulf %55, %57 : vector<10x16x128xf32>
    %59 = vector.broadcast %28 : vector<10x1x128xf32> to vector<10x16x128xf32>
    %60 = arith.addf %58, %59 : vector<10x16x128xf32>
    %cst_19 = arith.constant 0.000000e+00 : f32
    %61 = vector.broadcast %cst_19 : f32 to vector<10x16x128xf32>
    %62 = arith.cmpf ogt, %60, %61 : vector<10x16x128xf32>
    %cst_20 = arith.constant 0.000000e+00 : f32
    %63 = vector.broadcast %cst_20 : f32 to vector<10x16x128xf32>
    %64 = arith.minimumf %60, %63 : vector<10x16x128xf32>
    %65 = math.exp %64 : vector<10x16x128xf32>
    %cst_21 = arith.constant 1.000000e+00 : f32
    %66 = vector.broadcast %cst_21 : f32 to vector<10x16x128xf32>
    %67 = arith.subf %65, %66 : vector<10x16x128xf32>
    %68 = arith.select %62, %60, %67 : vector<10x16x128xi1>, vector<10x16x128xf32>
    %69 = vector.extract_strided_slice %68 {offsets = [0, 0, 0], sizes = [1, 16, 128], strides = [1, 1, 1]} : vector<10x16x128xf32> to vector<1x16x128xf32>
    %70 = vector.shape_cast %69 : vector<1x16x128xf32> to vector<16x128xf32>
    %71 = arith.truncf %70 : vector<16x128xf32> to vector<16x128xbf16>
    %72 = vector.extract_strided_slice %68 {offsets = [1, 0, 0], sizes = [1, 16, 128], strides = [1, 1, 1]} : vector<10x16x128xf32> to vector<1x16x128xf32>
    %73 = vector.shape_cast %72 : vector<1x16x128xf32> to vector<16x128xf32>
    %74 = arith.truncf %73 : vector<16x128xf32> to vector<16x128xbf16>
    %75 = vector.extract_strided_slice %68 {offsets = [2, 0, 0], sizes = [1, 16, 128], strides = [1, 1, 1]} : vector<10x16x128xf32> to vector<1x16x128xf32>
    %76 = vector.shape_cast %75 : vector<1x16x128xf32> to vector<16x128xf32>
    %77 = arith.truncf %76 : vector<16x128xf32> to vector<16x128xbf16>
    %78 = vector.extract_strided_slice %68 {offsets = [3, 0, 0], sizes = [1, 16, 128], strides = [1, 1, 1]} : vector<10x16x128xf32> to vector<1x16x128xf32>
    %79 = vector.shape_cast %78 : vector<1x16x128xf32> to vector<16x128xf32>
    %80 = arith.truncf %79 : vector<16x128xf32> to vector<16x128xbf16>
    %81 = vector.extract_strided_slice %68 {offsets = [4, 0, 0], sizes = [1, 16, 128], strides = [1, 1, 1]} : vector<10x16x128xf32> to vector<1x16x128xf32>
    %82 = vector.shape_cast %81 : vector<1x16x128xf32> to vector<16x128xf32>
    %83 = arith.truncf %82 : vector<16x128xf32> to vector<16x128xbf16>
    %84 = vector.extract_strided_slice %68 {offsets = [5, 0, 0], sizes = [1, 16, 128], strides = [1, 1, 1]} : vector<10x16x128xf32> to vector<1x16x128xf32>
    %85 = vector.shape_cast %84 : vector<1x16x128xf32> to vector<16x128xf32>
    %86 = arith.truncf %85 : vector<16x128xf32> to vector<16x128xbf16>
    %87 = vector.extract_strided_slice %68 {offsets = [6, 0, 0], sizes = [1, 16, 128], strides = [1, 1, 1]} : vector<10x16x128xf32> to vector<1x16x128xf32>
    %88 = vector.shape_cast %87 : vector<1x16x128xf32> to vector<16x128xf32>
    %89 = arith.truncf %88 : vector<16x128xf32> to vector<16x128xbf16>
    %90 = vector.extract_strided_slice %68 {offsets = [7, 0, 0], sizes = [1, 16, 128], strides = [1, 1, 1]} : vector<10x16x128xf32> to vector<1x16x128xf32>
    %91 = vector.shape_cast %90 : vector<1x16x128xf32> to vector<16x128xf32>
    %92 = arith.truncf %91 : vector<16x128xf32> to vector<16x128xbf16>
    %93 = vector.extract_strided_slice %68 {offsets = [8, 0, 0], sizes = [1, 16, 128], strides = [1, 1, 1]} : vector<10x16x128xf32> to vector<1x16x128xf32>
    %94 = vector.shape_cast %93 : vector<1x16x128xf32> to vector<16x128xf32>
    %95 = arith.truncf %94 : vector<16x128xf32> to vector<16x128xbf16>
    %96 = vector.extract_strided_slice %68 {offsets = [9, 0, 0], sizes = [1, 16, 128], strides = [1, 1, 1]} : vector<10x16x128xf32> to vector<1x16x128xf32>
    %97 = vector.shape_cast %96 : vector<1x16x128xf32> to vector<16x128xf32>
    %98 = arith.truncf %97 : vector<16x128xf32> to vector<16x128xbf16>
    %99 = tpu.concatenate %71, %74, %77, %80, %83, %86, %89, %92, %95, %98 in 1 : vector<16x128xbf16>, vector<16x128xbf16>, vector<16x128xbf16>, vector<16x128xbf16>, vector<16x128xbf16>, vector<16x128xbf16>, vector<16x128xbf16>, vector<16x128xbf16>, vector<16x128xbf16>, vector<16x128xbf16> -> vector<16x1280xbf16>
    %c0_22 = arith.constant 0 : index
    %c0_23 = arith.constant 0 : index
    %100 = vector.load %arg6[%c0_22, %c0_23] : memref<1280x128xbf16, #tpu.memory_space<vmem>>, vector<1280x128xbf16>
    %cst_24 = arith.constant dense<0.000000e+00> : vector<16x128xf32>
    %101 = tpu.matmul %99, %100, %cst_24 {dimension_numbers = #tpu.dot_dimension_numbers<[1], [0], [0], [1], [0, 0, 1, 1], [], []>} : vector<16x1280xbf16>, vector<1280x128xbf16>, vector<16x128xf32> -> vector<16x128xf32>
    %102 = vector.shape_cast %101 : vector<16x128xf32> to vector<1x16x128xf32>
    %c0_25 = arith.constant 0 : index
    %c0_26 = arith.constant 0 : index
    %c0_27 = arith.constant 0 : index
    %103 = vector.load %arg7[%c0_25, %c0_26, %c0_27] : memref<1x2x128xf32, #tpu.memory_space<vmem>>, vector<1x2x128xf32>
    %c0_28 = arith.constant 0 : index
    %c0_29 = arith.constant 0 : index
    %c0_30 = arith.constant 0 : index
    %104 = vector.load %arg8[%c0_28, %c0_29, %c0_30] : memref<1x1x128xf32, #tpu.memory_space<vmem>>, vector<1x1x128xf32>
    "tpu.trace_start"() <{level = 10 : i32, message = "hnc,hkc->hnk"}> : () -> ()
    %cst_31 = arith.constant dense<0.000000e+00> : vector<1x16x2xf32>
    %105 = tpu.matmul %102, %103, %cst_31 {dimension_numbers = #tpu.dot_dimension_numbers<[2], [2], [1], [1], [0, 0, 0, 1, 1, 1], [0], [0]>} : vector<1x16x128xf32>, vector<1x2x128xf32>, vector<1x16x2xf32> -> vector<1x16x2xf32>
    "tpu.trace_stop"() : () -> ()
    %106 = vector.extract_strided_slice %105 {offsets = [0, 0, 0], sizes = [1, 16, 1], strides = [1, 1, 1]} : vector<1x16x2xf32> to vector<1x16x1xf32>
    %107 = tpu.transpose %105, [0, 2, 1] : vector<1x16x2xf32> -> vector<1x2x16xf32>
    %108 = vector.extract_strided_slice %107 {offsets = [0, 1, 0], sizes = [1, 1, 16], strides = [1, 1, 1]} : vector<1x2x16xf32> to vector<1x1x16xf32>
    %109 = vector.broadcast %106 : vector<1x16x1xf32> to vector<1x16x16xf32>
    %110 = vector.broadcast %108 : vector<1x1x16xf32> to vector<1x16x16xf32>
    %111 = arith.addf %109, %110 : vector<1x16x16xf32>
    %cst_32 = arith.constant 0.000000e+00 : f32
    %112 = vector.broadcast %cst_32 : f32 to vector<1x16x16xf32>
    %113 = arith.cmpf ogt, %111, %112 : vector<1x16x16xf32>
    %cst_33 = arith.constant 2.000000e-01 : f32
    %114 = vector.broadcast %cst_33 : f32 to vector<1x16x16xf32>
    %115 = arith.mulf %114, %111 : vector<1x16x16xf32>
    %116 = arith.select %113, %111, %115 : vector<1x16x16xi1>, vector<1x16x16xf32>
    %117 = vector.shape_cast %2 : vector<16x16xi1> to vector<1x16x16xi1>
    %cst_34 = arith.constant -1.000000e+30 : f32
    %118 = vector.broadcast %cst_34 : f32 to vector<1x16x16xf32>
    %119 = arith.select %117, %116, %118 : vector<1x16x16xi1>, vector<1x16x16xf32>
    %cst_35 = arith.constant dense<0xFF800000> : vector<1x16xf32>
    %120 = vector.multi_reduction <maximumf>, %119, %cst_35 [2] : vector<1x16x16xf32> to vector<1x16xf32>
    %121 = vector.shape_cast %120 : vector<1x16xf32> to vector<1x16x1xf32>
    %122 = vector.broadcast %121 : vector<1x16x1xf32> to vector<1x16x16xf32>
    %123 = arith.subf %119, %122 : vector<1x16x16xf32>
    %124 = math.exp %123 : vector<1x16x16xf32>
    %cst_36 = arith.constant dense<0.000000e+00> : vector<1x16xf32>
    %125 = vector.multi_reduction <add>, %124, %cst_36 [2] : vector<1x16x16xf32> to vector<1x16xf32>
    %126 = vector.shape_cast %125 : vector<1x16xf32> to vector<1x16x1xf32>
    %127 = arith.truncf %124 : vector<1x16x16xf32> to vector<1x16x16xbf16>
    %128 = arith.truncf %102 : vector<1x16x128xf32> to vector<1x16x128xbf16>
    "tpu.trace_start"() <{level = 10 : i32, message = "hij,hjc->hic"}> : () -> ()
    %cst_37 = arith.constant dense<0.000000e+00> : vector<1x16x128xf32>
    %129 = tpu.matmul %127, %128, %cst_37 {dimension_numbers = #tpu.dot_dimension_numbers<[2], [1], [1], [2], [0, 0, 0, 1, 1, 2], [0], [0]>} : vector<1x16x16xbf16>, vector<1x16x128xbf16>, vector<1x16x128xf32> -> vector<1x16x128xf32>
    "tpu.trace_stop"() : () -> ()
    %130 = tpu.reciprocal %126 {approx = true} : vector<1x16x1xf32> -> vector<1x16x1xf32>
    %131 = vector.broadcast %130 : vector<1x16x1xf32> to vector<1x16x128xf32>
    %132 = arith.mulf %129, %131 : vector<1x16x128xf32>
    %133 = vector.broadcast %104 : vector<1x1x128xf32> to vector<1x16x128xf32>
    %134 = arith.addf %132, %133 : vector<1x16x128xf32>
    %135 = vector.shape_cast %134 : vector<1x16x128xf32> to vector<16x128xf32>
    %cst_38 = arith.constant 0.000000e+00 : f32
    %136 = vector.broadcast %cst_38 : f32 to vector<16x128xf32>
    %137 = arith.maximumf %135, %136 : vector<16x128xf32>
    %c0_39 = arith.constant 0 : index
    %c0_40 = arith.constant 0 : index
    %138 = vector.load %arg9[%c0_39, %c0_40] : memref<16x8xf32, #tpu.memory_space<vmem>>, vector<16x8xf32>
    %139 = vector.extract_strided_slice %138 {offsets = [0, 0], sizes = [16, 1], strides = [1, 1]} : vector<16x8xf32> to vector<16x1xf32>
    %140 = vector.broadcast %139 : vector<16x1xf32> to vector<16x128xf32>
    %141 = arith.mulf %137, %140 : vector<16x128xf32>
    %cst_41 = arith.constant dense<0xFF800000> : vector<128xf32>
    %142 = vector.multi_reduction <maximumf>, %141, %cst_41 [0] : vector<16x128xf32> to vector<128xf32>
    %143 = vector.shape_cast %142 : vector<128xf32> to vector<1x128xf32>
    %144 = vector.extract_strided_slice %138 {offsets = [0, 1], sizes = [16, 1], strides = [1, 1]} : vector<16x8xf32> to vector<16x1xf32>
    %145 = vector.broadcast %144 : vector<16x1xf32> to vector<16x128xf32>
    %146 = arith.mulf %137, %145 : vector<16x128xf32>
    %cst_42 = arith.constant dense<0xFF800000> : vector<128xf32>
    %147 = vector.multi_reduction <maximumf>, %146, %cst_42 [0] : vector<16x128xf32> to vector<128xf32>
    %148 = vector.shape_cast %147 : vector<128xf32> to vector<1x128xf32>
    %149 = vector.extract_strided_slice %138 {offsets = [0, 2], sizes = [16, 1], strides = [1, 1]} : vector<16x8xf32> to vector<16x1xf32>
    %150 = vector.broadcast %149 : vector<16x1xf32> to vector<16x128xf32>
    %151 = arith.mulf %137, %150 : vector<16x128xf32>
    %cst_43 = arith.constant dense<0xFF800000> : vector<128xf32>
    %152 = vector.multi_reduction <maximumf>, %151, %cst_43 [0] : vector<16x128xf32> to vector<128xf32>
    %153 = vector.shape_cast %152 : vector<128xf32> to vector<1x128xf32>
    %154 = vector.extract_strided_slice %138 {offsets = [0, 3], sizes = [16, 1], strides = [1, 1]} : vector<16x8xf32> to vector<16x1xf32>
    %155 = vector.broadcast %154 : vector<16x1xf32> to vector<16x128xf32>
    %156 = arith.mulf %137, %155 : vector<16x128xf32>
    %cst_44 = arith.constant dense<0xFF800000> : vector<128xf32>
    %157 = vector.multi_reduction <maximumf>, %156, %cst_44 [0] : vector<16x128xf32> to vector<128xf32>
    %158 = vector.shape_cast %157 : vector<128xf32> to vector<1x128xf32>
    %159 = vector.extract_strided_slice %138 {offsets = [0, 4], sizes = [16, 1], strides = [1, 1]} : vector<16x8xf32> to vector<16x1xf32>
    %160 = vector.broadcast %159 : vector<16x1xf32> to vector<16x128xf32>
    %161 = arith.mulf %137, %160 : vector<16x128xf32>
    %cst_45 = arith.constant dense<0xFF800000> : vector<128xf32>
    %162 = vector.multi_reduction <maximumf>, %161, %cst_45 [0] : vector<16x128xf32> to vector<128xf32>
    %163 = vector.shape_cast %162 : vector<128xf32> to vector<1x128xf32>
    %164 = vector.extract_strided_slice %138 {offsets = [0, 5], sizes = [16, 1], strides = [1, 1]} : vector<16x8xf32> to vector<16x1xf32>
    %165 = vector.broadcast %164 : vector<16x1xf32> to vector<16x128xf32>
    %166 = arith.mulf %137, %165 : vector<16x128xf32>
    %cst_46 = arith.constant dense<0xFF800000> : vector<128xf32>
    %167 = vector.multi_reduction <maximumf>, %166, %cst_46 [0] : vector<16x128xf32> to vector<128xf32>
    %168 = vector.shape_cast %167 : vector<128xf32> to vector<1x128xf32>
    %169 = vector.extract_strided_slice %138 {offsets = [0, 6], sizes = [16, 1], strides = [1, 1]} : vector<16x8xf32> to vector<16x1xf32>
    %170 = vector.broadcast %169 : vector<16x1xf32> to vector<16x128xf32>
    %171 = arith.mulf %137, %170 : vector<16x128xf32>
    %cst_47 = arith.constant dense<0xFF800000> : vector<128xf32>
    %172 = vector.multi_reduction <maximumf>, %171, %cst_47 [0] : vector<16x128xf32> to vector<128xf32>
    %173 = vector.shape_cast %172 : vector<128xf32> to vector<1x128xf32>
    %174 = vector.extract_strided_slice %138 {offsets = [0, 7], sizes = [16, 1], strides = [1, 1]} : vector<16x8xf32> to vector<16x1xf32>
    %175 = vector.broadcast %174 : vector<16x1xf32> to vector<16x128xf32>
    %176 = arith.mulf %137, %175 : vector<16x128xf32>
    %cst_48 = arith.constant dense<0xFF800000> : vector<128xf32>
    %177 = vector.multi_reduction <maximumf>, %176, %cst_48 [0] : vector<16x128xf32> to vector<128xf32>
    %178 = vector.shape_cast %177 : vector<128xf32> to vector<1x128xf32>
    %179 = tpu.concatenate %143, %148, %153, %158, %163, %168, %173, %178 in 0 : vector<1x128xf32>, vector<1x128xf32>, vector<1x128xf32>, vector<1x128xf32>, vector<1x128xf32>, vector<1x128xf32>, vector<1x128xf32>, vector<1x128xf32> -> vector<8x128xf32>
    %180 = arith.truncf %179 : vector<8x128xf32> to vector<8x128xbf16>
    %c0_49 = arith.constant 0 : index
    %c0_50 = arith.constant 0 : index
    %181 = vector.load %arg10[%c0_49, %c0_50] : memref<128x128xbf16, #tpu.memory_space<vmem>>, vector<128x128xbf16>
    %cst_51 = arith.constant dense<0.000000e+00> : vector<8x128xf32>
    %182 = tpu.matmul %180, %181, %cst_51 {dimension_numbers = #tpu.dot_dimension_numbers<[1], [0], [0], [1], [0, 0, 1, 1], [], []>} : vector<8x128xbf16>, vector<128x128xbf16>, vector<8x128xf32> -> vector<8x128xf32>
    %c0_52 = arith.constant 0 : index
    %c0_53 = arith.constant 0 : index
    %183 = vector.load %arg11[%c0_52, %c0_53] : memref<1x128xf32, #tpu.memory_space<vmem>>, vector<1x128xf32>
    %184 = vector.broadcast %183 : vector<1x128xf32> to vector<8x128xf32>
    %185 = arith.addf %182, %184 : vector<8x128xf32>
    %cst_54 = arith.constant 0.000000e+00 : f32
    %186 = vector.broadcast %cst_54 : f32 to vector<8x128xf32>
    %187 = arith.maximumf %185, %186 : vector<8x128xf32>
    %c0_55 = arith.constant 0 : index
    %c0_56 = arith.constant 0 : index
    %188 = vector.load %arg12[%c0_55, %c0_56] : memref<8x128xf32, #tpu.memory_space<vmem>>, vector<8x128xf32>
    tpu.vector_store %arg12[%c0_55, %c0_56], %187 {strides = array<i32>} : memref<8x128xf32, #tpu.memory_space<vmem>>, vector<8x128xf32>,
    return
  }
  func.func @transform_0(%arg0: i32) -> (i32, i32) {
    %c0_i32 = arith.constant 0 : i32
    %c0_i32_0 = arith.constant 0 : i32
    %c0_i32_1 = arith.constant 0 : i32
    return %c0_i32, %c0_i32_0 : i32, i32
  }
  func.func @transform_1(%arg0: i32) -> (i32, i32) {
    %c0_i32 = arith.constant 0 : i32
    %c0_i32_0 = arith.constant 0 : i32
    %c0_i32_1 = arith.constant 0 : i32
    return %c0_i32, %c0_i32_0 : i32, i32
  }
  func.func @transform_2(%arg0: i32) -> (i32, i32) {
    %c0_i32 = arith.constant 0 : i32
    %c0_i32_0 = arith.constant 0 : i32
    %c0_i32_1 = arith.constant 0 : i32
    return %c0_i32, %c0_i32_0 : i32, i32
  }
  func.func @transform_3(%arg0: i32) -> (i32, i32, i32) {
    %c0_i32 = arith.constant 0 : i32
    %c0_i32_0 = arith.constant 0 : i32
    %c0_i32_1 = arith.constant 0 : i32
    %c0_i32_2 = arith.constant 0 : i32
    return %c0_i32, %c0_i32_0, %c0_i32_1 : i32, i32, i32
  }
  func.func @transform_4(%arg0: i32) -> (i32, i32, i32) {
    %c0_i32 = arith.constant 0 : i32
    %c0_i32_0 = arith.constant 0 : i32
    %c0_i32_1 = arith.constant 0 : i32
    %c0_i32_2 = arith.constant 0 : i32
    return %c0_i32, %c0_i32_0, %c0_i32_1 : i32, i32, i32
  }
  func.func @transform_5(%arg0: i32) -> (i32, i32) {
    %c0_i32 = arith.constant 0 : i32
    %c0_i32_0 = arith.constant 0 : i32
    %c0_i32_1 = arith.constant 0 : i32
    return %c0_i32, %c0_i32_0 : i32, i32
  }
  func.func @transform_6(%arg0: i32) -> (i32, i32, i32) {
    %c0_i32 = arith.constant 0 : i32
    %c0_i32_0 = arith.constant 0 : i32
    %c0_i32_1 = arith.constant 0 : i32
    %c0_i32_2 = arith.constant 0 : i32
    return %c0_i32, %c0_i32_0, %c0_i32_1 : i32, i32, i32
  }
  func.func @transform_7(%arg0: i32) -> (i32, i32, i32) {
    %c0_i32 = arith.constant 0 : i32
    %c0_i32_0 = arith.constant 0 : i32
    %c0_i32_1 = arith.constant 0 : i32
    %c0_i32_2 = arith.constant 0 : i32
    return %c0_i32, %c0_i32_0, %c0_i32_1 : i32, i32, i32
  }
  func.func @transform_8(%arg0: i32) -> (i32, i32) {
    %c0_i32 = arith.constant 0 : i32
    %c0_i32_0 = arith.constant 0 : i32
    %c0_i32_1 = arith.constant 0 : i32
    return %c0_i32, %c0_i32_0 : i32, i32
  }
  func.func @transform_9(%arg0: i32) -> (i32, i32) {
    %c0_i32 = arith.constant 0 : i32
    %c0_i32_0 = arith.constant 0 : i32
    %c0_i32_1 = arith.constant 0 : i32
    return %c0_i32, %c0_i32_0 : i32, i32
  }
  func.func @transform_10(%arg0: i32) -> (i32, i32) {
    %c0_i32 = arith.constant 0 : i32
    %c0_i32_0 = arith.constant 0 : i32
    %c0_i32_1 = arith.constant 0 : i32
    return %c0_i32, %c0_i32_0 : i32, i32
  }
  func.func @transform_11(%arg0: i32) -> (i32, i32) {
    %c0_i32 = arith.constant 0 : i32
    %c0_i32_0 = arith.constant 0 : i32
    %c0_i32_1 = arith.constant 0 : i32
    return %c0_i32, %c0_i32_0 : i32, i32
  }
}

</mosaic_0001>

<llo_original>
// kernel: tpu_custom_call.1
$region0: #{tpu_custom_call.1}
  #allocation0 [shape = 'u32[]', space=smem, size = 0x4, offset = 0x4, fixed_abs, tag = 'smem constant byte address 0x4 - core index']
  #allocation1 [shape = 'u32[144,128]{1,0:T(1,128)}', space=vmem, size = 0x12000, scoped, tag = 'internal scratch']
  %s0 = inlined_call_operand.hbm [shape: bf16[16,128], index: 0, kind: input, shape index: {}]
  %s1 = inlined_call_operand.hbm [shape: bf16[16,16], index: 1, kind: input, shape index: {}]
  %s2 = inlined_call_operand.hbm [shape: bf16[128,1280], index: 2, kind: input, shape index: {}]
  %s3 = inlined_call_operand.vmem [shape: f32[10,2,128], index: 3, kind: input, shape index: {}]
  %s4 = inlined_call_operand.vmem [shape: f32[10,1,128], index: 4, kind: input, shape index: {}]
  %s5 = inlined_call_operand.hbm [shape: bf16[1280,128], index: 5, kind: input, shape index: {}]
  %s6 = inlined_call_operand.vmem [shape: f32[1,2,128], index: 6, kind: input, shape index: {}]
  %s7 = inlined_call_operand.vmem [shape: f32[1,1,128], index: 7, kind: input, shape index: {}]
  %s8 = inlined_call_operand.vmem [shape: f32[16,8], index: 8, kind: input, shape index: {}]
  %s9 = inlined_call_operand.hbm [shape: bf16[128,128], index: 9, kind: input, shape index: {}]
  %s10 = inlined_call_operand.vmem [shape: f32[1,128], index: 10, kind: input, shape index: {}]
  %s11 = inlined_call_operand.hbm [shape: f32[8,128], index: 11, kind: output, shape index: {}]
  %s12 = sld [smem:[#allocation0]]
  $region74: #{tpu_custom_call.1} parent=0
    _
  %s14 = ssub.s32 1, %s12
  %s15 = scalar_select 0, %s14, %s12
  $region1: #{tpu_custom_call.1} parent=0
    #allocation2 [shape = 'u8[4096]{0}', space=vmem, size = 0x1000, scoped, tag = 'input window, operand 0, single buffered']
    #allocation3 [shape = 's32[1]{0}', space=sflag, size = 0x4, scoped, tag = 'scoped memory for tpu_custom_call.1']
    #allocation4 [shape = 's32[1]{0}', space=sflag, size = 0x4, scoped, tag = 'scoped memory for tpu_custom_call.1']
    #allocation5 [shape = 'u8[4096]{0}', space=vmem, size = 0x1000, scoped, tag = 'input window, operand 1, single buffered']
    #allocation6 [shape = 's32[1]{0}', space=sflag, size = 0x4, scoped, tag = 'scoped memory for tpu_custom_call.1']
    #allocation7 [shape = 'u8[327680]{0}', space=vmem, size = 0x50000, scoped, tag = 'input window, operand 2, single buffered']
    #allocation8 [shape = 'u8[327680]{0}', space=vmem, size = 0x50000, scoped, tag = 'input window, operand 5, single buffered']
    #allocation9 [shape = 's32[1]{0}', space=sflag, size = 0x4, scoped, tag = 'scoped memory for tpu_custom_call.1']
    #allocation10 [shape = 'u8[32768]{0}', space=vmem, size = 0x8000, scoped, tag = 'input window, operand 9, single buffered']
    #allocation11 [shape = 'u8[4096]{0}', space=vmem, size = 0x1000, scoped, tag = 'output window, operand 0, single buffered']
    %16 = vsyncpa [#allocation3], 0
    %17 = vsyncpa [#allocation6], 0
    %18 = vsyncpa [#allocation9], 0
    %19 = vsyncpa [#allocation4], 0
    // Predicated region
    $region2: #{tpu_custom_call.1} parent=1 // pred_check
      _
    $region3: #{tpu_custom_call.1} parent=1 // pred_check_branch
      %21 = sbr.rel (0) target = $region5
    $region4: #{tpu_custom_call.1} parent=1 // pred_region
      %s23 = ssub.s32 128, 128
      %24 = vsyncadd [#allocation3], %s23
      %s25 = sshll.u32 [#allocation2], 4
      %s26 = int_to_ptr.vmem [resolvable:$true] %s25
      %31 = dma.hbm_to_vmem [thread:$0]  %s0, 128, %s26, [#allocation3], 64, 64, 4
    $region5: #{tpu_custom_call.1} parent=1 // pred_fallthru
      _
    // Predicated region
    $region6: #{tpu_custom_call.1} parent=1 // pred_check
      _
    $region7: #{tpu_custom_call.1} parent=1 // pred_check_branch
      %33 = sbr.rel (0) target = $region9
    $region8: #{tpu_custom_call.1} parent=1 // pred_region
      %s35 = ssub.s32 128, 128
      %36 = vsyncadd [#allocation6], %s35
      %s37 = sshll.u32 [#allocation5], 4
      %s38 = int_to_ptr.vmem [resolvable:$true] %s37
      %43 = dma.hbm_to_vmem [thread:$0]  %s1, 128, %s38, [#allocation6], 64, 64, 4
    $region9: #{tpu_custom_call.1} parent=1 // pred_fallthru
      _
    // Predicated region
    $region10: #{tpu_custom_call.1} parent=1 // pred_check
      _
    $region11: #{tpu_custom_call.1} parent=1 // pred_check_branch
      %45 = sbr.rel (0) target = $region13
    $region12: #{tpu_custom_call.1} parent=1 // pred_region
      %s47 = ssub.s32 10240, 10240
      %48 = vsyncadd [#allocation6], %s47
      %s49 = sshll.u32 [#allocation7], 4
      %s50 = int_to_ptr.vmem [resolvable:$true] %s49
      %55 = dma.hbm_to_vmem [thread:$0]  %s2, 10240, %s50, [#allocation6], 640, 640, 40
    $region13: #{tpu_custom_call.1} parent=1 // pred_fallthru
      _
    // Predicated region
    $region14: #{tpu_custom_call.1} parent=1 // pred_check
      _
    $region15: #{tpu_custom_call.1} parent=1 // pred_check_branch
      %57 = sbr.rel (0) target = $region17
    $region16: #{tpu_custom_call.1} parent=1 // pred_region
      _
    $region17: #{tpu_custom_call.1} parent=1 // pred_fallthru
      _
    // Predicated region
    $region18: #{tpu_custom_call.1} parent=1 // pred_check
      _
    $region19: #{tpu_custom_call.1} parent=1 // pred_check_branch
      %59 = sbr.rel (0) target = $region21
    $region20: #{tpu_custom_call.1} parent=1 // pred_region
      _
    $region21: #{tpu_custom_call.1} parent=1 // pred_fallthru
      _
    // Predicated region
    $region22: #{tpu_custom_call.1} parent=1 // pred_check
      _
    $region23: #{tpu_custom_call.1} parent=1 // pred_check_branch
      %61 = sbr.rel (0) target = $region25
    $region24: #{tpu_custom_call.1} parent=1 // pred_region
      %s63 = ssub.s32 10240, 10240
      %64 = vsyncadd [#allocation9], %s63
      %s65 = sshll.u32 [#allocation8], 4
      %s66 = int_to_ptr.vmem [resolvable:$true] %s65
      %71 = dma.hbm_to_vmem [thread:$0]  %s5, 10240, %s66, [#allocation9], 64, 64, 4
    $region25: #{tpu_custom_call.1} parent=1 // pred_fallthru
      _
    // Predicated region
    $region26: #{tpu_custom_call.1} parent=1 // pred_check
      _
    $region27: #{tpu_custom_call.1} parent=1 // pred_check_branch
      %73 = sbr.rel (0) target = $region29
    $region28: #{tpu_custom_call.1} parent=1 // pred_region
      _
    $region29: #{tpu_custom_call.1} parent=1 // pred_fallthru
      _
    // Predicated region
    $region30: #{tpu_custom_call.1} parent=1 // pred_check
      _
    $region31: #{tpu_custom_call.1} parent=1 // pred_check_branch
      %75 = sbr.rel (0) target = $region33
    $region32: #{tpu_custom_call.1} parent=1 // pred_region
      _
    $region33: #{tpu_custom_call.1} parent=1 // pred_fallthru
      _
    // Predicated region
    $region34: #{tpu_custom_call.1} parent=1 // pred_check
      _
    $region35: #{tpu_custom_call.1} parent=1 // pred_check_branch
      %77 = sbr.rel (0) target = $region37
    $region36: #{tpu_custom_call.1} parent=1 // pred_region
      _
    $region37: #{tpu_custom_call.1} parent=1 // pred_fallthru
      _
    // Predicated region
    $region38: #{tpu_custom_call.1} parent=1 // pred_check
      _
    $region39: #{tpu_custom_call.1} parent=1 // pred_check_branch
      %79 = sbr.rel (0) target = $region41
    $region40: #{tpu_custom_call.1} parent=1 // pred_region
      %s81 = ssub.s32 1024, 1024
      %82 = vsyncadd [#allocation9], %s81
      %s83 = sshll.u32 [#allocation10], 4
      %s84 = int_to_ptr.vmem [resolvable:$true] %s83
      %89 = dma.hbm_to_vmem [thread:$0]  %s9, 1024, %s84, [#allocation9], 64, 64, 4
    $region41: #{tpu_custom_call.1} parent=1 // pred_fallthru
      _
    // Predicated region
    $region42: #{tpu_custom_call.1} parent=1 // pred_check
      _
    $region43: #{tpu_custom_call.1} parent=1 // pred_check_branch
      %91 = sbr.rel (0) target = $region45
    $region44: #{tpu_custom_call.1} parent=1 // pred_region
      _
    $region45: #{tpu_custom_call.1} parent=1 // pred_fallthru
      _
    // Predicated region
    $region46: #{tpu_custom_call.1} parent=1 // pred_check
      _
    $region47: #{tpu_custom_call.1} parent=1 // pred_check_branch
      %93 = sbr.rel (0) target = $region49
    $region48: #{tpu_custom_call.1} parent=1 // pred_region
      %94 = dma.done [#allocation3], 128
    $region49: #{tpu_custom_call.1} parent=1 // pred_fallthru
      _
    // Predicated region
    $region50: #{tpu_custom_call.1} parent=1 // pred_check
      _
    $region51: #{tpu_custom_call.1} parent=1 // pred_check_branch
      %96 = sbr.rel (0) target = $region53
    $region52: #{tpu_custom_call.1} parent=1 // pred_region
      %97 = dma.done [#allocation6], 128
    $region53: #{tpu_custom_call.1} parent=1 // pred_fallthru
      _
    // Predicated region
    $region54: #{tpu_custom_call.1} parent=1 // pred_check
      _
    $region55: #{tpu_custom_call.1} parent=1 // pred_check_branch
      %99 = sbr.rel (0) target = $region57
    $region56: #{tpu_custom_call.1} parent=1 // pred_region
      %100 = dma.done [#allocation6], 10240
    $region57: #{tpu_custom_call.1} parent=1 // pred_fallthru
      _
    // Predicated region
    $region58: #{tpu_custom_call.1} parent=1 // pred_check
      _
    $region59: #{tpu_custom_call.1} parent=1 // pred_check_branch
      %102 = sbr.rel (0) target = $region61
    $region60: #{tpu_custom_call.1} parent=1 // pred_region
      %103 = dma.done [#allocation9], 10240
    $region61: #{tpu_custom_call.1} parent=1 // pred_fallthru
      _
    // Predicated region
    $region62: #{tpu_custom_call.1} parent=1 // pred_check
      _
    $region63: #{tpu_custom_call.1} parent=1 // pred_check_branch
      %105 = sbr.rel (0) target = $region65
    $region64: #{tpu_custom_call.1} parent=1 // pred_region
      %106 = dma.done [#allocation9], 1024
    $region65: #{tpu_custom_call.1} parent=1 // pred_fallthru
      _
    %v111 = vld [vmem:[#allocation5] sm:$0xf]
    %v112 = vld [vmem:[#allocation5 + $0x4] sm:$0xf]
    %vm113 = vcmp.gt.bf16.partialorder %v111, 1056980736
    %vm114 = vcmp.gt.bf16.partialorder %v112, 1056980736
    %v115 = vld [vmem:[#allocation2] sm:$0xf]
    %v116 = vld [vmem:[#allocation2 + $0x4] sm:$0xf]
    %v117 = vld [vmem:[#allocation7] sm:$0xff]
    %v118 = vld [vmem:[#allocation7 + $0x8] sm:$0xff]
    %v119 = vld [vmem:[#allocation7 + $0x10] sm:$0xff]
    %v120 = vld [vmem:[#allocation7 + $0x18] sm:$0xff]
    %v121 = vld [vmem:[#allocation7 + $0x20] sm:$0xff]
    %v122 = vld [vmem:[#allocation7 + $0x28] sm:$0xff]
    %v123 = vld [vmem:[#allocation7 + $0x30] sm:$0xff]
    %v124 = vld [vmem:[#allocation7 + $0x38] sm:$0xff]
    %v125 = vld [vmem:[#allocation7 + $0x40] sm:$0xff]
    %v126 = vld [vmem:[#allocation7 + $0x48] sm:$0xff]
    %v127 = vld [vmem:[#allocation7 + $0x50] sm:$0xff]
    %v128 = vld [vmem:[#allocation7 + $0x58] sm:$0xff]
    %v129 = vld [vmem:[#allocation7 + $0x60] sm:$0xff]
    %v130 = vld [vmem:[#allocation7 + $0x68] sm:$0xff]
    %v131 = vld [vmem:[#allocation7 + $0x70] sm:$0xff]
    %v132 = vld [vmem:[#allocation7 + $0x78] sm:$0xff]
    %v133 = vld [vmem:[#allocation7 + $0x80] sm:$0xff]
    %v134 = vld [vmem:[#allocation7 + $0x88] sm:$0xff]
    %v135 = vld [vmem:[#allocation7 + $0x90] sm:$0xff]
    %v136 = vld [vmem:[#allocation7 + $0x98] sm:$0xff]
    %v137 = vld [vmem:[#allocation7 + $0xa0] sm:$0xff]
    %v138 = vld [vmem:[#allocation7 + $0xa8] sm:$0xff]
    %v139 = vld [vmem:[#allocation7 + $0xb0] sm:$0xff]
    %v140 = vld [vmem:[#allocation7 + $0xb8] sm:$0xff]
    %v141 = vld [vmem:[#allocation7 + $0xc0] sm:$0xff]
    %v142 = vld [vmem:[#allocation7 + $0xc8] sm:$0xff]
    %v143 = vld [vmem:[#allocation7 + $0xd0] sm:$0xff]
    %v144 = vld [vmem:[#allocation7 + $0xd8] sm:$0xff]
    %v145 = vld [vmem:[#allocation7 + $0xe0] sm:$0xff]
    %v146 = vld [vmem:[#allocation7 + $0xe8] sm:$0xff]
    %v147 = vld [vmem:[#allocation7 + $0xf0] sm:$0xff]
    %v148 = vld [vmem:[#allocation7 + $0xf8] sm:$0xff]
    %v149 = vld [vmem:[#allocation7 + $0x100] sm:$0xff]
    %v150 = vld [vmem:[#allocation7 + $0x108] sm:$0xff]
    %v151 = vld [vmem:[#allocation7 + $0x110] sm:$0xff]
    %v152 = vld [vmem:[#allocation7 + $0x118] sm:$0xff]
    %v153 = vld [vmem:[#allocation7 + $0x120] sm:$0xff]
    %v154 = vld [vmem:[#allocation7 + $0x128] sm:$0xff]
    %v155 = vld [vmem:[#allocation7 + $0x130] sm:$0xff]
    %v156 = vld [vmem:[#allocation7 + $0x138] sm:$0xff]
    %v157 = vld [vmem:[#allocation7 + $0x140] sm:$0xff]
    %v158 = vld [vmem:[#allocation7 + $0x148] sm:$0xff]
    %v159 = vld [vmem:[#allocation7 + $0x150] sm:$0xff]
    %v160 = vld [vmem:[#allocation7 + $0x158] sm:$0xff]
    %v161 = vld [vmem:[#allocation7 + $0x160] sm:$0xff]
    %v162 = vld [vmem:[#allocation7 + $0x168] sm:$0xff]
    %v163 = vld [vmem:[#allocation7 + $0x170] sm:$0xff]
    %v164 = vld [vmem:[#allocation7 + $0x178] sm:$0xff]
    %v165 = vld [vmem:[#allocation7 + $0x180] sm:$0xff]
    %v166 = vld [vmem:[#allocation7 + $0x188] sm:$0xff]
    %v167 = vld [vmem:[#allocation7 + $0x190] sm:$0xff]
    %v168 = vld [vmem:[#allocation7 + $0x198] sm:$0xff]
    %v169 = vld [vmem:[#allocation7 + $0x1a0] sm:$0xff]
    %v170 = vld [vmem:[#allocation7 + $0x1a8] sm:$0xff]
    %v171 = vld [vmem:[#allocation7 + $0x1b0] sm:$0xff]
    %v172 = vld [vmem:[#allocation7 + $0x1b8] sm:$0xff]
    %v173 = vld [vmem:[#allocation7 + $0x1c0] sm:$0xff]
    %v174 = vld [vmem:[#allocation7 + $0x1c8] sm:$0xff]
    %v175 = vld [vmem:[#allocation7 + $0x1d0] sm:$0xff]
    %v176 = vld [vmem:[#allocation7 + $0x1d8] sm:$0xff]
    %v177 = vld [vmem:[#allocation7 + $0x1e0] sm:$0xff]
    %v178 = vld [vmem:[#allocation7 + $0x1e8] sm:$0xff]
    %v179 = vld [vmem:[#allocation7 + $0x1f0] sm:$0xff]
    %v180 = vld [vmem:[#allocation7 + $0x1f8] sm:$0xff]
    %v181 = vld [vmem:[#allocation7 + $0x200] sm:$0xff]
    %v182 = vld [vmem:[#allocation7 + $0x208] sm:$0xff]
    %v183 = vld [vmem:[#allocation7 + $0x210] sm:$0xff]
    %v184 = vld [vmem:[#allocation7 + $0x218] sm:$0xff]
    %v185 = vld [vmem:[#allocation7 + $0x220] sm:$0xff]
    %v186 = vld [vmem:[#allocation7 + $0x228] sm:$0xff]
    %v187 = vld [vmem:[#allocation7 + $0x230] sm:$0xff]
    %v188 = vld [vmem:[#allocation7 + $0x238] sm:$0xff]
    %v189 = vld [vmem:[#allocation7 + $0x240] sm:$0xff]
    %v190 = vld [vmem:[#allocation7 + $0x248] sm:$0xff]
    %v191 = vld [vmem:[#allocation7 + $0x250] sm:$0xff]
    %v192 = vld [vmem:[#allocation7 + $0x258] sm:$0xff]
    %v193 = vld [vmem:[#allocation7 + $0x260] sm:$0xff]
    %v194 = vld [vmem:[#allocation7 + $0x268] sm:$0xff]
    %v195 = vld [vmem:[#allocation7 + $0x270] sm:$0xff]
    %v196 = vld [vmem:[#allocation7 + $0x278] sm:$0xff]
    %v199 = vunpack.c.l.b16 %v115
    %v200 = vunpack.c.l.b16 %v116
    %v201 = vpack.c.b16 %v200, %v199
    %v283 = vunpack.c.l.b16 %v117
    %v284 = vunpack.c.h.b16 %v117
    %v285 = vunpack.c.l.b16 %v118
    %v286 = vunpack.c.h.b16 %v118
    %v287 = vunpack.c.l.b16 %v119
    %v288 = vunpack.c.h.b16 %v119
    %v289 = vunpack.c.l.b16 %v120
    %v290 = vunpack.c.h.b16 %v120
    %v291 = vunpack.c.l.b16 %v121
    %v292 = vunpack.c.h.b16 %v121
    %v293 = vunpack.c.l.b16 %v122
    %v294 = vunpack.c.h.b16 %v122
    %v295 = vunpack.c.l.b16 %v123
    %v296 = vunpack.c.h.b16 %v123
    %v297 = vunpack.c.l.b16 %v124
    %v298 = vunpack.c.h.b16 %v124
    %v299 = vunpack.c.l.b16 %v125
    %v300 = vunpack.c.h.b16 %v125
    %v301 = vunpack.c.l.b16 %v126
    %v302 = vunpack.c.h.b16 %v126
    %v303 = vunpack.c.l.b16 %v127
    %v304 = vunpack.c.h.b16 %v127
    %v305 = vunpack.c.l.b16 %v128
    %v306 = vunpack.c.h.b16 %v128
    %v307 = vunpack.c.l.b16 %v129
    %v308 = vunpack.c.h.b16 %v129
    %v309 = vunpack.c.l.b16 %v130
    %v310 = vunpack.c.h.b16 %v130
    %v311 = vunpack.c.l.b16 %v131
    %v312 = vunpack.c.h.b16 %v131
    %v313 = vunpack.c.l.b16 %v132
    %v314 = vunpack.c.h.b16 %v132
    %v315 = vunpack.c.l.b16 %v133
    %v316 = vunpack.c.h.b16 %v133
    %v317 = vunpack.c.l.b16 %v134
    %v318 = vunpack.c.h.b16 %v134
    %v319 = vunpack.c.l.b16 %v135
    %v320 = vunpack.c.h.b16 %v135
    %v321 = vunpack.c.l.b16 %v136
    %v322 = vunpack.c.h.b16 %v136
    %v323 = vunpack.c.l.b16 %v137
    %v324 = vunpack.c.h.b16 %v137
    %v325 = vunpack.c.l.b16 %v138
    %v326 = vunpack.c.h.b16 %v138
    %v327 = vunpack.c.l.b16 %v139
    %v328 = vunpack.c.h.b16 %v139
    %v329 = vunpack.c.l.b16 %v140
    %v330 = vunpack.c.h.b16 %v140
    %v331 = vunpack.c.l.b16 %v141
    %v332 = vunpack.c.h.b16 %v141
    %v333 = vunpack.c.l.b16 %v142
    %v334 = vunpack.c.h.b16 %v142
    %v335 = vunpack.c.l.b16 %v143
    %v336 = vunpack.c.h.b16 %v143
    %v337 = vunpack.c.l.b16 %v144
    %v338 = vunpack.c.h.b16 %v144
    %v339 = vunpack.c.l.b16 %v145
    %v340 = vunpack.c.h.b16 %v145
    %v341 = vunpack.c.l.b16 %v146
    %v342 = vunpack.c.h.b16 %v146
    %v343 = vunpack.c.l.b16 %v147
    %v344 = vunpack.c.h.b16 %v147
    %v345 = vunpack.c.l.b16 %v148
    %v346 = vunpack.c.h.b16 %v148
    %v347 = vunpack.c.l.b16 %v149
    %v348 = vunpack.c.h.b16 %v149
    %v349 = vunpack.c.l.b16 %v150
    %v350 = vunpack.c.h.b16 %v150
    %v351 = vunpack.c.l.b16 %v151
    %v352 = vunpack.c.h.b16 %v151
    %v353 = vunpack.c.l.b16 %v152
    %v354 = vunpack.c.h.b16 %v152
    %v355 = vunpack.c.l.b16 %v153
    %v356 = vunpack.c.h.b16 %v153
    %v357 = vunpack.c.l.b16 %v154
    %v358 = vunpack.c.h.b16 %v154
    %v359 = vunpack.c.l.b16 %v155
    %v360 = vunpack.c.h.b16 %v155
    %v361 = vunpack.c.l.b16 %v156
    %v362 = vunpack.c.h.b16 %v156
    %v363 = vunpack.c.l.b16 %v157
    %v364 = vunpack.c.h.b16 %v157
    %v365 = vunpack.c.l.b16 %v158
    %v366 = vunpack.c.h.b16 %v158
    %v367 = vunpack.c.l.b16 %v159
    %v368 = vunpack.c.h.b16 %v159
    %v369 = vunpack.c.l.b16 %v160
    %v370 = vunpack.c.h.b16 %v160
    %v371 = vunpack.c.l.b16 %v161
    %v372 = vunpack.c.h.b16 %v161
    %v373 = vunpack.c.l.b16 %v162
    %v374 = vunpack.c.h.b16 %v162
    %v375 = vunpack.c.l.b16 %v163
    %v376 = vunpack.c.h.b16 %v163
    %v377 = vunpack.c.l.b16 %v164
    %v378 = vunpack.c.h.b16 %v164
    %v379 = vunpack.c.l.b16 %v165
    %v380 = vunpack.c.h.b16 %v165
    %v381 = vunpack.c.l.b16 %v166
    %v382 = vunpack.c.h.b16 %v166
    %v383 = vunpack.c.l.b16 %v167
    %v384 = vunpack.c.h.b16 %v167
    %v385 = vunpack.c.l.b16 %v168
    %v386 = vunpack.c.h.b16 %v168
    %v387 = vunpack.c.l.b16 %v169
    %v388 = vunpack.c.h.b16 %v169
    %v389 = vunpack.c.l.b16 %v170
    %v390 = vunpack.c.h.b16 %v170
    %v391 = vunpack.c.l.b16 %v171
    %v392 = vunpack.c.h.b16 %v171
    %v393 = vunpack.c.l.b16 %v172
    %v394 = vunpack.c.h.b16 %v172
    %v395 = vunpack.c.l.b16 %v173
    %v396 = vunpack.c.h.b16 %v173
    %v397 = vunpack.c.l.b16 %v174
    %v398 = vunpack.c.h.b16 %v174
    %v399 = vunpack.c.l.b16 %v175
    %v400 = vunpack.c.h.b16 %v175
    %v401 = vunpack.c.l.b16 %v176
    %v402 = vunpack.c.h.b16 %v176
    %v403 = vunpack.c.l.b16 %v177
    %v404 = vunpack.c.h.b16 %v177
    %v405 = vunpack.c.l.b16 %v178
    %v406 = vunpack.c.h.b16 %v178
    %v407 = vunpack.c.l.b16 %v179
    %v408 = vunpack.c.h.b16 %v179
    %v409 = vunpack.c.l.b16 %v180
    %v410 = vunpack.c.h.b16 %v180
    %v411 = vunpack.c.l.b16 %v181
    %v412 = vunpack.c.h.b16 %v181
    %v413 = vunpack.c.l.b16 %v182
    %v414 = vunpack.c.h.b16 %v182
    %v415 = vunpack.c.l.b16 %v183
    %v416 = vunpack.c.h.b16 %v183
    %v417 = vunpack.c.l.b16 %v184
    %v418 = vunpack.c.h.b16 %v184
    %v419 = vunpack.c.l.b16 %v185
    %v420 = vunpack.c.h.b16 %v185
    %v421 = vunpack.c.l.b16 %v186
    %v422 = vunpack.c.h.b16 %v186
    %v423 = vunpack.c.l.b16 %v187
    %v424 = vunpack.c.h.b16 %v187
    %v425 = vunpack.c.l.b16 %v188
    %v426 = vunpack.c.h.b16 %v188
    %v427 = vunpack.c.l.b16 %v189
    %v428 = vunpack.c.h.b16 %v189
    %v429 = vunpack.c.l.b16 %v190
    %v430 = vunpack.c.h.b16 %v190
    %v431 = vunpack.c.l.b16 %v191
    %v432 = vunpack.c.h.b16 %v191
    %v433 = vunpack.c.l.b16 %v192
    %v434 = vunpack.c.h.b16 %v192
    %v435 = vunpack.c.l.b16 %v193
    %v436 = vunpack.c.h.b16 %v193
    %v437 = vunpack.c.l.b16 %v194
    %v438 = vunpack.c.h.b16 %v194
    %v439 = vunpack.c.l.b16 %v195
    %v440 = vunpack.c.h.b16 %v195
    %v441 = vunpack.c.l.b16 %v196
    %v442 = vunpack.c.h.b16 %v196
    %v443 = vpack.c.b16 %v293, %v283
    %v444 = vpack.c.b16 %v294, %v284
    %v445 = vpack.c.b16 %v295, %v285
    %v446 = vpack.c.b16 %v296, %v286
    %v447 = vpack.c.b16 %v297, %v287
    %v448 = vpack.c.b16 %v298, %v288
    %v449 = vpack.c.b16 %v299, %v289
    %v450 = vpack.c.b16 %v300, %v290
    %v451 = vpack.c.b16 %v301, %v291
    %v452 = vpack.c.b16 %v302, %v292
    %v453 = vpack.c.b16 %v313, %v303
    %v454 = vpack.c.b16 %v314, %v304
    %v455 = vpack.c.b16 %v315, %v305
    %v456 = vpack.c.b16 %v316, %v306
    %v457 = vpack.c.b16 %v317, %v307
    %v458 = vpack.c.b16 %v318, %v308
    %v459 = vpack.c.b16 %v319, %v309
    %v460 = vpack.c.b16 %v320, %v310
    %v461 = vpack.c.b16 %v321, %v311
    %v462 = vpack.c.b16 %v322, %v312
    %v463 = vpack.c.b16 %v333, %v323
    %v464 = vpack.c.b16 %v334, %v324
    %v465 = vpack.c.b16 %v335, %v325
    %v466 = vpack.c.b16 %v336, %v326
    %v467 = vpack.c.b16 %v337, %v327
    %v468 = vpack.c.b16 %v338, %v328
    %v469 = vpack.c.b16 %v339, %v329
    %v470 = vpack.c.b16 %v340, %v330
    %v471 = vpack.c.b16 %v341, %v331
    %v472 = vpack.c.b16 %v342, %v332
    %v473 = vpack.c.b16 %v353, %v343
    %v474 = vpack.c.b16 %v354, %v344
    %v475 = vpack.c.b16 %v355, %v345
    %v476 = vpack.c.b16 %v356, %v346
    %v477 = vpack.c.b16 %v357, %v347
    %v478 = vpack.c.b16 %v358, %v348
    %v479 = vpack.c.b16 %v359, %v349
    %v480 = vpack.c.b16 %v360, %v350
    %v481 = vpack.c.b16 %v361, %v351
    %v482 = vpack.c.b16 %v362, %v352
    %v483 = vpack.c.b16 %v373, %v363
    %v484 = vpack.c.b16 %v374, %v364
    %v485 = vpack.c.b16 %v375, %v365
    %v486 = vpack.c.b16 %v376, %v366
    %v487 = vpack.c.b16 %v377, %v367
    %v488 = vpack.c.b16 %v378, %v368
    %v489 = vpack.c.b16 %v379, %v369
    %v490 = vpack.c.b16 %v380, %v370
    %v491 = vpack.c.b16 %v381, %v371
    %v492 = vpack.c.b16 %v382, %v372
    %v493 = vpack.c.b16 %v393, %v383
    %v494 = vpack.c.b16 %v394, %v384
    %v495 = vpack.c.b16 %v395, %v385
    %v496 = vpack.c.b16 %v396, %v386
    %v497 = vpack.c.b16 %v397, %v387
    %v498 = vpack.c.b16 %v398, %v388
    %v499 = vpack.c.b16 %v399, %v389
    %v500 = vpack.c.b16 %v400, %v390
    %v501 = vpack.c.b16 %v401, %v391
    %v502 = vpack.c.b16 %v402, %v392
    %v503 = vpack.c.b16 %v413, %v403
    %v504 = vpack.c.b16 %v414, %v404
    %v505 = vpack.c.b16 %v415, %v405
    %v506 = vpack.c.b16 %v416, %v406
    %v507 = vpack.c.b16 %v417, %v407
    %v508 = vpack.c.b16 %v418, %v408
    %v509 = vpack.c.b16 %v419, %v409
    %v510 = vpack.c.b16 %v420, %v410
    %v511 = vpack.c.b16 %v421, %v411
    %v512 = vpack.c.b16 %v422, %v412
    %v513 = vpack.c.b16 %v433, %v423
    %v514 = vpack.c.b16 %v434, %v424
    %v515 = vpack.c.b16 %v435, %v425
    %v516 = vpack.c.b16 %v436, %v426
    %v517 = vpack.c.b16 %v437, %v427
    %v518 = vpack.c.b16 %v438, %v428
    %v519 = vpack.c.b16 %v439, %v429
    %v520 = vpack.c.b16 %v440, %v430
    %v521 = vpack.c.b16 %v441, %v431
    %v522 = vpack.c.b16 %v442, %v432
    %603 = vmatprep.subr.bf16.mxu0 %v444
    %604 = vmatpush1.bf16.msra.mxu0 %v443
    %605 = vmatprep.subr.bf16.mxu0 %v454
    %606 = vmatpush1.bf16.msra.mxu0 %v453
    %607 = vmatprep.subr.bf16.mxu0 %v464
    %608 = vmatpush1.bf16.msra.mxu0 %v463
    %609 = vmatprep.subr.bf16.mxu0 %v474
    %610 = vmatpush1.bf16.msra.mxu0 %v473
    %611 = vmatprep.subr.bf16.mxu0 %v484
    %612 = vmatpush1.bf16.msra.mxu0 %v483
    %613 = vmatprep.subr.bf16.mxu0 %v494
    %614 = vmatpush1.bf16.msra.mxu0 %v493
    %615 = vmatprep.subr.bf16.mxu0 %v504
    %616 = vmatpush1.bf16.msra.mxu0 %v503
    %617 = vmatprep.subr.bf16.mxu0 %v514
    %618 = vmatpush1.bf16.msra.mxu0 %v513
    %619 = vmatprep.subr.bf16.mxu0 0
    %620 = vmatpush1.bf16.msra.mxu0 0
    %621 = vmatprep.subr.bf16.mxu0 0
    %622 = vmatpush1.bf16.msra.mxu0 0
    %623 = vmatprep.subr.bf16.mxu0 0
    %624 = vmatpush1.bf16.msra.mxu0 0
    %625 = vmatprep.subr.bf16.mxu0 0
    %626 = vmatpush1.bf16.msra.mxu0 0
    %627 = vmatprep.subr.bf16.mxu0 0
    %628 = vmatpush1.bf16.msra.mxu0 0
    %629 = vmatprep.subr.bf16.mxu0 0
    %630 = vmatpush1.bf16.msra.mxu0 0
    %631 = vmatprep.subr.bf16.mxu0 0
    %632 = vmatpush1.bf16.msra.mxu0 0
    %633 = vmatprep.subr.bf16.mxu0 0
    %634 = vmatpush1.bf16.msra.mxu0 0
    %635 = vmatprep.mubr.bf16.mxu0 0
    %636 = vmatmul.mubr.bf16.gmra.mrb[0].mxu0 %v201
    %v637 = vpop.f32.mrb[0].mxu0
    %v638 = vadd.f32 0.0, %v637
    %v639 = vpop.f32.mrb[0].mxu0
    %v640 = vadd.f32 0.0, %v639
    %v641 = vpop.f32.mrb[0].mxu0
    %v642 = vadd.f32 0.0, %v641
    %v643 = vpop.f32.mrb[0].mxu0
    %v644 = vadd.f32 0.0, %v643
    %645 = vdwg.mxu0
    %646 = vmatprep.subr.bf16.mxu0 %v446
    %647 = vmatpush1.bf16.msra.mxu0 %v445
    %648 = vmatprep.subr.bf16.mxu0 %v456
    %649 = vmatpush1.bf16.msra.mxu0 %v455
    %650 = vmatprep.subr.bf16.mxu0 %v466
    %651 = vmatpush1.bf16.msra.mxu0 %v465
    %652 = vmatprep.subr.bf16.mxu0 %v476
    %653 = vmatpush1.bf16.msra.mxu0 %v475
    %654 = vmatprep.subr.bf16.mxu0 %v486
    %655 = vmatpush1.bf16.msra.mxu0 %v485
    %656 = vmatprep.subr.bf16.mxu0 %v496
    %657 = vmatpush1.bf16.msra.mxu0 %v495
    %658 = vmatprep.subr.bf16.mxu0 %v506
    %659 = vmatpush1.bf16.msra.mxu0 %v505
    %660 = vmatprep.subr.bf16.mxu0 %v516
    %661 = vmatpush1.bf16.msra.mxu0 %v515
    %662 = vmatprep.subr.bf16.mxu0 0
    %663 = vmatpush1.bf16.msra.mxu0 0
    %664 = vmatprep.subr.bf16.mxu0 0
    %665 = vmatpush1.bf16.msra.mxu0 0
    %666 = vmatprep.subr.bf16.mxu0 0
    %667 = vmatpush1.bf16.msra.mxu0 0
    %668 = vmatprep.subr.bf16.mxu0 0
    %669 = vmatpush1.bf16.msra.mxu0 0
    %670 = vmatprep.subr.bf16.mxu0 0
    %671 = vmatpush1.bf16.msra.mxu0 0
    %672 = vmatprep.subr.bf16.mxu0 0
    %673 = vmatpush1.bf16.msra.mxu0 0
    %674 = vmatprep.subr.bf16.mxu0 0
    %675 = vmatpush1.bf16.msra.mxu0 0
    %676 = vmatprep.subr.bf16.mxu0 0
    %677 = vmatpush1.bf16.msra.mxu0 0
    %678 = vmatprep.mubr.bf16.mxu0 0
    %679 = vmatmul.mubr.bf16.gmra.mrb[0].mxu0 %v201
    %v680 = vpop.f32.mrb[0].mxu0
    %v681 = vadd.f32 0.0, %v680
    %v682 = vpop.f32.mrb[0].mxu0
    %v683 = vadd.f32 0.0, %v682
    %v684 = vpop.f32.mrb[0].mxu0
    %v685 = vadd.f32 0.0, %v684
    %v686 = vpop.f32.mrb[0].mxu0
    %v687 = vadd.f32 0.0, %v686
    %688 = vdwg.mxu0
    %689 = vmatprep.subr.bf16.mxu0 %v448
    %690 = vmatpush1.bf16.msra.mxu0 %v447
    %691 = vmatprep.subr.bf16.mxu0 %v458
    %692 = vmatpush1.bf16.msra.mxu0 %v457
    %693 = vmatprep.subr.bf16.mxu0 %v468
    %694 = vmatpush1.bf16.msra.mxu0 %v467
    %695 = vmatprep.subr.bf16.mxu0 %v478
    %696 = vmatpush1.bf16.msra.mxu0 %v477
    %697 = vmatprep.subr.bf16.mxu0 %v488
    %698 = vmatpush1.bf16.msra.mxu0 %v487
    %699 = vmatprep.subr.bf16.mxu0 %v498
    %700 = vmatpush1.bf16.msra.mxu0 %v497
    %701 = vmatprep.subr.bf16.mxu0 %v508
    %702 = vmatpush1.bf16.msra.mxu0 %v507
    %703 = vmatprep.subr.bf16.mxu0 %v518
    %704 = vmatpush1.bf16.msra.mxu0 %v517
    %705 = vmatprep.subr.bf16.mxu0 0
    %706 = vmatpush1.bf16.msra.mxu0 0
    %707 = vmatprep.subr.bf16.mxu0 0
    %708 = vmatpush1.bf16.msra.mxu0 0
    %709 = vmatprep.subr.bf16.mxu0 0
    %710 = vmatpush1.bf16.msra.mxu0 0
    %711 = vmatprep.subr.bf16.mxu0 0
    %712 = vmatpush1.bf16.msra.mxu0 0
    %713 = vmatprep.subr.bf16.mxu0 0
    %714 = vmatpush1.bf16.msra.mxu0 0
    %715 = vmatprep.subr.bf16.mxu0 0
    %716 = vmatpush1.bf16.msra.mxu0 0
    %717 = vmatprep.subr.bf16.mxu0 0
    %718 = vmatpush1.bf16.msra.mxu0 0
    %719 = vmatprep.subr.bf16.mxu0 0
    %720 = vmatpush1.bf16.msra.mxu0 0
    %721 = vmatprep.mubr.bf16.mxu0 0
    %722 = vmatmul.mubr.bf16.gmra.mrb[0].mxu0 %v201
    %v723 = vpop.f32.mrb[0].mxu0
    %v724 = vadd.f32 0.0, %v723
    %v725 = vpop.f32.mrb[0].mxu0
    %v726 = vadd.f32 0.0, %v725
    %v727 = vpop.f32.mrb[0].mxu0
    %v728 = vadd.f32 0.0, %v727
    %v729 = vpop.f32.mrb[0].mxu0
    %v730 = vadd.f32 0.0, %v729
    %731 = vdwg.mxu0
    %732 = vmatprep.subr.bf16.mxu0 %v450
    %733 = vmatpush1.bf16.msra.mxu0 %v449
    %734 = vmatprep.subr.bf16.mxu0 %v460
    %735 = vmatpush1.bf16.msra.mxu0 %v459
    %736 = vmatprep.subr.bf16.mxu0 %v470
    %737 = vmatpush1.bf16.msra.mxu0 %v469
    %738 = vmatprep.subr.bf16.mxu0 %v480
    %739 = vmatpush1.bf16.msra.mxu0 %v479
    %740 = vmatprep.subr.bf16.mxu0 %v490
    %741 = vmatpush1.bf16.msra.mxu0 %v489
    %742 = vmatprep.subr.bf16.mxu0 %v500
    %743 = vmatpush1.bf16.msra.mxu0 %v499
    %744 = vmatprep.subr.bf16.mxu0 %v510
    %745 = vmatpush1.bf16.msra.mxu0 %v509
    %746 = vmatprep.subr.bf16.mxu0 %v520
    %747 = vmatpush1.bf16.msra.mxu0 %v519
    %748 = vmatprep.subr.bf16.mxu0 0
    %749 = vmatpush1.bf16.msra.mxu0 0
    %750 = vmatprep.subr.bf16.mxu0 0
    %751 = vmatpush1.bf16.msra.mxu0 0
    %752 = vmatprep.subr.bf16.mxu0 0
    %753 = vmatpush1.bf16.msra.mxu0 0
    %754 = vmatprep.subr.bf16.mxu0 0
    %755 = vmatpush1.bf16.msra.mxu0 0
    %756 = vmatprep.subr.bf16.mxu0 0
    %757 = vmatpush1.bf16.msra.mxu0 0
    %758 = vmatprep.subr.bf16.mxu0 0
    %759 = vmatpush1.bf16.msra.mxu0 0
    %760 = vmatprep.subr.bf16.mxu0 0
    %761 = vmatpush1.bf16.msra.mxu0 0
    %762 = vmatprep.subr.bf16.mxu0 0
    %763 = vmatpush1.bf16.msra.mxu0 0
    %764 = vmatprep.mubr.bf16.mxu0 0
    %765 = vmatmul.mubr.bf16.gmra.mrb[0].mxu0 %v201
    %v766 = vpop.f32.mrb[0].mxu0
    %v767 = vadd.f32 0.0, %v766
    %v768 = vpop.f32.mrb[0].mxu0
    %v769 = vadd.f32 0.0, %v768
    %v770 = vpop.f32.mrb[0].mxu0
    %v771 = vadd.f32 0.0, %v770
    %v772 = vpop.f32.mrb[0].mxu0
    %v773 = vadd.f32 0.0, %v772
    %774 = vdwg.mxu0
    %775 = vmatprep.subr.bf16.mxu0 %v452
    %776 = vmatpush1.bf16.msra.mxu0 %v451
    %777 = vmatprep.subr.bf16.mxu0 %v462
    %778 = vmatpush1.bf16.msra.mxu0 %v461
    %779 = vmatprep.subr.bf16.mxu0 %v472
    %780 = vmatpush1.bf16.msra.mxu0 %v471
    %781 = vmatprep.subr.bf16.mxu0 %v482
    %782 = vmatpush1.bf16.msra.mxu0 %v481
    %783 = vmatprep.subr.bf16.mxu0 %v492
    %784 = vmatpush1.bf16.msra.mxu0 %v491
    %785 = vmatprep.subr.bf16.mxu0 %v502
    %786 = vmatpush1.bf16.msra.mxu0 %v501
    %787 = vmatprep.subr.bf16.mxu0 %v512
    %788 = vmatpush1.bf16.msra.mxu0 %v511
    %789 = vmatprep.subr.bf16.mxu0 %v522
    %790 = vmatpush1.bf16.msra.mxu0 %v521
    %791 = vmatprep.subr.bf16.mxu0 0
    %792 = vmatpush1.bf16.msra.mxu0 0
    %793 = vmatprep.subr.bf16.mxu0 0
    %794 = vmatpush1.bf16.msra.mxu0 0
    %795 = vmatprep.subr.bf16.mxu0 0
    %796 = vmatpush1.bf16.msra.mxu0 0
    %797 = vmatprep.subr.bf16.mxu0 0
    %798 = vmatpush1.bf16.msra.mxu0 0
    %799 = vmatprep.subr.bf16.mxu0 0
    %800 = vmatpush1.bf16.msra.mxu0 0
    %801 = vmatprep.subr.bf16.mxu0 0
    %802 = vmatpush1.bf16.msra.mxu0 0
    %803 = vmatprep.subr.bf16.mxu0 0
    %804 = vmatpush1.bf16.msra.mxu0 0
    %805 = vmatprep.subr.bf16.mxu0 0
    %806 = vmatpush1.bf16.msra.mxu0 0
    %807 = vmatprep.mubr.bf16.mxu0 0
    %808 = vmatmul.mubr.bf16.gmra.mrb[0].mxu0 %v201
    %v809 = vpop.f32.mrb[0].mxu0
    %v810 = vadd.f32 0.0, %v809
    %v811 = vpop.f32.mrb[0].mxu0
    %v812 = vadd.f32 0.0, %v811
    %v813 = vpop.f32.mrb[0].mxu0
    %v814 = vadd.f32 0.0, %v813
    %v815 = vpop.f32.mrb[0].mxu0
    %v816 = vadd.f32 0.0, %v815
    %817 = vdwg.mxu0
    %v818 = vld [vmem:[%s3] sm:$0x3]
    %v819 = vld [vmem:[%s3 + $0x2] sm:$0x3]
    %v820 = vld [vmem:[%s3 + $0x4] sm:$0x3]
    %v821 = vld [vmem:[%s3 + $0x6] sm:$0x3]
    %v822 = vld [vmem:[%s3 + $0x8] sm:$0x3]
    %v823 = vld [vmem:[%s3 + $0xa] sm:$0x3]
    %v824 = vld [vmem:[%s3 + $0xc] sm:$0x3]
    %v825 = vld [vmem:[%s3 + $0xe] sm:$0x3]
    %v826 = vld [vmem:[%s3 + $0x10] sm:$0x3]
    %v827 = vld [vmem:[%s3 + $0x12] sm:$0x3]
    %v828 = vld [vmem:[%s4] sm:$0x1]
    %v829 = vld [vmem:[%s4 + $0x1] sm:$0x1]
    %v830 = vld [vmem:[%s4 + $0x2] sm:$0x1]
    %v831 = vld [vmem:[%s4 + $0x3] sm:$0x1]
    %v832 = vld [vmem:[%s4 + $0x4] sm:$0x1]
    %v833 = vld [vmem:[%s4 + $0x5] sm:$0x1]
    %v834 = vld [vmem:[%s4 + $0x6] sm:$0x1]
    %v835 = vld [vmem:[%s4 + $0x7] sm:$0x1]
    %v836 = vld [vmem:[%s4 + $0x8] sm:$0x1]
    %v837 = vld [vmem:[%s4 + $0x9] sm:$0x1]
    %838 = vmatprep.subr.mxu0 0.0
    %839 = vmatpush1.xpose.msra.mxu0 %v818
    %840 = vmatprep.subr.mxu0 0.0
    %841 = vmatpush1.xpose.msra.mxu0 0.0
    %842 = vmatprep.subr.mxu0 0.0
    %843 = vmatpush1.xpose.msra.mxu0 0.0
    %844 = vmatprep.subr.mxu0 0.0
    %845 = vmatpush1.xpose.msra.mxu0 0.0
    %846 = vmatprep.subr.mxu0 0.0
    %847 = vmatpush1.xpose.msra.mxu0 0.0
    %848 = vmatprep.subr.mxu0 0.0
    %849 = vmatpush1.xpose.msra.mxu0 0.0
    %850 = vmatprep.subr.mxu0 0.0
    %851 = vmatpush1.xpose.msra.mxu0 0.0
    %852 = vmatprep.subr.mxu0 0.0
    %853 = vmatpush1.xpose.msra.mxu0 0.0
    %854 = vmatprep.subr.mxu0 0.0
    %855 = vmatpush1.xpose.msra.mxu0 0.0
    %856 = vmatprep.subr.mxu0 0.0
    %857 = vmatpush1.xpose.msra.mxu0 0.0
    %858 = vmatprep.subr.mxu0 0.0
    %859 = vmatpush1.xpose.msra.mxu0 0.0
    %860 = vmatprep.subr.mxu0 0.0
    %861 = vmatpush1.xpose.msra.mxu0 0.0
    %862 = vmatprep.subr.mxu0 0.0
    %863 = vmatpush1.xpose.msra.mxu0 0.0
    %864 = vmatprep.subr.mxu0 0.0
    %865 = vmatpush1.xpose.msra.mxu0 0.0
    %866 = vmatprep.subr.mxu0 0.0
    %867 = vmatpush1.xpose.msra.mxu0 0.0
    %868 = vmatprep.subr.mxu0 0.0
    %869 = vmatpush1.xpose.msra.mxu0 0.0
    %870 = vmatprep.subr.mxu0 0.0
    %871 = vmatpush1.xpose.msra.mxu0 0.0
    %872 = vmatprep.subr.mxu0 0.0
    %873 = vmatpush1.xpose.msra.mxu0 0.0
    %874 = vmatprep.subr.mxu0 0.0
    %875 = vmatpush1.xpose.msra.mxu0 0.0
    %876 = vmatprep.subr.mxu0 0.0
    %877 = vmatpush1.xpose.msra.mxu0 0.0
    %878 = vmatprep.subr.mxu0 0.0
    %879 = vmatpush1.xpose.msra.mxu0 0.0
    %880 = vmatprep.subr.mxu0 0.0
    %881 = vmatpush1.xpose.msra.mxu0 0.0
    %882 = vmatprep.subr.mxu0 0.0
    %883 = vmatpush1.xpose.msra.mxu0 0.0
    %884 = vmatprep.subr.mxu0 0.0
    %885 = vmatpush1.xpose.msra.mxu0 0.0
    %886 = vmatprep.subr.mxu0 0.0
    %887 = vmatpush1.xpose.msra.mxu0 0.0
    %888 = vmatprep.subr.mxu0 0.0
    %889 = vmatpush1.xpose.msra.mxu0 0.0
    %890 = vmatprep.subr.mxu0 0.0
    %891 = vmatpush1.xpose.msra.mxu0 0.0
    %892 = vmatprep.subr.mxu0 0.0
    %893 = vmatpush1.xpose.msra.mxu0 0.0
    %894 = vmatprep.subr.mxu0 0.0
    %895 = vmatpush1.xpose.msra.mxu0 0.0
    %896 = vmatprep.subr.mxu0 0.0
    %897 = vmatpush1.xpose.msra.mxu0 0.0
    %898 = vmatprep.subr.mxu0 0.0
    %899 = vmatpush1.xpose.msra.mxu0 0.0
    %900 = vmatprep.subr.mxu0 0.0
    %901 = vmatpush1.xpose.msra.mxu0 0.0
    %902 = vmatprep.mubr.f32.mxu0 0.0
    %903 = vmatmul.mubr.f32.gmra.mrb[0].mxu0 %v638
    %v904 = vpop.f32.mrb[0].mxu0
    %v905 = vadd.f32 0.0, %v904
    %v906 = vpop.f32.mrb[0].mxu0
    %907 = vmatprep.mubr.f32.mxu0 0.0
    %908 = vmatmul.mubr.f32.gmra.mrb[0].mxu0 %v642
    %v909 = vpop.f32.mrb[0].mxu0
    %v910 = vadd.f32 0.0, %v909
    %v911 = vpop.f32.mrb[0].mxu0
    %912 = vdwg.mxu0
    %913 = vmatprep.subr.mxu0 0.0
    %914 = vmatpush1.xpose.msra.mxu0 %v819
    %915 = vmatprep.subr.mxu0 0.0
    %916 = vmatpush1.xpose.msra.mxu0 0.0
    %917 = vmatprep.subr.mxu0 0.0
    %918 = vmatpush1.xpose.msra.mxu0 0.0
    %919 = vmatprep.subr.mxu0 0.0
    %920 = vmatpush1.xpose.msra.mxu0 0.0
    %921 = vmatprep.subr.mxu0 0.0
    %922 = vmatpush1.xpose.msra.mxu0 0.0
    %923 = vmatprep.subr.mxu0 0.0
    %924 = vmatpush1.xpose.msra.mxu0 0.0
    %925 = vmatprep.subr.mxu0 0.0
    %926 = vmatpush1.xpose.msra.mxu0 0.0
    %927 = vmatprep.subr.mxu0 0.0
    %928 = vmatpush1.xpose.msra.mxu0 0.0
    %929 = vmatprep.subr.mxu0 0.0
    %930 = vmatpush1.xpose.msra.mxu0 0.0
    %931 = vmatprep.subr.mxu0 0.0
    %932 = vmatpush1.xpose.msra.mxu0 0.0
    %933 = vmatprep.subr.mxu0 0.0
    %934 = vmatpush1.xpose.msra.mxu0 0.0
    %935 = vmatprep.subr.mxu0 0.0
    %936 = vmatpush1.xpose.msra.mxu0 0.0
    %937 = vmatprep.subr.mxu0 0.0
    %938 = vmatpush1.xpose.msra.mxu0 0.0
    %939 = vmatprep.subr.mxu0 0.0
    %940 = vmatpush1.xpose.msra.mxu0 0.0
    %941 = vmatprep.subr.mxu0 0.0
    %942 = vmatpush1.xpose.msra.mxu0 0.0
    %943 = vmatprep.subr.mxu0 0.0
    %944 = vmatpush1.xpose.msra.mxu0 0.0
    %945 = vmatprep.subr.mxu0 0.0
    %946 = vmatpush1.xpose.msra.mxu0 0.0
    %947 = vmatprep.subr.mxu0 0.0
    %948 = vmatpush1.xpose.msra.mxu0 0.0
    %949 = vmatprep.subr.mxu0 0.0
    %950 = vmatpush1.xpose.msra.mxu0 0.0
    %951 = vmatprep.subr.mxu0 0.0
    %952 = vmatpush1.xpose.msra.mxu0 0.0
    %953 = vmatprep.subr.mxu0 0.0
    %954 = vmatpush1.xpose.msra.mxu0 0.0
    %955 = vmatprep.subr.mxu0 0.0
    %956 = vmatpush1.xpose.msra.mxu0 0.0
    %957 = vmatprep.subr.mxu0 0.0
    %958 = vmatpush1.xpose.msra.mxu0 0.0
    %959 = vmatprep.subr.mxu0 0.0
    %960 = vmatpush1.xpose.msra.mxu0 0.0
    %961 = vmatprep.subr.mxu0 0.0
    %962 = vmatpush1.xpose.msra.mxu0 0.0
    %963 = vmatprep.subr.mxu0 0.0
    %964 = vmatpush1.xpose.msra.mxu0 0.0
    %965 = vmatprep.subr.mxu0 0.0
    %966 = vmatpush1.xpose.msra.mxu0 0.0
    %967 = vmatprep.subr.mxu0 0.0
    %968 = vmatpush1.xpose.msra.mxu0 0.0
    %969 = vmatprep.subr.mxu0 0.0
    %970 = vmatpush1.xpose.msra.mxu0 0.0
    %971 = vmatprep.subr.mxu0 0.0
    %972 = vmatpush1.xpose.msra.mxu0 0.0
    %973 = vmatprep.subr.mxu0 0.0
    %974 = vmatpush1.xpose.msra.mxu0 0.0
    %975 = vmatprep.subr.mxu0 0.0
    %976 = vmatpush1.xpose.msra.mxu0 0.0
    %977 = vmatprep.mubr.f32.mxu0 0.0
    %978 = vmatmul.mubr.f32.gmra.mrb[0].mxu0 %v640
    %v979 = vpop.f32.mrb[0].mxu0
    %v980 = vadd.f32 0.0, %v979
    %v981 = vpop.f32.mrb[0].mxu0
    %982 = vmatprep.mubr.f32.mxu0 0.0
    %983 = vmatmul.mubr.f32.gmra.mrb[0].mxu0 %v644
    %v984 = vpop.f32.mrb[0].mxu0
    %v985 = vadd.f32 0.0, %v984
    %v986 = vpop.f32.mrb[0].mxu0
    %987 = vdwg.mxu0
    %988 = vmatprep.subr.mxu0 0.0
    %989 = vmatpush1.xpose.msra.mxu0 %v820
    %990 = vmatprep.subr.mxu0 0.0
    %991 = vmatpush1.xpose.msra.mxu0 0.0
    %992 = vmatprep.subr.mxu0 0.0
    %993 = vmatpush1.xpose.msra.mxu0 0.0
    %994 = vmatprep.subr.mxu0 0.0
    %995 = vmatpush1.xpose.msra.mxu0 0.0
    %996 = vmatprep.subr.mxu0 0.0
    %997 = vmatpush1.xpose.msra.mxu0 0.0
    %998 = vmatprep.subr.mxu0 0.0
    %999 = vmatpush1.xpose.msra.mxu0 0.0
    %1000 = vmatprep.subr.mxu0 0.0
    %1001 = vmatpush1.xpose.msra.mxu0 0.0
    %1002 = vmatprep.subr.mxu0 0.0
    %1003 = vmatpush1.xpose.msra.mxu0 0.0
    %1004 = vmatprep.subr.mxu0 0.0
    %1005 = vmatpush1.xpose.msra.mxu0 0.0
    %1006 = vmatprep.subr.mxu0 0.0
    %1007 = vmatpush1.xpose.msra.mxu0 0.0
    %1008 = vmatprep.subr.mxu0 0.0
    %1009 = vmatpush1.xpose.msra.mxu0 0.0
    %1010 = vmatprep.subr.mxu0 0.0
    %1011 = vmatpush1.xpose.msra.mxu0 0.0
    %1012 = vmatprep.subr.mxu0 0.0
    %1013 = vmatpush1.xpose.msra.mxu0 0.0
    %1014 = vmatprep.subr.mxu0 0.0
    %1015 = vmatpush1.xpose.msra.mxu0 0.0
    %1016 = vmatprep.subr.mxu0 0.0
    %1017 = vmatpush1.xpose.msra.mxu0 0.0
    %1018 = vmatprep.subr.mxu0 0.0
    %1019 = vmatpush1.xpose.msra.mxu0 0.0
    %1020 = vmatprep.subr.mxu0 0.0
    %1021 = vmatpush1.xpose.msra.mxu0 0.0
    %1022 = vmatprep.subr.mxu0 0.0
    %1023 = vmatpush1.xpose.msra.mxu0 0.0
    %1024 = vmatprep.subr.mxu0 0.0
    %1025 = vmatpush1.xpose.msra.mxu0 0.0
    %1026 = vmatprep.subr.mxu0 0.0
    %1027 = vmatpush1.xpose.msra.mxu0 0.0
    %1028 = vmatprep.subr.mxu0 0.0
    %1029 = vmatpush1.xpose.msra.mxu0 0.0
    %1030 = vmatprep.subr.mxu0 0.0
    %1031 = vmatpush1.xpose.msra.mxu0 0.0
    %1032 = vmatprep.subr.mxu0 0.0
    %1033 = vmatpush1.xpose.msra.mxu0 0.0
    %1034 = vmatprep.subr.mxu0 0.0
    %1035 = vmatpush1.xpose.msra.mxu0 0.0
    %1036 = vmatprep.subr.mxu0 0.0
    %1037 = vmatpush1.xpose.msra.mxu0 0.0
    %1038 = vmatprep.subr.mxu0 0.0
    %1039 = vmatpush1.xpose.msra.mxu0 0.0
    %1040 = vmatprep.subr.mxu0 0.0
    %1041 = vmatpush1.xpose.msra.mxu0 0.0
    %1042 = vmatprep.subr.mxu0 0.0
    %1043 = vmatpush1.xpose.msra.mxu0 0.0
    %1044 = vmatprep.subr.mxu0 0.0
    %1045 = vmatpush1.xpose.msra.mxu0 0.0
    %1046 = vmatprep.subr.mxu0 0.0
    %1047 = vmatpush1.xpose.msra.mxu0 0.0
    %1048 = vmatprep.subr.mxu0 0.0
    %1049 = vmatpush1.xpose.msra.mxu0 0.0
    %1050 = vmatprep.subr.mxu0 0.0
    %1051 = vmatpush1.xpose.msra.mxu0 0.0
    %1052 = vmatprep.mubr.f32.mxu0 0.0
    %1053 = vmatmul.mubr.f32.gmra.mrb[0].mxu0 %v681
    %v1054 = vpop.f32.mrb[0].mxu0
    %v1055 = vadd.f32 0.0, %v1054
    %v1056 = vpop.f32.mrb[0].mxu0
    %1057 = vmatprep.mubr.f32.mxu0 0.0
    %1058 = vmatmul.mubr.f32.gmra.mrb[0].mxu0 %v685
    %v1059 = vpop.f32.mrb[0].mxu0
    %v1060 = vadd.f32 0.0, %v1059
    %v1061 = vpop.f32.mrb[0].mxu0
    %1062 = vdwg.mxu0
    %1063 = vmatprep.subr.mxu0 0.0
    %1064 = vmatpush1.xpose.msra.mxu0 %v821
    %1065 = vmatprep.subr.mxu0 0.0
    %1066 = vmatpush1.xpose.msra.mxu0 0.0
    %1067 = vmatprep.subr.mxu0 0.0
    %1068 = vmatpush1.xpose.msra.mxu0 0.0
    %1069 = vmatprep.subr.mxu0 0.0
    %1070 = vmatpush1.xpose.msra.mxu0 0.0
    %1071 = vmatprep.subr.mxu0 0.0
    %1072 = vmatpush1.xpose.msra.mxu0 0.0
    %1073 = vmatprep.subr.mxu0 0.0
    %1074 = vmatpush1.xpose.msra.mxu0 0.0
    %1075 = vmatprep.subr.mxu0 0.0
    %1076 = vmatpush1.xpose.msra.mxu0 0.0
    %1077 = vmatprep.subr.mxu0 0.0
    %1078 = vmatpush1.xpose.msra.mxu0 0.0
    %1079 = vmatprep.subr.mxu0 0.0
    %1080 = vmatpush1.xpose.msra.mxu0 0.0
    %1081 = vmatprep.subr.mxu0 0.0
    %1082 = vmatpush1.xpose.msra.mxu0 0.0
    %1083 = vmatprep.subr.mxu0 0.0
    %1084 = vmatpush1.xpose.msra.mxu0 0.0
    %1085 = vmatprep.subr.mxu0 0.0
    %1086 = vmatpush1.xpose.msra.mxu0 0.0
    %1087 = vmatprep.subr.mxu0 0.0
    %1088 = vmatpush1.xpose.msra.mxu0 0.0
    %1089 = vmatprep.subr.mxu0 0.0
    %1090 = vmatpush1.xpose.msra.mxu0 0.0
    %1091 = vmatprep.subr.mxu0 0.0
    %1092 = vmatpush1.xpose.msra.mxu0 0.0
    %1093 = vmatprep.subr.mxu0 0.0
    %1094 = vmatpush1.xpose.msra.mxu0 0.0
    %1095 = vmatprep.subr.mxu0 0.0
    %1096 = vmatpush1.xpose.msra.mxu0 0.0
    %1097 = vmatprep.subr.mxu0 0.0
    %1098 = vmatpush1.xpose.msra.mxu0 0.0
    %1099 = vmatprep.subr.mxu0 0.0
    %1100 = vmatpush1.xpose.msra.mxu0 0.0
    %1101 = vmatprep.subr.mxu0 0.0
    %1102 = vmatpush1.xpose.msra.mxu0 0.0
    %1103 = vmatprep.subr.mxu0 0.0
    %1104 = vmatpush1.xpose.msra.mxu0 0.0
    %1105 = vmatprep.subr.mxu0 0.0
    %1106 = vmatpush1.xpose.msra.mxu0 0.0
    %1107 = vmatprep.subr.mxu0 0.0
    %1108 = vmatpush1.xpose.msra.mxu0 0.0
    %1109 = vmatprep.subr.mxu0 0.0
    %1110 = vmatpush1.xpose.msra.mxu0 0.0
    %1111 = vmatprep.subr.mxu0 0.0
    %1112 = vmatpush1.xpose.msra.mxu0 0.0
    %1113 = vmatprep.subr.mxu0 0.0
    %1114 = vmatpush1.xpose.msra.mxu0 0.0
    %1115 = vmatprep.subr.mxu0 0.0
    %1116 = vmatpush1.xpose.msra.mxu0 0.0
    %1117 = vmatprep.subr.mxu0 0.0
    %1118 = vmatpush1.xpose.msra.mxu0 0.0
    %1119 = vmatprep.subr.mxu0 0.0
    %1120 = vmatpush1.xpose.msra.mxu0 0.0
    %1121 = vmatprep.subr.mxu0 0.0
    %1122 = vmatpush1.xpose.msra.mxu0 0.0
    %1123 = vmatprep.subr.mxu0 0.0
    %1124 = vmatpush1.xpose.msra.mxu0 0.0
    %1125 = vmatprep.subr.mxu0 0.0
    %1126 = vmatpush1.xpose.msra.mxu0 0.0
    %1127 = vmatprep.mubr.f32.mxu0 0.0
    %1128 = vmatmul.mubr.f32.gmra.mrb[0].mxu0 %v683
    %v1129 = vpop.f32.mrb[0].mxu0
    %v1130 = vadd.f32 0.0, %v1129
    %v1131 = vpop.f32.mrb[0].mxu0
    %1132 = vmatprep.mubr.f32.mxu0 0.0
    %1133 = vmatmul.mubr.f32.gmra.mrb[0].mxu0 %v687
    %v1134 = vpop.f32.mrb[0].mxu0
    %v1135 = vadd.f32 0.0, %v1134
    %v1136 = vpop.f32.mrb[0].mxu0
    %1137 = vdwg.mxu0
    %1138 = vmatprep.subr.mxu0 0.0
    %1139 = vmatpush1.xpose.msra.mxu0 %v822
    %1140 = vmatprep.subr.mxu0 0.0
    %1141 = vmatpush1.xpose.msra.mxu0 0.0
    %1142 = vmatprep.subr.mxu0 0.0
    %1143 = vmatpush1.xpose.msra.mxu0 0.0
    %1144 = vmatprep.subr.mxu0 0.0
    %1145 = vmatpush1.xpose.msra.mxu0 0.0
    %1146 = vmatprep.subr.mxu0 0.0
    %1147 = vmatpush1.xpose.msra.mxu0 0.0
    %1148 = vmatprep.subr.mxu0 0.0
    %1149 = vmatpush1.xpose.msra.mxu0 0.0
    %1150 = vmatprep.subr.mxu0 0.0
    %1151 = vmatpush1.xpose.msra.mxu0 0.0
    %1152 = vmatprep.subr.mxu0 0.0
    %1153 = vmatpush1.xpose.msra.mxu0 0.0
    %1154 = vmatprep.subr.mxu0 0.0
    %1155 = vmatpush1.xpose.msra.mxu0 0.0
    %1156 = vmatprep.subr.mxu0 0.0
    %1157 = vmatpush1.xpose.msra.mxu0 0.0
    %1158 = vmatprep.subr.mxu0 0.0
    %1159 = vmatpush1.xpose.msra.mxu0 0.0
    %1160 = vmatprep.subr.mxu0 0.0
    %1161 = vmatpush1.xpose.msra.mxu0 0.0
    %1162 = vmatprep.subr.mxu0 0.0
    %1163 = vmatpush1.xpose.msra.mxu0 0.0
    %1164 = vmatprep.subr.mxu0 0.0
    %1165 = vmatpush1.xpose.msra.mxu0 0.0
    %1166 = vmatprep.subr.mxu0 0.0
    %1167 = vmatpush1.xpose.msra.mxu0 0.0
    %1168 = vmatprep.subr.mxu0 0.0
    %1169 = vmatpush1.xpose.msra.mxu0 0.0
    %1170 = vmatprep.subr.mxu0 0.0
    %1171 = vmatpush1.xpose.msra.mxu0 0.0
    %1172 = vmatprep.subr.mxu0 0.0
    %1173 = vmatpush1.xpose.msra.mxu0 0.0
    %1174 = vmatprep.subr.mxu0 0.0
    %1175 = vmatpush1.xpose.msra.mxu0 0.0
    %1176 = vmatprep.subr.mxu0 0.0
    %1177 = vmatpush1.xpose.msra.mxu0 0.0
    %1178 = vmatprep.subr.mxu0 0.0
    %1179 = vmatpush1.xpose.msra.mxu0 0.0
    %1180 = vmatprep.subr.mxu0 0.0
    %1181 = vmatpush1.xpose.msra.mxu0 0.0
    %1182 = vmatprep.subr.mxu0 0.0
    %1183 = vmatpush1.xpose.msra.mxu0 0.0
    %1184 = vmatprep.subr.mxu0 0.0
    %1185 = vmatpush1.xpose.msra.mxu0 0.0
    %1186 = vmatprep.subr.mxu0 0.0
    %1187 = vmatpush1.xpose.msra.mxu0 0.0
    %1188 = vmatprep.subr.mxu0 0.0
    %1189 = vmatpush1.xpose.msra.mxu0 0.0
    %1190 = vmatprep.subr.mxu0 0.0
    %1191 = vmatpush1.xpose.msra.mxu0 0.0
    %1192 = vmatprep.subr.mxu0 0.0
    %1193 = vmatpush1.xpose.msra.mxu0 0.0
    %1194 = vmatprep.subr.mxu0 0.0
    %1195 = vmatpush1.xpose.msra.mxu0 0.0
    %1196 = vmatprep.subr.mxu0 0.0
    %1197 = vmatpush1.xpose.msra.mxu0 0.0
    %1198 = vmatprep.subr.mxu0 0.0
    %1199 = vmatpush1.xpose.msra.mxu0 0.0
    %1200 = vmatprep.subr.mxu0 0.0
    %1201 = vmatpush1.xpose.msra.mxu0 0.0
    %1202 = vmatprep.mubr.f32.mxu0 0.0
    %1203 = vmatmul.mubr.f32.gmra.mrb[0].mxu0 %v724
    %v1204 = vpop.f32.mrb[0].mxu0
    %v1205 = vadd.f32 0.0, %v1204
    %v1206 = vpop.f32.mrb[0].mxu0
    %1207 = vmatprep.mubr.f32.mxu0 0.0
    %1208 = vmatmul.mubr.f32.gmra.mrb[0].mxu0 %v728
    %v1209 = vpop.f32.mrb[0].mxu0
    %v1210 = vadd.f32 0.0, %v1209
    %v1211 = vpop.f32.mrb[0].mxu0
    %1212 = vdwg.mxu0
    %1213 = vmatprep.subr.mxu0 0.0
    %1214 = vmatpush1.xpose.msra.mxu0 %v823
    %1215 = vmatprep.subr.mxu0 0.0
    %1216 = vmatpush1.xpose.msra.mxu0 0.0
    %1217 = vmatprep.subr.mxu0 0.0
    %1218 = vmatpush1.xpose.msra.mxu0 0.0
    %1219 = vmatprep.subr.mxu0 0.0
    %1220 = vmatpush1.xpose.msra.mxu0 0.0
    %1221 = vmatprep.subr.mxu0 0.0
    %1222 = vmatpush1.xpose.msra.mxu0 0.0
    %1223 = vmatprep.subr.mxu0 0.0
    %1224 = vmatpush1.xpose.msra.mxu0 0.0
    %1225 = vmatprep.subr.mxu0 0.0
    %1226 = vmatpush1.xpose.msra.mxu0 0.0
    %1227 = vmatprep.subr.mxu0 0.0
    %1228 = vmatpush1.xpose.msra.mxu0 0.0
    %1229 = vmatprep.subr.mxu0 0.0
    %1230 = vmatpush1.xpose.msra.mxu0 0.0
    %1231 = vmatprep.subr.mxu0 0.0
    %1232 = vmatpush1.xpose.msra.mxu0 0.0
    %1233 = vmatprep.subr.mxu0 0.0
    %1234 = vmatpush1.xpose.msra.mxu0 0.0
    %1235 = vmatprep.subr.mxu0 0.0
    %1236 = vmatpush1.xpose.msra.mxu0 0.0
    %1237 = vmatprep.subr.mxu0 0.0
    %1238 = vmatpush1.xpose.msra.mxu0 0.0
    %1239 = vmatprep.subr.mxu0 0.0
    %1240 = vmatpush1.xpose.msra.mxu0 0.0
    %1241 = vmatprep.subr.mxu0 0.0
    %1242 = vmatpush1.xpose.msra.mxu0 0.0
    %1243 = vmatprep.subr.mxu0 0.0
    %1244 = vmatpush1.xpose.msra.mxu0 0.0
    %1245 = vmatprep.subr.mxu0 0.0
    %1246 = vmatpush1.xpose.msra.mxu0 0.0
    %1247 = vmatprep.subr.mxu0 0.0
    %1248 = vmatpush1.xpose.msra.mxu0 0.0
    %1249 = vmatprep.subr.mxu0 0.0
    %1250 = vmatpush1.xpose.msra.mxu0 0.0
    %1251 = vmatprep.subr.mxu0 0.0
    %1252 = vmatpush1.xpose.msra.mxu0 0.0
    %1253 = vmatprep.subr.mxu0 0.0
    %1254 = vmatpush1.xpose.msra.mxu0 0.0
    %1255 = vmatprep.subr.mxu0 0.0
    %1256 = vmatpush1.xpose.msra.mxu0 0.0
    %1257 = vmatprep.subr.mxu0 0.0
    %1258 = vmatpush1.xpose.msra.mxu0 0.0
    %1259 = vmatprep.subr.mxu0 0.0
    %1260 = vmatpush1.xpose.msra.mxu0 0.0
    %1261 = vmatprep.subr.mxu0 0.0
    %1262 = vmatpush1.xpose.msra.mxu0 0.0
    %1263 = vmatprep.subr.mxu0 0.0
    %1264 = vmatpush1.xpose.msra.mxu0 0.0
    %1265 = vmatprep.subr.mxu0 0.0
    %1266 = vmatpush1.xpose.msra.mxu0 0.0
    %1267 = vmatprep.subr.mxu0 0.0
    %1268 = vmatpush1.xpose.msra.mxu0 0.0
    %1269 = vmatprep.subr.mxu0 0.0
    %1270 = vmatpush1.xpose.msra.mxu0 0.0
    %1271 = vmatprep.subr.mxu0 0.0
    %1272 = vmatpush1.xpose.msra.mxu0 0.0
    %1273 = vmatprep.subr.mxu0 0.0
    %1274 = vmatpush1.xpose.msra.mxu0 0.0
    %1275 = vmatprep.subr.mxu0 0.0
    %1276 = vmatpush1.xpose.msra.mxu0 0.0
    %1277 = vmatprep.mubr.f32.mxu0 0.0
    %1278 = vmatmul.mubr.f32.gmra.mrb[0].mxu0 %v726
    %v1279 = vpop.f32.mrb[0].mxu0
    %v1280 = vadd.f32 0.0, %v1279
    %v1281 = vpop.f32.mrb[0].mxu0
    %1282 = vmatprep.mubr.f32.mxu0 0.0
    %1283 = vmatmul.mubr.f32.gmra.mrb[0].mxu0 %v730
    %v1284 = vpop.f32.mrb[0].mxu0
    %v1285 = vadd.f32 0.0, %v1284
    %v1286 = vpop.f32.mrb[0].mxu0
    %1287 = vdwg.mxu0
    %1288 = vmatprep.subr.mxu0 0.0
    %1289 = vmatpush1.xpose.msra.mxu0 %v824
    %1290 = vmatprep.subr.mxu0 0.0
    %1291 = vmatpush1.xpose.msra.mxu0 0.0
    %1292 = vmatprep.subr.mxu0 0.0
    %1293 = vmatpush1.xpose.msra.mxu0 0.0
    %1294 = vmatprep.subr.mxu0 0.0
    %1295 = vmatpush1.xpose.msra.mxu0 0.0
    %1296 = vmatprep.subr.mxu0 0.0
    %1297 = vmatpush1.xpose.msra.mxu0 0.0
    %1298 = vmatprep.subr.mxu0 0.0
    %1299 = vmatpush1.xpose.msra.mxu0 0.0
    %1300 = vmatprep.subr.mxu0 0.0
    %1301 = vmatpush1.xpose.msra.mxu0 0.0
    %1302 = vmatprep.subr.mxu0 0.0
    %1303 = vmatpush1.xpose.msra.mxu0 0.0
    %1304 = vmatprep.subr.mxu0 0.0
    %1305 = vmatpush1.xpose.msra.mxu0 0.0
    %1306 = vmatprep.subr.mxu0 0.0
    %1307 = vmatpush1.xpose.msra.mxu0 0.0
    %1308 = vmatprep.subr.mxu0 0.0
    %1309 = vmatpush1.xpose.msra.mxu0 0.0
    %1310 = vmatprep.subr.mxu0 0.0
    %1311 = vmatpush1.xpose.msra.mxu0 0.0
    %1312 = vmatprep.subr.mxu0 0.0
    %1313 = vmatpush1.xpose.msra.mxu0 0.0
    %1314 = vmatprep.subr.mxu0 0.0
    %1315 = vmatpush1.xpose.msra.mxu0 0.0
    %1316 = vmatprep.subr.mxu0 0.0
    %1317 = vmatpush1.xpose.msra.mxu0 0.0
    %1318 = vmatprep.subr.mxu0 0.0
    %1319 = vmatpush1.xpose.msra.mxu0 0.0
    %1320 = vmatprep.subr.mxu0 0.0
    %1321 = vmatpush1.xpose.msra.mxu0 0.0
    %1322 = vmatprep.subr.mxu0 0.0
    %1323 = vmatpush1.xpose.msra.mxu0 0.0
    %1324 = vmatprep.subr.mxu0 0.0
    %1325 = vmatpush1.xpose.msra.mxu0 0.0
    %1326 = vmatprep.subr.mxu0 0.0
    %1327 = vmatpush1.xpose.msra.mxu0 0.0
    %1328 = vmatprep.subr.mxu0 0.0
    %1329 = vmatpush1.xpose.msra.mxu0 0.0
    %1330 = vmatprep.subr.mxu0 0.0
    %1331 = vmatpush1.xpose.msra.mxu0 0.0
    %1332 = vmatprep.subr.mxu0 0.0
    %1333 = vmatpush1.xpose.msra.mxu0 0.0
    %1334 = vmatprep.subr.mxu0 0.0
    %1335 = vmatpush1.xpose.msra.mxu0 0.0
    %1336 = vmatprep.subr.mxu0 0.0
    %1337 = vmatpush1.xpose.msra.mxu0 0.0
    %1338 = vmatprep.subr.mxu0 0.0
    %1339 = vmatpush1.xpose.msra.mxu0 0.0
    %1340 = vmatprep.subr.mxu0 0.0
    %1341 = vmatpush1.xpose.msra.mxu0 0.0
    %1342 = vmatprep.subr.mxu0 0.0
    %1343 = vmatpush1.xpose.msra.mxu0 0.0
    %1344 = vmatprep.subr.mxu0 0.0
    %1345 = vmatpush1.xpose.msra.mxu0 0.0
    %1346 = vmatprep.subr.mxu0 0.0
    %1347 = vmatpush1.xpose.msra.mxu0 0.0
    %1348 = vmatprep.subr.mxu0 0.0
    %1349 = vmatpush1.xpose.msra.mxu0 0.0
    %1350 = vmatprep.subr.mxu0 0.0
    %1351 = vmatpush1.xpose.msra.mxu0 0.0
    %1352 = vmatprep.mubr.f32.mxu0 0.0
    %1353 = vmatmul.mubr.f32.gmra.mrb[0].mxu0 %v767
    %v1354 = vpop.f32.mrb[0].mxu0
    %v1355 = vadd.f32 0.0, %v1354
    %v1356 = vpop.f32.mrb[0].mxu0
    %1357 = vmatprep.mubr.f32.mxu0 0.0
    %1358 = vmatmul.mubr.f32.gmra.mrb[0].mxu0 %v771
    %v1359 = vpop.f32.mrb[0].mxu0
    %v1360 = vadd.f32 0.0, %v1359
    %v1361 = vpop.f32.mrb[0].mxu0
    %1362 = vdwg.mxu0
    %1363 = vmatprep.subr.mxu0 0.0
    %1364 = vmatpush1.xpose.msra.mxu0 %v825
    %1365 = vmatprep.subr.mxu0 0.0
    %1366 = vmatpush1.xpose.msra.mxu0 0.0
    %1367 = vmatprep.subr.mxu0 0.0
    %1368 = vmatpush1.xpose.msra.mxu0 0.0
    %1369 = vmatprep.subr.mxu0 0.0
    %1370 = vmatpush1.xpose.msra.mxu0 0.0
    %1371 = vmatprep.subr.mxu0 0.0
    %1372 = vmatpush1.xpose.msra.mxu0 0.0
    %1373 = vmatprep.subr.mxu0 0.0
    %1374 = vmatpush1.xpose.msra.mxu0 0.0
    %1375 = vmatprep.subr.mxu0 0.0
    %1376 = vmatpush1.xpose.msra.mxu0 0.0
    %1377 = vmatprep.subr.mxu0 0.0
    %1378 = vmatpush1.xpose.msra.mxu0 0.0
    %1379 = vmatprep.subr.mxu0 0.0
    %1380 = vmatpush1.xpose.msra.mxu0 0.0
    %1381 = vmatprep.subr.mxu0 0.0
    %1382 = vmatpush1.xpose.msra.mxu0 0.0
    %1383 = vmatprep.subr.mxu0 0.0
    %1384 = vmatpush1.xpose.msra.mxu0 0.0
    %1385 = vmatprep.subr.mxu0 0.0
    %1386 = vmatpush1.xpose.msra.mxu0 0.0
    %1387 = vmatprep.subr.mxu0 0.0
    %1388 = vmatpush1.xpose.msra.mxu0 0.0
    %1389 = vmatprep.subr.mxu0 0.0
    %1390 = vmatpush1.xpose.msra.mxu0 0.0
    %1391 = vmatprep.subr.mxu0 0.0
    %1392 = vmatpush1.xpose.msra.mxu0 0.0
    %1393 = vmatprep.subr.mxu0 0.0
    %1394 = vmatpush1.xpose.msra.mxu0 0.0
    %1395 = vmatprep.subr.mxu0 0.0
    %1396 = vmatpush1.xpose.msra.mxu0 0.0
    %1397 = vmatprep.subr.mxu0 0.0
    %1398 = vmatpush1.xpose.msra.mxu0 0.0
    %1399 = vmatprep.subr.mxu0 0.0
    %1400 = vmatpush1.xpose.msra.mxu0 0.0
    %1401 = vmatprep.subr.mxu0 0.0
    %1402 = vmatpush1.xpose.msra.mxu0 0.0
    %1403 = vmatprep.subr.mxu0 0.0
    %1404 = vmatpush1.xpose.msra.mxu0 0.0
    %1405 = vmatprep.subr.mxu0 0.0
    %1406 = vmatpush1.xpose.msra.mxu0 0.0
    %1407 = vmatprep.subr.mxu0 0.0
    %1408 = vmatpush1.xpose.msra.mxu0 0.0
    %1409 = vmatprep.subr.mxu0 0.0
    %1410 = vmatpush1.xpose.msra.mxu0 0.0
    %1411 = vmatprep.subr.mxu0 0.0
    %1412 = vmatpush1.xpose.msra.mxu0 0.0
    %1413 = vmatprep.subr.mxu0 0.0
    %1414 = vmatpush1.xpose.msra.mxu0 0.0
    %1415 = vmatprep.subr.mxu0 0.0
    %1416 = vmatpush1.xpose.msra.mxu0 0.0
    %1417 = vmatprep.subr.mxu0 0.0
    %1418 = vmatpush1.xpose.msra.mxu0 0.0
    %1419 = vmatprep.subr.mxu0 0.0
    %1420 = vmatpush1.xpose.msra.mxu0 0.0
    %1421 = vmatprep.subr.mxu0 0.0
    %1422 = vmatpush1.xpose.msra.mxu0 0.0
    %1423 = vmatprep.subr.mxu0 0.0
    %1424 = vmatpush1.xpose.msra.mxu0 0.0
    %1425 = vmatprep.subr.mxu0 0.0
    %1426 = vmatpush1.xpose.msra.mxu0 0.0
    %1427 = vmatprep.mubr.f32.mxu0 0.0
    %1428 = vmatmul.mubr.f32.gmra.mrb[0].mxu0 %v769
    %v1429 = vpop.f32.mrb[0].mxu0
    %v1430 = vadd.f32 0.0, %v1429
    %v1431 = vpop.f32.mrb[0].mxu0
    %1432 = vmatprep.mubr.f32.mxu0 0.0
    %1433 = vmatmul.mubr.f32.gmra.mrb[0].mxu0 %v773
    %v1434 = vpop.f32.mrb[0].mxu0
    %v1435 = vadd.f32 0.0, %v1434
    %v1436 = vpop.f32.mrb[0].mxu0
    %1437 = vdwg.mxu0
    %1438 = vmatprep.subr.mxu0 0.0
    %1439 = vmatpush1.xpose.msra.mxu0 %v826
    %1440 = vmatprep.subr.mxu0 0.0
    %1441 = vmatpush1.xpose.msra.mxu0 0.0
    %1442 = vmatprep.subr.mxu0 0.0
    %1443 = vmatpush1.xpose.msra.mxu0 0.0
    %1444 = vmatprep.subr.mxu0 0.0
    %1445 = vmatpush1.xpose.msra.mxu0 0.0
    %1446 = vmatprep.subr.mxu0 0.0
    %1447 = vmatpush1.xpose.msra.mxu0 0.0
    %1448 = vmatprep.subr.mxu0 0.0
    %1449 = vmatpush1.xpose.msra.mxu0 0.0
    %1450 = vmatprep.subr.mxu0 0.0
    %1451 = vmatpush1.xpose.msra.mxu0 0.0
    %1452 = vmatprep.subr.mxu0 0.0
    %1453 = vmatpush1.xpose.msra.mxu0 0.0
    %1454 = vmatprep.subr.mxu0 0.0
    %1455 = vmatpush1.xpose.msra.mxu0 0.0
    %1456 = vmatprep.subr.mxu0 0.0
    %1457 = vmatpush1.xpose.msra.mxu0 0.0
    %1458 = vmatprep.subr.mxu0 0.0
    %1459 = vmatpush1.xpose.msra.mxu0 0.0
    %1460 = vmatprep.subr.mxu0 0.0
    %1461 = vmatpush1.xpose.msra.mxu0 0.0
    %1462 = vmatprep.subr.mxu0 0.0
    %1463 = vmatpush1.xpose.msra.mxu0 0.0
    %1464 = vmatprep.subr.mxu0 0.0
    %1465 = vmatpush1.xpose.msra.mxu0 0.0
    %1466 = vmatprep.subr.mxu0 0.0
    %1467 = vmatpush1.xpose.msra.mxu0 0.0
    %1468 = vmatprep.subr.mxu0 0.0
    %1469 = vmatpush1.xpose.msra.mxu0 0.0
    %1470 = vmatprep.subr.mxu0 0.0
    %1471 = vmatpush1.xpose.msra.mxu0 0.0
    %1472 = vmatprep.subr.mxu0 0.0
    %1473 = vmatpush1.xpose.msra.mxu0 0.0
    %1474 = vmatprep.subr.mxu0 0.0
    %1475 = vmatpush1.xpose.msra.mxu0 0.0
    %1476 = vmatprep.subr.mxu0 0.0
    %1477 = vmatpush1.xpose.msra.mxu0 0.0
    %1478 = vmatprep.subr.mxu0 0.0
    %1479 = vmatpush1.xpose.msra.mxu0 0.0
    %1480 = vmatprep.subr.mxu0 0.0
    %1481 = vmatpush1.xpose.msra.mxu0 0.0
    %1482 = vmatprep.subr.mxu0 0.0
    %1483 = vmatpush1.xpose.msra.mxu0 0.0
    %1484 = vmatprep.subr.mxu0 0.0
    %1485 = vmatpush1.xpose.msra.mxu0 0.0
    %1486 = vmatprep.subr.mxu0 0.0
    %1487 = vmatpush1.xpose.msra.mxu0 0.0
    %1488 = vmatprep.subr.mxu0 0.0
    %1489 = vmatpush1.xpose.msra.mxu0 0.0
    %1490 = vmatprep.subr.mxu0 0.0
    %1491 = vmatpush1.xpose.msra.mxu0 0.0
    %1492 = vmatprep.subr.mxu0 0.0
    %1493 = vmatpush1.xpose.msra.mxu0 0.0
    %1494 = vmatprep.subr.mxu0 0.0
    %1495 = vmatpush1.xpose.msra.mxu0 0.0
    %1496 = vmatprep.subr.mxu0 0.0
    %1497 = vmatpush1.xpose.msra.mxu0 0.0
    %1498 = vmatprep.subr.mxu0 0.0
    %1499 = vmatpush1.xpose.msra.mxu0 0.0
    %1500 = vmatprep.subr.mxu0 0.0
    %1501 = vmatpush1.xpose.msra.mxu0 0.0
    %1502 = vmatprep.mubr.f32.mxu0 0.0
    %1503 = vmatmul.mubr.f32.gmra.mrb[0].mxu0 %v810
    %v1504 = vpop.f32.mrb[0].mxu0
    %v1505 = vadd.f32 0.0, %v1504
    %v1506 = vpop.f32.mrb[0].mxu0
    %1507 = vmatprep.mubr.f32.mxu0 0.0
    %1508 = vmatmul.mubr.f32.gmra.mrb[0].mxu0 %v814
    %v1509 = vpop.f32.mrb[0].mxu0
    %v1510 = vadd.f32 0.0, %v1509
    %v1511 = vpop.f32.mrb[0].mxu0
    %1512 = vdwg.mxu0
    %1513 = vmatprep.subr.mxu0 0.0
    %1514 = vmatpush1.xpose.msra.mxu0 %v827
    %1515 = vmatprep.subr.mxu0 0.0
    %1516 = vmatpush1.xpose.msra.mxu0 0.0
    %1517 = vmatprep.subr.mxu0 0.0
    %1518 = vmatpush1.xpose.msra.mxu0 0.0
    %1519 = vmatprep.subr.mxu0 0.0
    %1520 = vmatpush1.xpose.msra.mxu0 0.0
    %1521 = vmatprep.subr.mxu0 0.0
    %1522 = vmatpush1.xpose.msra.mxu0 0.0
    %1523 = vmatprep.subr.mxu0 0.0
    %1524 = vmatpush1.xpose.msra.mxu0 0.0
    %1525 = vmatprep.subr.mxu0 0.0
    %1526 = vmatpush1.xpose.msra.mxu0 0.0
    %1527 = vmatprep.subr.mxu0 0.0
    %1528 = vmatpush1.xpose.msra.mxu0 0.0
    %1529 = vmatprep.subr.mxu0 0.0
    %1530 = vmatpush1.xpose.msra.mxu0 0.0
    %1531 = vmatprep.subr.mxu0 0.0
    %1532 = vmatpush1.xpose.msra.mxu0 0.0
    %1533 = vmatprep.subr.mxu0 0.0
    %1534 = vmatpush1.xpose.msra.mxu0 0.0
    %1535 = vmatprep.subr.mxu0 0.0
    %1536 = vmatpush1.xpose.msra.mxu0 0.0
    %1537 = vmatprep.subr.mxu0 0.0
    %1538 = vmatpush1.xpose.msra.mxu0 0.0
    %1539 = vmatprep.subr.mxu0 0.0
    %1540 = vmatpush1.xpose.msra.mxu0 0.0
    %1541 = vmatprep.subr.mxu0 0.0
    %1542 = vmatpush1.xpose.msra.mxu0 0.0
    %1543 = vmatprep.subr.mxu0 0.0
    %1544 = vmatpush1.xpose.msra.mxu0 0.0
    %1545 = vmatprep.subr.mxu0 0.0
    %1546 = vmatpush1.xpose.msra.mxu0 0.0
    %1547 = vmatprep.subr.mxu0 0.0
    %1548 = vmatpush1.xpose.msra.mxu0 0.0
    %1549 = vmatprep.subr.mxu0 0.0
    %1550 = vmatpush1.xpose.msra.mxu0 0.0
    %1551 = vmatprep.subr.mxu0 0.0
    %1552 = vmatpush1.xpose.msra.mxu0 0.0
    %1553 = vmatprep.subr.mxu0 0.0
    %1554 = vmatpush1.xpose.msra.mxu0 0.0
    %1555 = vmatprep.subr.mxu0 0.0
    %1556 = vmatpush1.xpose.msra.mxu0 0.0
    %1557 = vmatprep.subr.mxu0 0.0
    %1558 = vmatpush1.xpose.msra.mxu0 0.0
    %1559 = vmatprep.subr.mxu0 0.0
    %1560 = vmatpush1.xpose.msra.mxu0 0.0
    %1561 = vmatprep.subr.mxu0 0.0
    %1562 = vmatpush1.xpose.msra.mxu0 0.0
    %1563 = vmatprep.subr.mxu0 0.0
    %1564 = vmatpush1.xpose.msra.mxu0 0.0
    %1565 = vmatprep.subr.mxu0 0.0
    %1566 = vmatpush1.xpose.msra.mxu0 0.0
    %1567 = vmatprep.subr.mxu0 0.0
    %1568 = vmatpush1.xpose.msra.mxu0 0.0
    %1569 = vmatprep.subr.mxu0 0.0
    %1570 = vmatpush1.xpose.msra.mxu0 0.0
    %1571 = vmatprep.subr.mxu0 0.0
    %1572 = vmatpush1.xpose.msra.mxu0 0.0
    %1573 = vmatprep.subr.mxu0 0.0
    %1574 = vmatpush1.xpose.msra.mxu0 0.0
    %1575 = vmatprep.subr.mxu0 0.0
    %1576 = vmatpush1.xpose.msra.mxu0 0.0
    %1577 = vmatprep.mubr.f32.mxu0 0.0
    %1578 = vmatmul.mubr.f32.gmra.mrb[0].mxu0 %v812
    %v1579 = vpop.f32.mrb[0].mxu0
    %v1580 = vadd.f32 0.0, %v1579
    %v1581 = vpop.f32.mrb[0].mxu0
    %1582 = vmatprep.mubr.f32.mxu0 0.0
    %1583 = vmatmul.mubr.f32.gmra.mrb[0].mxu0 %v816
    %v1584 = vpop.f32.mrb[0].mxu0
    %v1585 = vadd.f32 0.0, %v1584
    %v1586 = vpop.f32.mrb[0].mxu0
    %1587 = vdwg.mxu0
    %1588 = vxpose.xlu0.b32.start [1/16] %v905, 128
    %1589 = vxpose.xlu0.b32.cont [2/16] %v910, 128
    %1590 = vxpose.xlu0.b32.cont [3/16] 0.0, 128
    %1591 = vxpose.xlu0.b32.cont [4/16] 0.0, 128
    %1592 = vxpose.xlu0.b32.cont [5/16] 0.0, 128
    %1593 = vxpose.xlu0.b32.cont [6/16] 0.0, 128
    %1594 = vxpose.xlu0.b32.cont [7/16] 0.0, 128
    %1595 = vxpose.xlu0.b32.cont [8/16] 0.0, 128
    %1596 = vxpose.xlu0.b32.cont [9/16] 0.0, 128
    %1597 = vxpose.xlu0.b32.cont [10/16] 0.0, 128
    %1598 = vxpose.xlu0.b32.cont [11/16] 0.0, 128
    %1599 = vxpose.xlu0.b32.cont [12/16] 0.0, 128
    %1600 = vxpose.xlu0.b32.cont [13/16] 0.0, 128
    %1601 = vxpose.xlu0.b32.cont [14/16] 0.0, 128
    %1602 = vxpose.xlu0.b32.cont [15/16] 0.0, 128
    %1603 = vxpose.xlu0.b32.end [16/16] 0.0, 128
    %v1604 = vpop.trf.xlu0
    %v1605 = vpop.trf.xlu0
    %v1606 = vpop.trf.xlu0
    %v1607 = vpop.trf.xlu0
    %v1608 = vpop.trf.xlu0
    %v1609 = vpop.trf.xlu0
    %v1610 = vpop.trf.xlu0
    %v1611 = vpop.trf.xlu0
    %v1612 = vpop.trf.xlu0
    %v1613 = vpop.trf.xlu0
    %v1614 = vpop.trf.xlu0
    %v1615 = vpop.trf.xlu0
    %v1616 = vpop.trf.xlu0
    %v1617 = vpop.trf.xlu0
    %v1618 = vpop.trf.xlu0
    %v1619 = vpop.trf.xlu0
    %1620 = vxpose.xlu0.b32.start [1/16] %v980, 128
    %1621 = vxpose.xlu0.b32.cont [2/16] %v985, 128
    %1622 = vxpose.xlu0.b32.cont [3/16] 0.0, 128
    %1623 = vxpose.xlu0.b32.cont [4/16] 0.0, 128
    %1624 = vxpose.xlu0.b32.cont [5/16] 0.0, 128
    %1625 = vxpose.xlu0.b32.cont [6/16] 0.0, 128
    %1626 = vxpose.xlu0.b32.cont [7/16] 0.0, 128
    %1627 = vxpose.xlu0.b32.cont [8/16] 0.0, 128
    %1628 = vxpose.xlu0.b32.cont [9/16] 0.0, 128
    %1629 = vxpose.xlu0.b32.cont [10/16] 0.0, 128
    %1630 = vxpose.xlu0.b32.cont [11/16] 0.0, 128
    %1631 = vxpose.xlu0.b32.cont [12/16] 0.0, 128
    %1632 = vxpose.xlu0.b32.cont [13/16] 0.0, 128
    %1633 = vxpose.xlu0.b32.cont [14/16] 0.0, 128
    %1634 = vxpose.xlu0.b32.cont [15/16] 0.0, 128
    %1635 = vxpose.xlu0.b32.end [16/16] 0.0, 128
    %v1636 = vpop.trf.xlu0
    %v1637 = vpop.trf.xlu0
    %v1638 = vpop.trf.xlu0
    %v1639 = vpop.trf.xlu0
    %v1640 = vpop.trf.xlu0
    %v1641 = vpop.trf.xlu0
    %v1642 = vpop.trf.xlu0
    %v1643 = vpop.trf.xlu0
    %v1644 = vpop.trf.xlu0
    %v1645 = vpop.trf.xlu0
    %v1646 = vpop.trf.xlu0
    %v1647 = vpop.trf.xlu0
    %v1648 = vpop.trf.xlu0
    %v1649 = vpop.trf.xlu0
    %v1650 = vpop.trf.xlu0
    %v1651 = vpop.trf.xlu0
    %1652 = vxpose.xlu0.b32.start [1/16] %v1055, 128
    %1653 = vxpose.xlu0.b32.cont [2/16] %v1060, 128
    %1654 = vxpose.xlu0.b32.cont [3/16] 0.0, 128
    %1655 = vxpose.xlu0.b32.cont [4/16] 0.0, 128
    %1656 = vxpose.xlu0.b32.cont [5/16] 0.0, 128
    %1657 = vxpose.xlu0.b32.cont [6/16] 0.0, 128
    %1658 = vxpose.xlu0.b32.cont [7/16] 0.0, 128
    %1659 = vxpose.xlu0.b32.cont [8/16] 0.0, 128
    %1660 = vxpose.xlu0.b32.cont [9/16] 0.0, 128
    %1661 = vxpose.xlu0.b32.cont [10/16] 0.0, 128
    %1662 = vxpose.xlu0.b32.cont [11/16] 0.0, 128
    %1663 = vxpose.xlu0.b32.cont [12/16] 0.0, 128
    %1664 = vxpose.xlu0.b32.cont [13/16] 0.0, 128
    %1665 = vxpose.xlu0.b32.cont [14/16] 0.0, 128
    %1666 = vxpose.xlu0.b32.cont [15/16] 0.0, 128
    %1667 = vxpose.xlu0.b32.end [16/16] 0.0, 128
    %v1668 = vpop.trf.xlu0
    %v1669 = vpop.trf.xlu0
    %v1670 = vpop.trf.xlu0
    %v1671 = vpop.trf.xlu0
    %v1672 = vpop.trf.xlu0
    %v1673 = vpop.trf.xlu0
    %v1674 = vpop.trf.xlu0
    %v1675 = vpop.trf.xlu0
    %v1676 = vpop.trf.xlu0
    %v1677 = vpop.trf.xlu0
    %v1678 = vpop.trf.xlu0
    %v1679 = vpop.trf.xlu0
    %v1680 = vpop.trf.xlu0
    %v1681 = vpop.trf.xlu0
    %v1682 = vpop.trf.xlu0
    %v1683 = vpop.trf.xlu0
    %1684 = vxpose.xlu0.b32.start [1/16] %v1130, 128
    %1685 = vxpose.xlu0.b32.cont [2/16] %v1135, 128
    %1686 = vxpose.xlu0.b32.cont [3/16] 0.0, 128
    %1687 = vxpose.xlu0.b32.cont [4/16] 0.0, 128
    %1688 = vxpose.xlu0.b32.cont [5/16] 0.0, 128
    %1689 = vxpose.xlu0.b32.cont [6/16] 0.0, 128
    %1690 = vxpose.xlu0.b32.cont [7/16] 0.0, 128
    %1691 = vxpose.xlu0.b32.cont [8/16] 0.0, 128
    %1692 = vxpose.xlu0.b32.cont [9/16] 0.0, 128
    %1693 = vxpose.xlu0.b32.cont [10/16] 0.0, 128
    %1694 = vxpose.xlu0.b32.cont [11/16] 0.0, 128
    %1695 = vxpose.xlu0.b32.cont [12/16] 0.0, 128
    %1696 = vxpose.xlu0.b32.cont [13/16] 0.0, 128
    %1697 = vxpose.xlu0.b32.cont [14/16] 0.0, 128
    %1698 = vxpose.xlu0.b32.cont [15/16] 0.0, 128
    %1699 = vxpose.xlu0.b32.end [16/16] 0.0, 128
    %v1700 = vpop.trf.xlu0
    %v1701 = vpop.trf.xlu0
    %v1702 = vpop.trf.xlu0
    %v1703 = vpop.trf.xlu0
    %v1704 = vpop.trf.xlu0
    %v1705 = vpop.trf.xlu0
    %v1706 = vpop.trf.xlu0
    %v1707 = vpop.trf.xlu0
    %v1708 = vpop.trf.xlu0
    %v1709 = vpop.trf.xlu0
    %v1710 = vpop.trf.xlu0
    %v1711 = vpop.trf.xlu0
    %v1712 = vpop.trf.xlu0
    %v1713 = vpop.trf.xlu0
    %v1714 = vpop.trf.xlu0
    %v1715 = vpop.trf.xlu0
    %1716 = vxpose.xlu0.b32.start [1/16] %v1205, 128
    %1717 = vxpose.xlu0.b32.cont [2/16] %v1210, 128
    %1718 = vxpose.xlu0.b32.cont [3/16] 0.0, 128
    %1719 = vxpose.xlu0.b32.cont [4/16] 0.0, 128
    %1720 = vxpose.xlu0.b32.cont [5/16] 0.0, 128
    %1721 = vxpose.xlu0.b32.cont [6/16] 0.0, 128
    %1722 = vxpose.xlu0.b32.cont [7/16] 0.0, 128
    %1723 = vxpose.xlu0.b32.cont [8/16] 0.0, 128
    %1724 = vxpose.xlu0.b32.cont [9/16] 0.0, 128
    %1725 = vxpose.xlu0.b32.cont [10/16] 0.0, 128
    %1726 = vxpose.xlu0.b32.cont [11/16] 0.0, 128
    %1727 = vxpose.xlu0.b32.cont [12/16] 0.0, 128
    %1728 = vxpose.xlu0.b32.cont [13/16] 0.0, 128
    %1729 = vxpose.xlu0.b32.cont [14/16] 0.0, 128
    %1730 = vxpose.xlu0.b32.cont [15/16] 0.0, 128
    %1731 = vxpose.xlu0.b32.end [16/16] 0.0, 128
    %v1732 = vpop.trf.xlu0
    %v1733 = vpop.trf.xlu0
    %v1734 = vpop.trf.xlu0
    %v1735 = vpop.trf.xlu0
    %v1736 = vpop.trf.xlu0
    %v1737 = vpop.trf.xlu0
    %v1738 = vpop.trf.xlu0
    %v1739 = vpop.trf.xlu0
    %v1740 = vpop.trf.xlu0
    %v1741 = vpop.trf.xlu0
    %v1742 = vpop.trf.xlu0
    %v1743 = vpop.trf.xlu0
    %v1744 = vpop.trf.xlu0
    %v1745 = vpop.trf.xlu0
    %v1746 = vpop.trf.xlu0
    %v1747 = vpop.trf.xlu0
    %1748 = vxpose.xlu0.b32.start [1/16] %v1280, 128
    %1749 = vxpose.xlu0.b32.cont [2/16] %v1285, 128
    %1750 = vxpose.xlu0.b32.cont [3/16] 0.0, 128
    %1751 = vxpose.xlu0.b32.cont [4/16] 0.0, 128
    %1752 = vxpose.xlu0.b32.cont [5/16] 0.0, 128
    %1753 = vxpose.xlu0.b32.cont [6/16] 0.0, 128
    %1754 = vxpose.xlu0.b32.cont [7/16] 0.0, 128
    %1755 = vxpose.xlu0.b32.cont [8/16] 0.0, 128
    %1756 = vxpose.xlu0.b32.cont [9/16] 0.0, 128
    %1757 = vxpose.xlu0.b32.cont [10/16] 0.0, 128
    %1758 = vxpose.xlu0.b32.cont [11/16] 0.0, 128
    %1759 = vxpose.xlu0.b32.cont [12/16] 0.0, 128
    %1760 = vxpose.xlu0.b32.cont [13/16] 0.0, 128
    %1761 = vxpose.xlu0.b32.cont [14/16] 0.0, 128
    %1762 = vxpose.xlu0.b32.cont [15/16] 0.0, 128
    %1763 = vxpose.xlu0.b32.end [16/16] 0.0, 128
    %v1764 = vpop.trf.xlu0
    %v1765 = vpop.trf.xlu0
    %v1766 = vpop.trf.xlu0
    %v1767 = vpop.trf.xlu0
    %v1768 = vpop.trf.xlu0
    %v1769 = vpop.trf.xlu0
    %v1770 = vpop.trf.xlu0
    %v1771 = vpop.trf.xlu0
    %v1772 = vpop.trf.xlu0
    %v1773 = vpop.trf.xlu0
    %v1774 = vpop.trf.xlu0
    %v1775 = vpop.trf.xlu0
    %v1776 = vpop.trf.xlu0
    %v1777 = vpop.trf.xlu0
    %v1778 = vpop.trf.xlu0
    %v1779 = vpop.trf.xlu0
    %1780 = vxpose.xlu0.b32.start [1/16] %v1355, 128
    %1781 = vxpose.xlu0.b32.cont [2/16] %v1360, 128
    %1782 = vxpose.xlu0.b32.cont [3/16] 0.0, 128
    %1783 = vxpose.xlu0.b32.cont [4/16] 0.0, 128
    %1784 = vxpose.xlu0.b32.cont [5/16] 0.0, 128
    %1785 = vxpose.xlu0.b32.cont [6/16] 0.0, 128
    %1786 = vxpose.xlu0.b32.cont [7/16] 0.0, 128
    %1787 = vxpose.xlu0.b32.cont [8/16] 0.0, 128
    %1788 = vxpose.xlu0.b32.cont [9/16] 0.0, 128
    %1789 = vxpose.xlu0.b32.cont [10/16] 0.0, 128
    %1790 = vxpose.xlu0.b32.cont [11/16] 0.0, 128
    %1791 = vxpose.xlu0.b32.cont [12/16] 0.0, 128
    %1792 = vxpose.xlu0.b32.cont [13/16] 0.0, 128
    %1793 = vxpose.xlu0.b32.cont [14/16] 0.0, 128
    %1794 = vxpose.xlu0.b32.cont [15/16] 0.0, 128
    %1795 = vxpose.xlu0.b32.end [16/16] 0.0, 128
    %v1796 = vpop.trf.xlu0
    %v1797 = vpop.trf.xlu0
    %v1798 = vpop.trf.xlu0
    %v1799 = vpop.trf.xlu0
    %v1800 = vpop.trf.xlu0
    %v1801 = vpop.trf.xlu0
    %v1802 = vpop.trf.xlu0
    %v1803 = vpop.trf.xlu0
    %v1804 = vpop.trf.xlu0
    %v1805 = vpop.trf.xlu0
    %v1806 = vpop.trf.xlu0
    %v1807 = vpop.trf.xlu0
    %v1808 = vpop.trf.xlu0
    %v1809 = vpop.trf.xlu0
    %v1810 = vpop.trf.xlu0
    %v1811 = vpop.trf.xlu0
    %1812 = vxpose.xlu0.b32.start [1/16] %v1430, 128
    %1813 = vxpose.xlu0.b32.cont [2/16] %v1435, 128
    %1814 = vxpose.xlu0.b32.cont [3/16] 0.0, 128
    %1815 = vxpose.xlu0.b32.cont [4/16] 0.0, 128
    %1816 = vxpose.xlu0.b32.cont [5/16] 0.0, 128
    %1817 = vxpose.xlu0.b32.cont [6/16] 0.0, 128
    %1818 = vxpose.xlu0.b32.cont [7/16] 0.0, 128
    %1819 = vxpose.xlu0.b32.cont [8/16] 0.0, 128
    %1820 = vxpose.xlu0.b32.cont [9/16] 0.0, 128
    %1821 = vxpose.xlu0.b32.cont [10/16] 0.0, 128
    %1822 = vxpose.xlu0.b32.cont [11/16] 0.0, 128
    %1823 = vxpose.xlu0.b32.cont [12/16] 0.0, 128
    %1824 = vxpose.xlu0.b32.cont [13/16] 0.0, 128
    %1825 = vxpose.xlu0.b32.cont [14/16] 0.0, 128
    %1826 = vxpose.xlu0.b32.cont [15/16] 0.0, 128
    %1827 = vxpose.xlu0.b32.end [16/16] 0.0, 128
    %v1828 = vpop.trf.xlu0
    %v1829 = vpop.trf.xlu0
    %v1830 = vpop.trf.xlu0
    %v1831 = vpop.trf.xlu0
    %v1832 = vpop.trf.xlu0
    %v1833 = vpop.trf.xlu0
    %v1834 = vpop.trf.xlu0
    %v1835 = vpop.trf.xlu0
    %v1836 = vpop.trf.xlu0
    %v1837 = vpop.trf.xlu0
    %v1838 = vpop.trf.xlu0
    %v1839 = vpop.trf.xlu0
    %v1840 = vpop.trf.xlu0
    %v1841 = vpop.trf.xlu0
    %v1842 = vpop.trf.xlu0
    %v1843 = vpop.trf.xlu0
    %1844 = vxpose.xlu0.b32.start [1/16] %v1505, 128
    %1845 = vxpose.xlu0.b32.cont [2/16] %v1510, 128
    %1846 = vxpose.xlu0.b32.cont [3/16] 0.0, 128
    %1847 = vxpose.xlu0.b32.cont [4/16] 0.0, 128
    %1848 = vxpose.xlu0.b32.cont [5/16] 0.0, 128
    %1849 = vxpose.xlu0.b32.cont [6/16] 0.0, 128
    %1850 = vxpose.xlu0.b32.cont [7/16] 0.0, 128
    %1851 = vxpose.xlu0.b32.cont [8/16] 0.0, 128
    %1852 = vxpose.xlu0.b32.cont [9/16] 0.0, 128
    %1853 = vxpose.xlu0.b32.cont [10/16] 0.0, 128
    %1854 = vxpose.xlu0.b32.cont [11/16] 0.0, 128
    %1855 = vxpose.xlu0.b32.cont [12/16] 0.0, 128
    %1856 = vxpose.xlu0.b32.cont [13/16] 0.0, 128
    %1857 = vxpose.xlu0.b32.cont [14/16] 0.0, 128
    %1858 = vxpose.xlu0.b32.cont [15/16] 0.0, 128
    %1859 = vxpose.xlu0.b32.end [16/16] 0.0, 128
    %v1860 = vpop.trf.xlu0
    %v1861 = vpop.trf.xlu0
    %v1862 = vpop.trf.xlu0
    %v1863 = vpop.trf.xlu0
    %v1864 = vpop.trf.xlu0
    %v1865 = vpop.trf.xlu0
    %v1866 = vpop.trf.xlu0
    %v1867 = vpop.trf.xlu0
    %v1868 = vpop.trf.xlu0
    %v1869 = vpop.trf.xlu0
    %v1870 = vpop.trf.xlu0
    %v1871 = vpop.trf.xlu0
    %v1872 = vpop.trf.xlu0
    %v1873 = vpop.trf.xlu0
    %v1874 = vpop.trf.xlu0
    %v1875 = vpop.trf.xlu0
    %1876 = vxpose.xlu0.b32.start [1/16] %v1580, 128
    %1877 = vxpose.xlu0.b32.cont [2/16] %v1585, 128
    %1878 = vxpose.xlu0.b32.cont [3/16] 0.0, 128
    %1879 = vxpose.xlu0.b32.cont [4/16] 0.0, 128
    %1880 = vxpose.xlu0.b32.cont [5/16] 0.0, 128
    %1881 = vxpose.xlu0.b32.cont [6/16] 0.0, 128
    %1882 = vxpose.xlu0.b32.cont [7/16] 0.0, 128
    %1883 = vxpose.xlu0.b32.cont [8/16] 0.0, 128
    %1884 = vxpose.xlu0.b32.cont [9/16] 0.0, 128
    %1885 = vxpose.xlu0.b32.cont [10/16] 0.0, 128
    %1886 = vxpose.xlu0.b32.cont [11/16] 0.0, 128
    %1887 = vxpose.xlu0.b32.cont [12/16] 0.0, 128
    %1888 = vxpose.xlu0.b32.cont [13/16] 0.0, 128
    %1889 = vxpose.xlu0.b32.cont [14/16] 0.0, 128
    %1890 = vxpose.xlu0.b32.cont [15/16] 0.0, 128
    %1891 = vxpose.xlu0.b32.end [16/16] 0.0, 128
    %v1892 = vpop.trf.xlu0
    %v1893 = vpop.trf.xlu0
    %v1894 = vpop.trf.xlu0
    %v1895 = vpop.trf.xlu0
    %v1896 = vpop.trf.xlu0
    %v1897 = vpop.trf.xlu0
    %v1898 = vpop.trf.xlu0
    %v1899 = vpop.trf.xlu0
    %v1900 = vpop.trf.xlu0
    %v1901 = vpop.trf.xlu0
    %v1902 = vpop.trf.xlu0
    %v1903 = vpop.trf.xlu0
    %v1904 = vpop.trf.xlu0
    %v1905 = vpop.trf.xlu0
    %v1906 = vpop.trf.xlu0
    %v1907 = vpop.trf.xlu0
    %1909 = vset.pattern.permute.xlu0 0
    %1910 = vperm.xlu0 %1909, %v905
    %v1911 = vpop.permute.xlu0 %1910
    %1914 = vset.pattern.permute.xlu0 0
    %1915 = vperm.xlu0 %1914, %v910
    %v1916 = vpop.permute.xlu0 %1915
    %1919 = vset.pattern.permute.xlu0 0
    %1920 = vperm.xlu0 %1919, %v980
    %v1921 = vpop.permute.xlu0 %1920
    %1924 = vset.pattern.permute.xlu0 0
    %1925 = vperm.xlu0 %1924, %v985
    %v1926 = vpop.permute.xlu0 %1925
    %1929 = vset.pattern.permute.xlu0 0
    %1930 = vperm.xlu0 %1929, %v1055
    %v1931 = vpop.permute.xlu0 %1930
    %1934 = vset.pattern.permute.xlu0 0
    %1935 = vperm.xlu0 %1934, %v1060
    %v1936 = vpop.permute.xlu0 %1935
    %1939 = vset.pattern.permute.xlu0 0
    %1940 = vperm.xlu0 %1939, %v1130
    %v1941 = vpop.permute.xlu0 %1940
    %1944 = vset.pattern.permute.xlu0 0
    %1945 = vperm.xlu0 %1944, %v1135
    %v1946 = vpop.permute.xlu0 %1945
    %1949 = vset.pattern.permute.xlu0 0
    %1950 = vperm.xlu0 %1949, %v1205
    %v1951 = vpop.permute.xlu0 %1950
    %1954 = vset.pattern.permute.xlu0 0
    %1955 = vperm.xlu0 %1954, %v1210
    %v1956 = vpop.permute.xlu0 %1955
    %1959 = vset.pattern.permute.xlu0 0
    %1960 = vperm.xlu0 %1959, %v1280
    %v1961 = vpop.permute.xlu0 %1960
    %1964 = vset.pattern.permute.xlu0 0
    %1965 = vperm.xlu0 %1964, %v1285
    %v1966 = vpop.permute.xlu0 %1965
    %1969 = vset.pattern.permute.xlu0 0
    %1970 = vperm.xlu0 %1969, %v1355
    %v1971 = vpop.permute.xlu0 %1970
    %1974 = vset.pattern.permute.xlu0 0
    %1975 = vperm.xlu0 %1974, %v1360
    %v1976 = vpop.permute.xlu0 %1975
    %1979 = vset.pattern.permute.xlu0 0
    %1980 = vperm.xlu0 %1979, %v1430
    %v1981 = vpop.permute.xlu0 %1980
    %1984 = vset.pattern.permute.xlu0 0
    %1985 = vperm.xlu0 %1984, %v1435
    %v1986 = vpop.permute.xlu0 %1985
    %1989 = vset.pattern.permute.xlu0 0
    %1990 = vperm.xlu0 %1989, %v1505
    %v1991 = vpop.permute.xlu0 %1990
    %1994 = vset.pattern.permute.xlu0 0
    %1995 = vperm.xlu0 %1994, %v1510
    %v1996 = vpop.permute.xlu0 %1995
    %1999 = vset.pattern.permute.xlu0 0
    %2000 = vperm.xlu0 %1999, %v1580
    %v2001 = vpop.permute.xlu0 %2000
    %2004 = vset.pattern.permute.xlu0 0
    %2005 = vperm.xlu0 %2004, %v1585
    %v2006 = vpop.permute.xlu0 %2005
    %v2008 = vlaneseq
    %v2009 = vshrl.u32 %v2008, 7
    %v2010 = vsub.s32 1, %v2009
    %v2011 = vrot.slane %v1604, %v2010
    %v2012 = vlaneseq
    %v2013 = vshrl.u32 %v2012, 7
    %v2014 = vsub.s32 1, %v2013
    %v2015 = vrot.slane %v1636, %v2014
    %v2016 = vlaneseq
    %v2017 = vshrl.u32 %v2016, 7
    %v2018 = vsub.s32 1, %v2017
    %v2019 = vrot.slane %v1668, %v2018
    %v2020 = vlaneseq
    %v2021 = vshrl.u32 %v2020, 7
    %v2022 = vsub.s32 1, %v2021
    %v2023 = vrot.slane %v1700, %v2022
    %v2024 = vlaneseq
    %v2025 = vshrl.u32 %v2024, 7
    %v2026 = vsub.s32 1, %v2025
    %v2027 = vrot.slane %v1732, %v2026
    %v2028 = vlaneseq
    %v2029 = vshrl.u32 %v2028, 7
    %v2030 = vsub.s32 1, %v2029
    %v2031 = vrot.slane %v1764, %v2030
    %v2032 = vlaneseq
    %v2033 = vshrl.u32 %v2032, 7
    %v2034 = vsub.s32 1, %v2033
    %v2035 = vrot.slane %v1796, %v2034
    %v2036 = vlaneseq
    %v2037 = vshrl.u32 %v2036, 7
    %v2038 = vsub.s32 1, %v2037
    %v2039 = vrot.slane %v1828, %v2038
    %v2040 = vlaneseq
    %v2041 = vshrl.u32 %v2040, 7
    %v2042 = vsub.s32 1, %v2041
    %v2043 = vrot.slane %v1860, %v2042
    %v2044 = vlaneseq
    %v2045 = vshrl.u32 %v2044, 7
    %v2046 = vsub.s32 1, %v2045
    %v2047 = vrot.slane %v1892, %v2046
    %v2048 = vadd.f32 %v1911, %v2011
    %v2049 = vadd.f32 %v1916, %v2011
    %v2050 = vadd.f32 %v1921, %v2015
    %v2051 = vadd.f32 %v1926, %v2015
    %v2052 = vadd.f32 %v1931, %v2019
    %v2053 = vadd.f32 %v1936, %v2019
    %v2054 = vadd.f32 %v1941, %v2023
    %v2055 = vadd.f32 %v1946, %v2023
    %v2056 = vadd.f32 %v1951, %v2027
    %v2057 = vadd.f32 %v1956, %v2027
    %v2058 = vadd.f32 %v1961, %v2031
    %v2059 = vadd.f32 %v1966, %v2031
    %v2060 = vadd.f32 %v1971, %v2035
    %v2061 = vadd.f32 %v1976, %v2035
    %v2062 = vadd.f32 %v1981, %v2039
    %v2063 = vadd.f32 %v1986, %v2039
    %v2064 = vadd.f32 %v1991, %v2043
    %v2065 = vadd.f32 %v1996, %v2043
    %v2066 = vadd.f32 %v2001, %v2047
    %v2067 = vadd.f32 %v2006, %v2047
    %vm2068 = vcmp.gt.f32.partialorder %v2048, 0.0
    %vm2069 = vcmp.gt.f32.partialorder %v2049, 0.0
    %vm2070 = vcmp.gt.f32.partialorder %v2050, 0.0
    %vm2071 = vcmp.gt.f32.partialorder %v2051, 0.0
    %vm2072 = vcmp.gt.f32.partialorder %v2052, 0.0
    %vm2073 = vcmp.gt.f32.partialorder %v2053, 0.0
    %vm2074 = vcmp.gt.f32.partialorder %v2054, 0.0
    %vm2075 = vcmp.gt.f32.partialorder %v2055, 0.0
    %vm2076 = vcmp.gt.f32.partialorder %v2056, 0.0
    %vm2077 = vcmp.gt.f32.partialorder %v2057, 0.0
    %vm2078 = vcmp.gt.f32.partialorder %v2058, 0.0
    %vm2079 = vcmp.gt.f32.partialorder %v2059, 0.0
    %vm2080 = vcmp.gt.f32.partialorder %v2060, 0.0
    %vm2081 = vcmp.gt.f32.partialorder %v2061, 0.0
    %vm2082 = vcmp.gt.f32.partialorder %v2062, 0.0
    %vm2083 = vcmp.gt.f32.partialorder %v2063, 0.0
    %vm2084 = vcmp.gt.f32.partialorder %v2064, 0.0
    %vm2085 = vcmp.gt.f32.partialorder %v2065, 0.0
    %vm2086 = vcmp.gt.f32.partialorder %v2066, 0.0
    %vm2087 = vcmp.gt.f32.partialorder %v2067, 0.0
    %v2088 = vmul.f32 %v2048, 0.2
    %v2089 = vmul.f32 %v2049, 0.2
    %v2090 = vmul.f32 %v2050, 0.2
    %v2091 = vmul.f32 %v2051, 0.2
    %v2092 = vmul.f32 %v2052, 0.2
    %v2093 = vmul.f32 %v2053, 0.2
    %v2094 = vmul.f32 %v2054, 0.2
    %v2095 = vmul.f32 %v2055, 0.2
    %v2096 = vmul.f32 %v2056, 0.2
    %v2097 = vmul.f32 %v2057, 0.2
    %v2098 = vmul.f32 %v2058, 0.2
    %v2099 = vmul.f32 %v2059, 0.2
    %v2100 = vmul.f32 %v2060, 0.2
    %v2101 = vmul.f32 %v2061, 0.2
    %v2102 = vmul.f32 %v2062, 0.2
    %v2103 = vmul.f32 %v2063, 0.2
    %v2104 = vmul.f32 %v2064, 0.2
    %v2105 = vmul.f32 %v2065, 0.2
    %v2106 = vmul.f32 %v2066, 0.2
    %v2107 = vmul.f32 %v2067, 0.2
    %v2108 = vsel %vm2068, %v2048, %v2088
    %v2109 = vsel %vm2069, %v2049, %v2089
    %v2110 = vsel %vm2070, %v2050, %v2090
    %v2111 = vsel %vm2071, %v2051, %v2091
    %v2112 = vsel %vm2072, %v2052, %v2092
    %v2113 = vsel %vm2073, %v2053, %v2093
    %v2114 = vsel %vm2074, %v2054, %v2094
    %v2115 = vsel %vm2075, %v2055, %v2095
    %v2116 = vsel %vm2076, %v2056, %v2096
    %v2117 = vsel %vm2077, %v2057, %v2097
    %v2118 = vsel %vm2078, %v2058, %v2098
    %v2119 = vsel %vm2079, %v2059, %v2099
    %v2120 = vsel %vm2080, %v2060, %v2100
    %v2121 = vsel %vm2081, %v2061, %v2101
    %v2122 = vsel %vm2082, %v2062, %v2102
    %v2123 = vsel %vm2083, %v2063, %v2103
    %v2124 = vsel %vm2084, %v2064, %v2104
    %v2125 = vsel %vm2085, %v2065, %v2105
    %v2126 = vsel %vm2086, %v2066, %v2106
    %v2127 = vsel %vm2087, %v2067, %v2107
    %v2128 = vsel %vm113, 65537, 0
    %v2129 = vsel %vm114, 65537, 0
    %v2130 = vunpack.c.l.b16 %v2128
    %v2131 = vunpack.c.l.b16 %v2129
    %vm2132 = vcmp.ne.s32.totalorder %v2130, 0
    %vm2133 = vcmp.ne.s32.totalorder %v2131, 0
    %v2134 = vsel %vm2132, 1, 0
    %v2135 = vsel %vm2133, 1, 0
    %vm2136 = vcmp.eq.s32.totalorder %v2134, 1
    %vm2137 = vcmp.eq.s32.totalorder %v2135, 1
    %v2138 = vsel %vm2136, %v2108, -1e+30
    %v2139 = vsel %vm2137, %v2109, -1e+30
    %v2140 = vsel %vm2136, %v2110, -1e+30
    %v2141 = vsel %vm2137, %v2111, -1e+30
    %v2142 = vsel %vm2136, %v2112, -1e+30
    %v2143 = vsel %vm2137, %v2113, -1e+30
    %v2144 = vsel %vm2136, %v2114, -1e+30
    %v2145 = vsel %vm2137, %v2115, -1e+30
    %v2146 = vsel %vm2136, %v2116, -1e+30
    %v2147 = vsel %vm2137, %v2117, -1e+30
    %v2148 = vsel %vm2136, %v2118, -1e+30
    %v2149 = vsel %vm2137, %v2119, -1e+30
    %v2150 = vsel %vm2136, %v2120, -1e+30
    %v2151 = vsel %vm2137, %v2121, -1e+30
    %v2152 = vsel %vm2136, %v2122, -1e+30
    %v2153 = vsel %vm2137, %v2123, -1e+30
    %v2154 = vsel %vm2136, %v2124, -1e+30
    %v2155 = vsel %vm2137, %v2125, -1e+30
    %v2156 = vsel %vm2136, %v2126, -1e+30
    %v2157 = vsel %vm2137, %v2127, -1e+30
    %vm2158 = vcmask 130048
    %v2159 = vsel %vm2158, %v2138, -inf
    %2160 = vmax.xlane.f32.xlu0 %v2159
    %v2161 = vpop.xlane.xlu0 %2160
    %v2162 = vsel %vm2158, %v2139, -inf
    %2163 = vmax.xlane.f32.xlu0 %v2162
    %v2164 = vpop.xlane.xlu0 %2163
    %v2165 = vsel %vm2158, %v2140, -inf
    %2166 = vmax.xlane.f32.xlu0 %v2165
    %v2167 = vpop.xlane.xlu0 %2166
    %v2168 = vsel %vm2158, %v2141, -inf
    %2169 = vmax.xlane.f32.xlu0 %v2168
    %v2170 = vpop.xlane.xlu0 %2169
    %v2171 = vsel %vm2158, %v2142, -inf
    %2172 = vmax.xlane.f32.xlu0 %v2171
    %v2173 = vpop.xlane.xlu0 %2172
    %v2174 = vsel %vm2158, %v2143, -inf
    %2175 = vmax.xlane.f32.xlu0 %v2174
    %v2176 = vpop.xlane.xlu0 %2175
    %v2177 = vsel %vm2158, %v2144, -inf
    %2178 = vmax.xlane.f32.xlu0 %v2177
    %v2179 = vpop.xlane.xlu0 %2178
    %v2180 = vsel %vm2158, %v2145, -inf
    %2181 = vmax.xlane.f32.xlu0 %v2180
    %v2182 = vpop.xlane.xlu0 %2181
    %v2183 = vsel %vm2158, %v2146, -inf
    %2184 = vmax.xlane.f32.xlu0 %v2183
    %v2185 = vpop.xlane.xlu0 %2184
    %v2186 = vsel %vm2158, %v2147, -inf
    %2187 = vmax.xlane.f32.xlu0 %v2186
    %v2188 = vpop.xlane.xlu0 %2187
    %v2189 = vsel %vm2158, %v2148, -inf
    %2190 = vmax.xlane.f32.xlu0 %v2189
    %v2191 = vpop.xlane.xlu0 %2190
    %v2192 = vsel %vm2158, %v2149, -inf
    %2193 = vmax.xlane.f32.xlu0 %v2192
    %v2194 = vpop.xlane.xlu0 %2193
    %v2195 = vsel %vm2158, %v2150, -inf
    %2196 = vmax.xlane.f32.xlu0 %v2195
    %v2197 = vpop.xlane.xlu0 %2196
    %v2198 = vsel %vm2158, %v2151, -inf
    %2199 = vmax.xlane.f32.xlu0 %v2198
    %v2200 = vpop.xlane.xlu0 %2199
    %v2201 = vsel %vm2158, %v2152, -inf
    %2202 = vmax.xlane.f32.xlu0 %v2201
    %v2203 = vpop.xlane.xlu0 %2202
    %v2204 = vsel %vm2158, %v2153, -inf
    %2205 = vmax.xlane.f32.xlu0 %v2204
    %v2206 = vpop.xlane.xlu0 %2205
    %v2207 = vsel %vm2158, %v2154, -inf
    %2208 = vmax.xlane.f32.xlu0 %v2207
    %v2209 = vpop.xlane.xlu0 %2208
    %v2210 = vsel %vm2158, %v2155, -inf
    %2211 = vmax.xlane.f32.xlu0 %v2210
    %v2212 = vpop.xlane.xlu0 %2211
    %v2213 = vsel %vm2158, %v2156, -inf
    %2214 = vmax.xlane.f32.xlu0 %v2213
    %v2215 = vpop.xlane.xlu0 %2214
    %v2216 = vsel %vm2158, %v2157, -inf
    %2217 = vmax.xlane.f32.xlu0 %v2216
    %v2218 = vpop.xlane.xlu0 %2217
    %v2219 = vsub.f32 %v2138, %v2161
    %v2220 = vsub.f32 %v2139, %v2164
    %v2221 = vsub.f32 %v2140, %v2167
    %v2222 = vsub.f32 %v2141, %v2170
    %v2223 = vsub.f32 %v2142, %v2173
    %v2224 = vsub.f32 %v2143, %v2176
    %v2225 = vsub.f32 %v2144, %v2179
    %v2226 = vsub.f32 %v2145, %v2182
    %v2227 = vsub.f32 %v2146, %v2185
    %v2228 = vsub.f32 %v2147, %v2188
    %v2229 = vsub.f32 %v2148, %v2191
    %v2230 = vsub.f32 %v2149, %v2194
    %v2231 = vsub.f32 %v2150, %v2197
    %v2232 = vsub.f32 %v2151, %v2200
    %v2233 = vsub.f32 %v2152, %v2203
    %v2234 = vsub.f32 %v2153, %v2206
    %v2235 = vsub.f32 %v2154, %v2209
    %v2236 = vsub.f32 %v2155, %v2212
    %v2237 = vsub.f32 %v2156, %v2215
    %v2238 = vsub.f32 %v2157, %v2218
    %v2239 = vmul.f32 %v2219, 1.442695
    %v2240 = vpow.pop %v2239
    %v2241 = vmul.f32 %v2220, 1.442695
    %v2242 = vpow.pop %v2241
    %v2243 = vmul.f32 %v2221, 1.442695
    %v2244 = vpow.pop %v2243
    %v2245 = vmul.f32 %v2222, 1.442695
    %v2246 = vpow.pop %v2245
    %v2247 = vmul.f32 %v2223, 1.442695
    %v2248 = vpow.pop %v2247
    %v2249 = vmul.f32 %v2224, 1.442695
    %v2250 = vpow.pop %v2249
    %v2251 = vmul.f32 %v2225, 1.442695
    %v2252 = vpow.pop %v2251
    %v2253 = vmul.f32 %v2226, 1.442695
    %v2254 = vpow.pop %v2253
    %v2255 = vmul.f32 %v2227, 1.442695
    %v2256 = vpow.pop %v2255
    %v2257 = vmul.f32 %v2228, 1.442695
    %v2258 = vpow.pop %v2257
    %v2259 = vmul.f32 %v2229, 1.442695
    %v2260 = vpow.pop %v2259
    %v2261 = vmul.f32 %v2230, 1.442695
    %v2262 = vpow.pop %v2261
    %v2263 = vmul.f32 %v2231, 1.442695
    %v2264 = vpow.pop %v2263
    %v2265 = vmul.f32 %v2232, 1.442695
    %v2266 = vpow.pop %v2265
    %v2267 = vmul.f32 %v2233, 1.442695
    %v2268 = vpow.pop %v2267
    %v2269 = vmul.f32 %v2234, 1.442695
    %v2270 = vpow.pop %v2269
    %v2271 = vmul.f32 %v2235, 1.442695
    %v2272 = vpow.pop %v2271
    %v2273 = vmul.f32 %v2236, 1.442695
    %v2274 = vpow.pop %v2273
    %v2275 = vmul.f32 %v2237, 1.442695
    %v2276 = vpow.pop %v2275
    %v2277 = vmul.f32 %v2238, 1.442695
    %v2278 = vpow.pop %v2277
    %v2279 = vsel %vm2158, %v2240, 0.0
    %2280 = vadd.xlane.f32.xlu0 %v2279
    %v2281 = vpop.xlane.xlu0 %2280
    %v2282 = vsel %vm2158, %v2242, 0.0
    %2283 = vadd.xlane.f32.xlu0 %v2282
    %v2284 = vpop.xlane.xlu0 %2283
    %v2285 = vsel %vm2158, %v2244, 0.0
    %2286 = vadd.xlane.f32.xlu0 %v2285
    %v2287 = vpop.xlane.xlu0 %2286
    %v2288 = vsel %vm2158, %v2246, 0.0
    %2289 = vadd.xlane.f32.xlu0 %v2288
    %v2290 = vpop.xlane.xlu0 %2289
    %v2291 = vsel %vm2158, %v2248, 0.0
    %2292 = vadd.xlane.f32.xlu0 %v2291
    %v2293 = vpop.xlane.xlu0 %2292
    %v2294 = vsel %vm2158, %v2250, 0.0
    %2295 = vadd.xlane.f32.xlu0 %v2294
    %v2296 = vpop.xlane.xlu0 %2295
    %v2297 = vsel %vm2158, %v2252, 0.0
    %2298 = vadd.xlane.f32.xlu0 %v2297
    %v2299 = vpop.xlane.xlu0 %2298
    %v2300 = vsel %vm2158, %v2254, 0.0
    %2301 = vadd.xlane.f32.xlu0 %v2300
    %v2302 = vpop.xlane.xlu0 %2301
    %v2303 = vsel %vm2158, %v2256, 0.0
    %2304 = vadd.xlane.f32.xlu0 %v2303
    %v2305 = vpop.xlane.xlu0 %2304
    %v2306 = vsel %vm2158, %v2258, 0.0
    %2307 = vadd.xlane.f32.xlu0 %v2306
    %v2308 = vpop.xlane.xlu0 %2307
    %v2309 = vsel %vm2158, %v2260, 0.0
    %2310 = vadd.xlane.f32.xlu0 %v2309
    %v2311 = vpop.xlane.xlu0 %2310
    %v2312 = vsel %vm2158, %v2262, 0.0
    %2313 = vadd.xlane.f32.xlu0 %v2312
    %v2314 = vpop.xlane.xlu0 %2313
    %v2315 = vsel %vm2158, %v2264, 0.0
    %2316 = vadd.xlane.f32.xlu0 %v2315
    %v2317 = vpop.xlane.xlu0 %2316
    %v2318 = vsel %vm2158, %v2266, 0.0
    %2319 = vadd.xlane.f32.xlu0 %v2318
    %v2320 = vpop.xlane.xlu0 %2319
    %v2321 = vsel %vm2158, %v2268, 0.0
    %2322 = vadd.xlane.f32.xlu0 %v2321
    %v2323 = vpop.xlane.xlu0 %2322
    %v2324 = vsel %vm2158, %v2270, 0.0
    %2325 = vadd.xlane.f32.xlu0 %v2324
    %v2326 = vpop.xlane.xlu0 %2325
    %v2327 = vsel %vm2158, %v2272, 0.0
    %2328 = vadd.xlane.f32.xlu0 %v2327
    %v2329 = vpop.xlane.xlu0 %2328
    %v2330 = vsel %vm2158, %v2274, 0.0
    %2331 = vadd.xlane.f32.xlu0 %v2330
    %v2332 = vpop.xlane.xlu0 %2331
    %v2333 = vsel %vm2158, %v2276, 0.0
    %2334 = vadd.xlane.f32.xlu0 %v2333
    %v2335 = vpop.xlane.xlu0 %2334
    %v2336 = vsel %vm2158, %v2278, 0.0
    %2337 = vadd.xlane.f32.xlu0 %v2336
    %v2338 = vpop.xlane.xlu0 %2337
    %v2339 = vpack.c.bf16 %v2242, %v2240
    %v2340 = vpack.c.bf16 %v2246, %v2244
    %v2341 = vpack.c.bf16 %v2250, %v2248
    %v2342 = vpack.c.bf16 %v2254, %v2252
    %v2343 = vpack.c.bf16 %v2258, %v2256
    %v2344 = vpack.c.bf16 %v2262, %v2260
    %v2345 = vpack.c.bf16 %v2266, %v2264
    %v2346 = vpack.c.bf16 %v2270, %v2268
    %v2347 = vpack.c.bf16 %v2274, %v2272
    %v2348 = vpack.c.bf16 %v2278, %v2276
    %v2349 = vpack.c.bf16 %v642, %v638
    %v2350 = vpack.c.bf16 %v644, %v640
    %v2351 = vpack.c.bf16 %v685, %v681
    %v2352 = vpack.c.bf16 %v687, %v683
    %v2353 = vpack.c.bf16 %v728, %v724
    %v2354 = vpack.c.bf16 %v730, %v726
    %v2355 = vpack.c.bf16 %v771, %v767
    %v2356 = vpack.c.bf16 %v773, %v769
    %v2357 = vpack.c.bf16 %v814, %v810
    %v2358 = vpack.c.bf16 %v816, %v812
    %v2360 = vsel %vm2158, %v2339, 0
    %2362 = vmatprep.subr.bf16.mxu0 0
    %2363 = vmatpush1.bf16.msra.mxu0 %v2349
    %2364 = vmatprep.subr.bf16.mxu0 0
    %2365 = vmatpush1.bf16.msra.mxu0 0
    %2366 = vmatprep.subr.bf16.mxu0 0
    %2367 = vmatpush1.bf16.msra.mxu0 0
    %2368 = vmatprep.subr.bf16.mxu0 0
    %2369 = vmatpush1.bf16.msra.mxu0 0
    %2370 = vmatprep.subr.bf16.mxu0 0
    %2371 = vmatpush1.bf16.msra.mxu0 0
    %2372 = vmatprep.subr.bf16.mxu0 0
    %2373 = vmatpush1.bf16.msra.mxu0 0
    %2374 = vmatprep.subr.bf16.mxu0 0
    %2375 = vmatpush1.bf16.msra.mxu0 0
    %2376 = vmatprep.subr.bf16.mxu0 0
    %2377 = vmatpush1.bf16.msra.mxu0 0
    %2378 = vmatprep.subr.bf16.mxu0 0
    %2379 = vmatpush1.bf16.msra.mxu0 0
    %2380 = vmatprep.subr.bf16.mxu0 0
    %2381 = vmatpush1.bf16.msra.mxu0 0
    %2382 = vmatprep.subr.bf16.mxu0 0
    %2383 = vmatpush1.bf16.msra.mxu0 0
    %2384 = vmatprep.subr.bf16.mxu0 0
    %2385 = vmatpush1.bf16.msra.mxu0 0
    %2386 = vmatprep.subr.bf16.mxu0 0
    %2387 = vmatpush1.bf16.msra.mxu0 0
    %2388 = vmatprep.subr.bf16.mxu0 0
    %2389 = vmatpush1.bf16.msra.mxu0 0
    %2390 = vmatprep.subr.bf16.mxu0 0
    %2391 = vmatpush1.bf16.msra.mxu0 0
    %2392 = vmatprep.subr.bf16.mxu0 0
    %2393 = vmatpush1.bf16.msra.mxu0 0
    %2394 = vmatprep.mubr.bf16.mxu0 0
    %2395 = vmatmul.mubr.bf16.gmra.mrb[0].mxu0 %v2360
    %v2396 = vpop.f32.mrb[0].mxu0
    %v2397 = vadd.f32 0.0, %v2396
    %v2398 = vpop.f32.mrb[0].mxu0
    %v2399 = vpop.f32.mrb[0].mxu0
    %v2400 = vadd.f32 0.0, %v2399
    %v2401 = vpop.f32.mrb[0].mxu0
    %2402 = vdwg.mxu0
    %v2404 = vsel %vm2158, %v2340, 0
    %2406 = vmatprep.subr.bf16.mxu0 0
    %2407 = vmatpush1.bf16.msra.mxu0 %v2350
    %2408 = vmatprep.subr.bf16.mxu0 0
    %2409 = vmatpush1.bf16.msra.mxu0 0
    %2410 = vmatprep.subr.bf16.mxu0 0
    %2411 = vmatpush1.bf16.msra.mxu0 0
    %2412 = vmatprep.subr.bf16.mxu0 0
    %2413 = vmatpush1.bf16.msra.mxu0 0
    %2414 = vmatprep.subr.bf16.mxu0 0
    %2415 = vmatpush1.bf16.msra.mxu0 0
    %2416 = vmatprep.subr.bf16.mxu0 0
    %2417 = vmatpush1.bf16.msra.mxu0 0
    %2418 = vmatprep.subr.bf16.mxu0 0
    %2419 = vmatpush1.bf16.msra.mxu0 0
    %2420 = vmatprep.subr.bf16.mxu0 0
    %2421 = vmatpush1.bf16.msra.mxu0 0
    %2422 = vmatprep.subr.bf16.mxu0 0
    %2423 = vmatpush1.bf16.msra.mxu0 0
    %2424 = vmatprep.subr.bf16.mxu0 0
    %2425 = vmatpush1.bf16.msra.mxu0 0
    %2426 = vmatprep.subr.bf16.mxu0 0
    %2427 = vmatpush1.bf16.msra.mxu0 0
    %2428 = vmatprep.subr.bf16.mxu0 0
    %2429 = vmatpush1.bf16.msra.mxu0 0
    %2430 = vmatprep.subr.bf16.mxu0 0
    %2431 = vmatpush1.bf16.msra.mxu0 0
    %2432 = vmatprep.subr.bf16.mxu0 0
    %2433 = vmatpush1.bf16.msra.mxu0 0
    %2434 = vmatprep.subr.bf16.mxu0 0
    %2435 = vmatpush1.bf16.msra.mxu0 0
    %2436 = vmatprep.subr.bf16.mxu0 0
    %2437 = vmatpush1.bf16.msra.mxu0 0
    %2438 = vmatprep.mubr.bf16.mxu0 0
    %2439 = vmatmul.mubr.bf16.gmra.mrb[0].mxu0 %v2404
    %v2440 = vpop.f32.mrb[0].mxu0
    %v2441 = vadd.f32 0.0, %v2440
    %v2442 = vpop.f32.mrb[0].mxu0
    %v2443 = vpop.f32.mrb[0].mxu0
    %v2444 = vadd.f32 0.0, %v2443
    %v2445 = vpop.f32.mrb[0].mxu0
    %2446 = vdwg.mxu0
    %v2448 = vsel %vm2158, %v2341, 0
    %2450 = vmatprep.subr.bf16.mxu0 0
    %2451 = vmatpush1.bf16.msra.mxu0 %v2351
    %2452 = vmatprep.subr.bf16.mxu0 0
    %2453 = vmatpush1.bf16.msra.mxu0 0
    %2454 = vmatprep.subr.bf16.mxu0 0
    %2455 = vmatpush1.bf16.msra.mxu0 0
    %2456 = vmatprep.subr.bf16.mxu0 0
    %2457 = vmatpush1.bf16.msra.mxu0 0
    %2458 = vmatprep.subr.bf16.mxu0 0
    %2459 = vmatpush1.bf16.msra.mxu0 0
    %2460 = vmatprep.subr.bf16.mxu0 0
    %2461 = vmatpush1.bf16.msra.mxu0 0
    %2462 = vmatprep.subr.bf16.mxu0 0
    %2463 = vmatpush1.bf16.msra.mxu0 0
    %2464 = vmatprep.subr.bf16.mxu0 0
    %2465 = vmatpush1.bf16.msra.mxu0 0
    %2466 = vmatprep.subr.bf16.mxu0 0
    %2467 = vmatpush1.bf16.msra.mxu0 0
    %2468 = vmatprep.subr.bf16.mxu0 0
    %2469 = vmatpush1.bf16.msra.mxu0 0
    %2470 = vmatprep.subr.bf16.mxu0 0
    %2471 = vmatpush1.bf16.msra.mxu0 0
    %2472 = vmatprep.subr.bf16.mxu0 0
    %2473 = vmatpush1.bf16.msra.mxu0 0
    %2474 = vmatprep.subr.bf16.mxu0 0
    %2475 = vmatpush1.bf16.msra.mxu0 0
    %2476 = vmatprep.subr.bf16.mxu0 0
    %2477 = vmatpush1.bf16.msra.mxu0 0
    %2478 = vmatprep.subr.bf16.mxu0 0
    %2479 = vmatpush1.bf16.msra.mxu0 0
    %2480 = vmatprep.subr.bf16.mxu0 0
    %2481 = vmatpush1.bf16.msra.mxu0 0
    %2482 = vmatprep.mubr.bf16.mxu0 0
    %2483 = vmatmul.mubr.bf16.gmra.mrb[0].mxu0 %v2448
    %v2484 = vpop.f32.mrb[0].mxu0
    %v2485 = vadd.f32 0.0, %v2484
    %v2486 = vpop.f32.mrb[0].mxu0
    %v2487 = vpop.f32.mrb[0].mxu0
    %v2488 = vadd.f32 0.0, %v2487
    %v2489 = vpop.f32.mrb[0].mxu0
    %2490 = vdwg.mxu0
    %v2492 = vsel %vm2158, %v2342, 0
    %2494 = vmatprep.subr.bf16.mxu0 0
    %2495 = vmatpush1.bf16.msra.mxu0 %v2352
    %2496 = vmatprep.subr.bf16.mxu0 0
    %2497 = vmatpush1.bf16.msra.mxu0 0
    %2498 = vmatprep.subr.bf16.mxu0 0
    %2499 = vmatpush1.bf16.msra.mxu0 0
    %2500 = vmatprep.subr.bf16.mxu0 0
    %2501 = vmatpush1.bf16.msra.mxu0 0
    %2502 = vmatprep.subr.bf16.mxu0 0
    %2503 = vmatpush1.bf16.msra.mxu0 0
    %2504 = vmatprep.subr.bf16.mxu0 0
    %2505 = vmatpush1.bf16.msra.mxu0 0
    %2506 = vmatprep.subr.bf16.mxu0 0
    %2507 = vmatpush1.bf16.msra.mxu0 0
    %2508 = vmatprep.subr.bf16.mxu0 0
    %2509 = vmatpush1.bf16.msra.mxu0 0
    %2510 = vmatprep.subr.bf16.mxu0 0
    %2511 = vmatpush1.bf16.msra.mxu0 0
    %2512 = vmatprep.subr.bf16.mxu0 0
    %2513 = vmatpush1.bf16.msra.mxu0 0
    %2514 = vmatprep.subr.bf16.mxu0 0
    %2515 = vmatpush1.bf16.msra.mxu0 0
    %2516 = vmatprep.subr.bf16.mxu0 0
    %2517 = vmatpush1.bf16.msra.mxu0 0
    %2518 = vmatprep.subr.bf16.mxu0 0
    %2519 = vmatpush1.bf16.msra.mxu0 0
    %2520 = vmatprep.subr.bf16.mxu0 0
    %2521 = vmatpush1.bf16.msra.mxu0 0
    %2522 = vmatprep.subr.bf16.mxu0 0
    %2523 = vmatpush1.bf16.msra.mxu0 0
    %2524 = vmatprep.subr.bf16.mxu0 0
    %2525 = vmatpush1.bf16.msra.mxu0 0
    %2526 = vmatprep.mubr.bf16.mxu0 0
    %2527 = vmatmul.mubr.bf16.gmra.mrb[0].mxu0 %v2492
    %v2528 = vpop.f32.mrb[0].mxu0
    %v2529 = vadd.f32 0.0, %v2528
    %v2530 = vpop.f32.mrb[0].mxu0
    %v2531 = vpop.f32.mrb[0].mxu0
    %v2532 = vadd.f32 0.0, %v2531
    %v2533 = vpop.f32.mrb[0].mxu0
    %2534 = vdwg.mxu0
    %v2536 = vsel %vm2158, %v2343, 0
    %2538 = vmatprep.subr.bf16.mxu0 0
    %2539 = vmatpush1.bf16.msra.mxu0 %v2353
    %2540 = vmatprep.subr.bf16.mxu0 0
    %2541 = vmatpush1.bf16.msra.mxu0 0
    %2542 = vmatprep.subr.bf16.mxu0 0
    %2543 = vmatpush1.bf16.msra.mxu0 0
    %2544 = vmatprep.subr.bf16.mxu0 0
    %2545 = vmatpush1.bf16.msra.mxu0 0
    %2546 = vmatprep.subr.bf16.mxu0 0
    %2547 = vmatpush1.bf16.msra.mxu0 0
    %2548 = vmatprep.subr.bf16.mxu0 0
    %2549 = vmatpush1.bf16.msra.mxu0 0
    %2550 = vmatprep.subr.bf16.mxu0 0
    %2551 = vmatpush1.bf16.msra.mxu0 0
    %2552 = vmatprep.subr.bf16.mxu0 0
    %2553 = vmatpush1.bf16.msra.mxu0 0
    %2554 = vmatprep.subr.bf16.mxu0 0
    %2555 = vmatpush1.bf16.msra.mxu0 0
    %2556 = vmatprep.subr.bf16.mxu0 0
    %2557 = vmatpush1.bf16.msra.mxu0 0
    %2558 = vmatprep.subr.bf16.mxu0 0
    %2559 = vmatpush1.bf16.msra.mxu0 0
    %2560 = vmatprep.subr.bf16.mxu0 0
    %2561 = vmatpush1.bf16.msra.mxu0 0
    %2562 = vmatprep.subr.bf16.mxu0 0
    %2563 = vmatpush1.bf16.msra.mxu0 0
    %2564 = vmatprep.subr.bf16.mxu0 0
    %2565 = vmatpush1.bf16.msra.mxu0 0
    %2566 = vmatprep.subr.bf16.mxu0 0
    %2567 = vmatpush1.bf16.msra.mxu0 0
    %2568 = vmatprep.subr.bf16.mxu0 0
    %2569 = vmatpush1.bf16.msra.mxu0 0
    %2570 = vmatprep.mubr.bf16.mxu0 0
    %2571 = vmatmul.mubr.bf16.gmra.mrb[0].mxu0 %v2536
    %v2572 = vpop.f32.mrb[0].mxu0
    %v2573 = vadd.f32 0.0, %v2572
    %v2574 = vpop.f32.mrb[0].mxu0
    %v2575 = vpop.f32.mrb[0].mxu0
    %v2576 = vadd.f32 0.0, %v2575
    %v2577 = vpop.f32.mrb[0].mxu0
    %2578 = vdwg.mxu0
    %v2580 = vsel %vm2158, %v2344, 0
    %2582 = vmatprep.subr.bf16.mxu0 0
    %2583 = vmatpush1.bf16.msra.mxu0 %v2354
    %2584 = vmatprep.subr.bf16.mxu0 0
    %2585 = vmatpush1.bf16.msra.mxu0 0
    %2586 = vmatprep.subr.bf16.mxu0 0
    %2587 = vmatpush1.bf16.msra.mxu0 0
    %2588 = vmatprep.subr.bf16.mxu0 0
    %2589 = vmatpush1.bf16.msra.mxu0 0
    %2590 = vmatprep.subr.bf16.mxu0 0
    %2591 = vmatpush1.bf16.msra.mxu0 0
    %2592 = vmatprep.subr.bf16.mxu0 0
    %2593 = vmatpush1.bf16.msra.mxu0 0
    %2594 = vmatprep.subr.bf16.mxu0 0
    %2595 = vmatpush1.bf16.msra.mxu0 0
    %2596 = vmatprep.subr.bf16.mxu0 0
    %2597 = vmatpush1.bf16.msra.mxu0 0
    %2598 = vmatprep.subr.bf16.mxu0 0
    %2599 = vmatpush1.bf16.msra.mxu0 0
    %2600 = vmatprep.subr.bf16.mxu0 0
    %2601 = vmatpush1.bf16.msra.mxu0 0
    %2602 = vmatprep.subr.bf16.mxu0 0
    %2603 = vmatpush1.bf16.msra.mxu0 0
    %2604 = vmatprep.subr.bf16.mxu0 0
    %2605 = vmatpush1.bf16.msra.mxu0 0
    %2606 = vmatprep.subr.bf16.mxu0 0
    %2607 = vmatpush1.bf16.msra.mxu0 0
    %2608 = vmatprep.subr.bf16.mxu0 0
    %2609 = vmatpush1.bf16.msra.mxu0 0
    %2610 = vmatprep.subr.bf16.mxu0 0
    %2611 = vmatpush1.bf16.msra.mxu0 0
    %2612 = vmatprep.subr.bf16.mxu0 0
    %2613 = vmatpush1.bf16.msra.mxu0 0
    %2614 = vmatprep.mubr.bf16.mxu0 0
    %2615 = vmatmul.mubr.bf16.gmra.mrb[0].mxu0 %v2580
    %v2616 = vpop.f32.mrb[0].mxu0
    %v2617 = vadd.f32 0.0, %v2616
    %v2618 = vpop.f32.mrb[0].mxu0
    %v2619 = vpop.f32.mrb[0].mxu0
    %v2620 = vadd.f32 0.0, %v2619
    %v2621 = vpop.f32.mrb[0].mxu0
    %2622 = vdwg.mxu0
    %v2624 = vsel %vm2158, %v2345, 0
    %2626 = vmatprep.subr.bf16.mxu0 0
    %2627 = vmatpush1.bf16.msra.mxu0 %v2355
    %2628 = vmatprep.subr.bf16.mxu0 0
    %2629 = vmatpush1.bf16.msra.mxu0 0
    %2630 = vmatprep.subr.bf16.mxu0 0
    %2631 = vmatpush1.bf16.msra.mxu0 0
    %2632 = vmatprep.subr.bf16.mxu0 0
    %2633 = vmatpush1.bf16.msra.mxu0 0
    %2634 = vmatprep.subr.bf16.mxu0 0
    %2635 = vmatpush1.bf16.msra.mxu0 0
    %2636 = vmatprep.subr.bf16.mxu0 0
    %2637 = vmatpush1.bf16.msra.mxu0 0
    %2638 = vmatprep.subr.bf16.mxu0 0
    %2639 = vmatpush1.bf16.msra.mxu0 0
    %2640 = vmatprep.subr.bf16.mxu0 0
    %2641 = vmatpush1.bf16.msra.mxu0 0
    %2642 = vmatprep.subr.bf16.mxu0 0
    %2643 = vmatpush1.bf16.msra.mxu0 0
    %2644 = vmatprep.subr.bf16.mxu0 0
    %2645 = vmatpush1.bf16.msra.mxu0 0
    %2646 = vmatprep.subr.bf16.mxu0 0
    %2647 = vmatpush1.bf16.msra.mxu0 0
    %2648 = vmatprep.subr.bf16.mxu0 0
    %2649 = vmatpush1.bf16.msra.mxu0 0
    %2650 = vmatprep.subr.bf16.mxu0 0
    %2651 = vmatpush1.bf16.msra.mxu0 0
    %2652 = vmatprep.subr.bf16.mxu0 0
    %2653 = vmatpush1.bf16.msra.mxu0 0
    %2654 = vmatprep.subr.bf16.mxu0 0
    %2655 = vmatpush1.bf16.msra.mxu0 0
    %2656 = vmatprep.subr.bf16.mxu0 0
    %2657 = vmatpush1.bf16.msra.mxu0 0
    %2658 = vmatprep.mubr.bf16.mxu0 0
    %2659 = vmatmul.mubr.bf16.gmra.mrb[0].mxu0 %v2624
    %v2660 = vpop.f32.mrb[0].mxu0
    %v2661 = vadd.f32 0.0, %v2660
    %v2662 = vpop.f32.mrb[0].mxu0
    %v2663 = vpop.f32.mrb[0].mxu0
    %v2664 = vadd.f32 0.0, %v2663
    %v2665 = vpop.f32.mrb[0].mxu0
    %2666 = vdwg.mxu0
    %v2668 = vsel %vm2158, %v2346, 0
    %2670 = vmatprep.subr.bf16.mxu0 0
    %2671 = vmatpush1.bf16.msra.mxu0 %v2356
    %2672 = vmatprep.subr.bf16.mxu0 0
    %2673 = vmatpush1.bf16.msra.mxu0 0
    %2674 = vmatprep.subr.bf16.mxu0 0
    %2675 = vmatpush1.bf16.msra.mxu0 0
    %2676 = vmatprep.subr.bf16.mxu0 0
    %2677 = vmatpush1.bf16.msra.mxu0 0
    %2678 = vmatprep.subr.bf16.mxu0 0
    %2679 = vmatpush1.bf16.msra.mxu0 0
    %2680 = vmatprep.subr.bf16.mxu0 0
    %2681 = vmatpush1.bf16.msra.mxu0 0
    %2682 = vmatprep.subr.bf16.mxu0 0
    %2683 = vmatpush1.bf16.msra.mxu0 0
    %2684 = vmatprep.subr.bf16.mxu0 0
    %2685 = vmatpush1.bf16.msra.mxu0 0
    %2686 = vmatprep.subr.bf16.mxu0 0
    %2687 = vmatpush1.bf16.msra.mxu0 0
    %2688 = vmatprep.subr.bf16.mxu0 0
    %2689 = vmatpush1.bf16.msra.mxu0 0
    %2690 = vmatprep.subr.bf16.mxu0 0
    %2691 = vmatpush1.bf16.msra.mxu0 0
    %2692 = vmatprep.subr.bf16.mxu0 0
    %2693 = vmatpush1.bf16.msra.mxu0 0
    %2694 = vmatprep.subr.bf16.mxu0 0
    %2695 = vmatpush1.bf16.msra.mxu0 0
    %2696 = vmatprep.subr.bf16.mxu0 0
    %2697 = vmatpush1.bf16.msra.mxu0 0
    %2698 = vmatprep.subr.bf16.mxu0 0
    %2699 = vmatpush1.bf16.msra.mxu0 0
    %2700 = vmatprep.subr.bf16.mxu0 0
    %2701 = vmatpush1.bf16.msra.mxu0 0
    %2702 = vmatprep.mubr.bf16.mxu0 0
    %2703 = vmatmul.mubr.bf16.gmra.mrb[0].mxu0 %v2668
    %v2704 = vpop.f32.mrb[0].mxu0
    %v2705 = vadd.f32 0.0, %v2704
    %v2706 = vpop.f32.mrb[0].mxu0
    %v2707 = vpop.f32.mrb[0].mxu0
    %v2708 = vadd.f32 0.0, %v2707
    %v2709 = vpop.f32.mrb[0].mxu0
    %2710 = vdwg.mxu0
    %v2712 = vsel %vm2158, %v2347, 0
    %2714 = vmatprep.subr.bf16.mxu0 0
    %2715 = vmatpush1.bf16.msra.mxu0 %v2357
    %2716 = vmatprep.subr.bf16.mxu0 0
    %2717 = vmatpush1.bf16.msra.mxu0 0
    %2718 = vmatprep.subr.bf16.mxu0 0
    %2719 = vmatpush1.bf16.msra.mxu0 0
    %2720 = vmatprep.subr.bf16.mxu0 0
    %2721 = vmatpush1.bf16.msra.mxu0 0
    %2722 = vmatprep.subr.bf16.mxu0 0
    %2723 = vmatpush1.bf16.msra.mxu0 0
    %2724 = vmatprep.subr.bf16.mxu0 0
    %2725 = vmatpush1.bf16.msra.mxu0 0
    %2726 = vmatprep.subr.bf16.mxu0 0
    %2727 = vmatpush1.bf16.msra.mxu0 0
    %2728 = vmatprep.subr.bf16.mxu0 0
    %2729 = vmatpush1.bf16.msra.mxu0 0
    %2730 = vmatprep.subr.bf16.mxu0 0
    %2731 = vmatpush1.bf16.msra.mxu0 0
    %2732 = vmatprep.subr.bf16.mxu0 0
    %2733 = vmatpush1.bf16.msra.mxu0 0
    %2734 = vmatprep.subr.bf16.mxu0 0
    %2735 = vmatpush1.bf16.msra.mxu0 0
    %2736 = vmatprep.subr.bf16.mxu0 0
    %2737 = vmatpush1.bf16.msra.mxu0 0
    %2738 = vmatprep.subr.bf16.mxu0 0
    %2739 = vmatpush1.bf16.msra.mxu0 0
    %2740 = vmatprep.subr.bf16.mxu0 0
    %2741 = vmatpush1.bf16.msra.mxu0 0
    %2742 = vmatprep.subr.bf16.mxu0 0
    %2743 = vmatpush1.bf16.msra.mxu0 0
    %2744 = vmatprep.subr.bf16.mxu0 0
    %2745 = vmatpush1.bf16.msra.mxu0 0
    %2746 = vmatprep.mubr.bf16.mxu0 0
    %2747 = vmatmul.mubr.bf16.gmra.mrb[0].mxu0 %v2712
    %v2748 = vpop.f32.mrb[0].mxu0
    %v2749 = vadd.f32 0.0, %v2748
    %v2750 = vpop.f32.mrb[0].mxu0
    %v2751 = vpop.f32.mrb[0].mxu0
    %v2752 = vadd.f32 0.0, %v2751
    %v2753 = vpop.f32.mrb[0].mxu0
    %2754 = vdwg.mxu0
    %v2756 = vsel %vm2158, %v2348, 0
    %2758 = vmatprep.subr.bf16.mxu0 0
    %2759 = vmatpush1.bf16.msra.mxu0 %v2358
    %2760 = vmatprep.subr.bf16.mxu0 0
    %2761 = vmatpush1.bf16.msra.mxu0 0
    %2762 = vmatprep.subr.bf16.mxu0 0
    %2763 = vmatpush1.bf16.msra.mxu0 0
    %2764 = vmatprep.subr.bf16.mxu0 0
    %2765 = vmatpush1.bf16.msra.mxu0 0
    %2766 = vmatprep.subr.bf16.mxu0 0
    %2767 = vmatpush1.bf16.msra.mxu0 0
    %2768 = vmatprep.subr.bf16.mxu0 0
    %2769 = vmatpush1.bf16.msra.mxu0 0
    %2770 = vmatprep.subr.bf16.mxu0 0
    %2771 = vmatpush1.bf16.msra.mxu0 0
    %2772 = vmatprep.subr.bf16.mxu0 0
    %2773 = vmatpush1.bf16.msra.mxu0 0
    %2774 = vmatprep.subr.bf16.mxu0 0
    %2775 = vmatpush1.bf16.msra.mxu0 0
    %2776 = vmatprep.subr.bf16.mxu0 0
    %2777 = vmatpush1.bf16.msra.mxu0 0
    %2778 = vmatprep.subr.bf16.mxu0 0
    %2779 = vmatpush1.bf16.msra.mxu0 0
    %2780 = vmatprep.subr.bf16.mxu0 0
    %2781 = vmatpush1.bf16.msra.mxu0 0
    %2782 = vmatprep.subr.bf16.mxu0 0
    %2783 = vmatpush1.bf16.msra.mxu0 0
    %2784 = vmatprep.subr.bf16.mxu0 0
    %2785 = vmatpush1.bf16.msra.mxu0 0
    %2786 = vmatprep.subr.bf16.mxu0 0
    %2787 = vmatpush1.bf16.msra.mxu0 0
    %2788 = vmatprep.subr.bf16.mxu0 0
    %2789 = vmatpush1.bf16.msra.mxu0 0
    %2790 = vmatprep.mubr.bf16.mxu0 0
    %2791 = vmatmul.mubr.bf16.gmra.mrb[0].mxu0 %v2756
    %v2792 = vpop.f32.mrb[0].mxu0
    %v2793 = vadd.f32 0.0, %v2792
    %v2794 = vpop.f32.mrb[0].mxu0
    %v2795 = vpop.f32.mrb[0].mxu0
    %v2796 = vadd.f32 0.0, %v2795
    %v2797 = vpop.f32.mrb[0].mxu0
    %2798 = vdwg.mxu0
    %v2799 = vrcp.pop %v2281
    %v2800 = vrcp.pop %v2284
    %v2801 = vrcp.pop %v2287
    %v2802 = vrcp.pop %v2290
    %v2803 = vrcp.pop %v2293
    %v2804 = vrcp.pop %v2296
    %v2805 = vrcp.pop %v2299
    %v2806 = vrcp.pop %v2302
    %v2807 = vrcp.pop %v2305
    %v2808 = vrcp.pop %v2308
    %v2809 = vrcp.pop %v2311
    %v2810 = vrcp.pop %v2314
    %v2811 = vrcp.pop %v2317
    %v2812 = vrcp.pop %v2320
    %v2813 = vrcp.pop %v2323
    %v2814 = vrcp.pop %v2326
    %v2815 = vrcp.pop %v2329
    %v2816 = vrcp.pop %v2332
    %v2817 = vrcp.pop %v2335
    %v2818 = vrcp.pop %v2338
    %v2819 = vmul.f32 %v2397, %v2799
    %v2820 = vmul.f32 %v2400, %v2800
    %v2821 = vmul.f32 %v2441, %v2801
    %v2822 = vmul.f32 %v2444, %v2802
    %v2823 = vmul.f32 %v2485, %v2803
    %v2824 = vmul.f32 %v2488, %v2804
    %v2825 = vmul.f32 %v2529, %v2805
    %v2826 = vmul.f32 %v2532, %v2806
    %v2827 = vmul.f32 %v2573, %v2807
    %v2828 = vmul.f32 %v2576, %v2808
    %v2829 = vmul.f32 %v2617, %v2809
    %v2830 = vmul.f32 %v2620, %v2810
    %v2831 = vmul.f32 %v2661, %v2811
    %v2832 = vmul.f32 %v2664, %v2812
    %v2833 = vmul.f32 %v2705, %v2813
    %v2834 = vmul.f32 %v2708, %v2814
    %v2835 = vmul.f32 %v2749, %v2815
    %v2836 = vmul.f32 %v2752, %v2816
    %v2837 = vmul.f32 %v2793, %v2817
    %v2838 = vmul.f32 %v2796, %v2818
    %v2849 = vlaneseq
    %v2850 = vshrl.u32 %v2849, 7
    %v2851 = vsub.s32 0, %v2850
    %v2852 = vrot.slane %v828, %v2851
    %v2853 = vlaneseq
    %v2854 = vshrl.u32 %v2853, 7
    %v2855 = vsub.s32 0, %v2854
    %v2856 = vrot.slane %v829, %v2855
    %v2857 = vlaneseq
    %v2858 = vshrl.u32 %v2857, 7
    %v2859 = vsub.s32 0, %v2858
    %v2860 = vrot.slane %v830, %v2859
    %v2861 = vlaneseq
    %v2862 = vshrl.u32 %v2861, 7
    %v2863 = vsub.s32 0, %v2862
    %v2864 = vrot.slane %v831, %v2863
    %v2865 = vlaneseq
    %v2866 = vshrl.u32 %v2865, 7
    %v2867 = vsub.s32 0, %v2866
    %v2868 = vrot.slane %v832, %v2867
    %v2869 = vlaneseq
    %v2870 = vshrl.u32 %v2869, 7
    %v2871 = vsub.s32 0, %v2870
    %v2872 = vrot.slane %v833, %v2871
    %v2873 = vlaneseq
    %v2874 = vshrl.u32 %v2873, 7
    %v2875 = vsub.s32 0, %v2874
    %v2876 = vrot.slane %v834, %v2875
    %v2877 = vlaneseq
    %v2878 = vshrl.u32 %v2877, 7
    %v2879 = vsub.s32 0, %v2878
    %v2880 = vrot.slane %v835, %v2879
    %v2881 = vlaneseq
    %v2882 = vshrl.u32 %v2881, 7
    %v2883 = vsub.s32 0, %v2882
    %v2884 = vrot.slane %v836, %v2883
    %v2885 = vlaneseq
    %v2886 = vshrl.u32 %v2885, 7
    %v2887 = vsub.s32 0, %v2886
    %v2888 = vrot.slane %v837, %v2887
    %v2899 = vadd.f32 %v2819, %v2852
    %v2900 = vadd.f32 %v2820, %v2852
    %v2901 = vadd.f32 %v2821, %v2856
    %v2902 = vadd.f32 %v2822, %v2856
    %v2903 = vadd.f32 %v2823, %v2860
    %v2904 = vadd.f32 %v2824, %v2860
    %v2905 = vadd.f32 %v2825, %v2864
    %v2906 = vadd.f32 %v2826, %v2864
    %v2907 = vadd.f32 %v2827, %v2868
    %v2908 = vadd.f32 %v2828, %v2868
    %v2909 = vadd.f32 %v2829, %v2872
    %v2910 = vadd.f32 %v2830, %v2872
    %v2911 = vadd.f32 %v2831, %v2876
    %v2912 = vadd.f32 %v2832, %v2876
    %v2913 = vadd.f32 %v2833, %v2880
    %v2914 = vadd.f32 %v2834, %v2880
    %v2915 = vadd.f32 %v2835, %v2884
    %v2916 = vadd.f32 %v2836, %v2884
    %v2917 = vadd.f32 %v2837, %v2888
    %v2918 = vadd.f32 %v2838, %v2888
    %vm2919 = vcmp.gt.f32.partialorder %v2899, 0.0
    %vm2920 = vcmp.gt.f32.partialorder %v2900, 0.0
    %vm2921 = vcmp.gt.f32.partialorder %v2901, 0.0
    %vm2922 = vcmp.gt.f32.partialorder %v2902, 0.0
    %vm2923 = vcmp.gt.f32.partialorder %v2903, 0.0
    %vm2924 = vcmp.gt.f32.partialorder %v2904, 0.0
    %vm2925 = vcmp.gt.f32.partialorder %v2905, 0.0
    %vm2926 = vcmp.gt.f32.partialorder %v2906, 0.0
    %vm2927 = vcmp.gt.f32.partialorder %v2907, 0.0
    %vm2928 = vcmp.gt.f32.partialorder %v2908, 0.0
    %vm2929 = vcmp.gt.f32.partialorder %v2909, 0.0
    %vm2930 = vcmp.gt.f32.partialorder %v2910, 0.0
    %vm2931 = vcmp.gt.f32.partialorder %v2911, 0.0
    %vm2932 = vcmp.gt.f32.partialorder %v2912, 0.0
    %vm2933 = vcmp.gt.f32.partialorder %v2913, 0.0
    %vm2934 = vcmp.gt.f32.partialorder %v2914, 0.0
    %vm2935 = vcmp.gt.f32.partialorder %v2915, 0.0
    %vm2936 = vcmp.gt.f32.partialorder %v2916, 0.0
    %vm2937 = vcmp.gt.f32.partialorder %v2917, 0.0
    %vm2938 = vcmp.gt.f32.partialorder %v2918, 0.0
    %v2939 = vmin.f32 %v2899, 0.0
    %v2940 = vmin.f32 %v2900, 0.0
    %v2941 = vmin.f32 %v2901, 0.0
    %v2942 = vmin.f32 %v2902, 0.0
    %v2943 = vmin.f32 %v2903, 0.0
    %v2944 = vmin.f32 %v2904, 0.0
    %v2945 = vmin.f32 %v2905, 0.0
    %v2946 = vmin.f32 %v2906, 0.0
    %v2947 = vmin.f32 %v2907, 0.0
    %v2948 = vmin.f32 %v2908, 0.0
    %v2949 = vmin.f32 %v2909, 0.0
    %v2950 = vmin.f32 %v2910, 0.0
    %v2951 = vmin.f32 %v2911, 0.0
    %v2952 = vmin.f32 %v2912, 0.0
    %v2953 = vmin.f32 %v2913, 0.0
    %v2954 = vmin.f32 %v2914, 0.0
    %v2955 = vmin.f32 %v2915, 0.0
    %v2956 = vmin.f32 %v2916, 0.0
    %v2957 = vmin.f32 %v2917, 0.0
    %v2958 = vmin.f32 %v2918, 0.0
    %v2959 = vmul.f32 %v2939, 1.442695
    %v2960 = vpow.pop %v2959
    %v2961 = vmul.f32 %v2940, 1.442695
    %v2962 = vpow.pop %v2961
    %v2963 = vmul.f32 %v2941, 1.442695
    %v2964 = vpow.pop %v2963
    %v2965 = vmul.f32 %v2942, 1.442695
    %v2966 = vpow.pop %v2965
    %v2967 = vmul.f32 %v2943, 1.442695
    %v2968 = vpow.pop %v2967
    %v2969 = vmul.f32 %v2944, 1.442695
    %v2970 = vpow.pop %v2969
    %v2971 = vmul.f32 %v2945, 1.442695
    %v2972 = vpow.pop %v2971
    %v2973 = vmul.f32 %v2946, 1.442695
    %v2974 = vpow.pop %v2973
    %v2975 = vmul.f32 %v2947, 1.442695
    %v2976 = vpow.pop %v2975
    %v2977 = vmul.f32 %v2948, 1.442695
    %v2978 = vpow.pop %v2977
    %v2979 = vmul.f32 %v2949, 1.442695
    %v2980 = vpow.pop %v2979
    %v2981 = vmul.f32 %v2950, 1.442695
    %v2982 = vpow.pop %v2981
    %v2983 = vmul.f32 %v2951, 1.442695
    %v2984 = vpow.pop %v2983
    %v2985 = vmul.f32 %v2952, 1.442695
    %v2986 = vpow.pop %v2985
    %v2987 = vmul.f32 %v2953, 1.442695
    %v2988 = vpow.pop %v2987
    %v2989 = vmul.f32 %v2954, 1.442695
    %v2990 = vpow.pop %v2989
    %v2991 = vmul.f32 %v2955, 1.442695
    %v2992 = vpow.pop %v2991
    %v2993 = vmul.f32 %v2956, 1.442695
    %v2994 = vpow.pop %v2993
    %v2995 = vmul.f32 %v2957, 1.442695
    %v2996 = vpow.pop %v2995
    %v2997 = vmul.f32 %v2958, 1.442695
    %v2998 = vpow.pop %v2997
    %v2999 = vsub.f32 %v2960, 1.0
    %v3000 = vsub.f32 %v2962, 1.0
    %v3001 = vsub.f32 %v2964, 1.0
    %v3002 = vsub.f32 %v2966, 1.0
    %v3003 = vsub.f32 %v2968, 1.0
    %v3004 = vsub.f32 %v2970, 1.0
    %v3005 = vsub.f32 %v2972, 1.0
    %v3006 = vsub.f32 %v2974, 1.0
    %v3007 = vsub.f32 %v2976, 1.0
    %v3008 = vsub.f32 %v2978, 1.0
    %v3009 = vsub.f32 %v2980, 1.0
    %v3010 = vsub.f32 %v2982, 1.0
    %v3011 = vsub.f32 %v2984, 1.0
    %v3012 = vsub.f32 %v2986, 1.0
    %v3013 = vsub.f32 %v2988, 1.0
    %v3014 = vsub.f32 %v2990, 1.0
    %v3015 = vsub.f32 %v2992, 1.0
    %v3016 = vsub.f32 %v2994, 1.0
    %v3017 = vsub.f32 %v2996, 1.0
    %v3018 = vsub.f32 %v2998, 1.0
    %v3019 = vsel %vm2919, %v2899, %v2999
    %v3020 = vsel %vm2920, %v2900, %v3000
    %v3021 = vsel %vm2921, %v2901, %v3001
    %v3022 = vsel %vm2922, %v2902, %v3002
    %v3023 = vsel %vm2923, %v2903, %v3003
    %v3024 = vsel %vm2924, %v2904, %v3004
    %v3025 = vsel %vm2925, %v2905, %v3005
    %v3026 = vsel %vm2926, %v2906, %v3006
    %v3027 = vsel %vm2927, %v2907, %v3007
    %v3028 = vsel %vm2928, %v2908, %v3008
    %v3029 = vsel %vm2929, %v2909, %v3009
    %v3030 = vsel %vm2930, %v2910, %v3010
    %v3031 = vsel %vm2931, %v2911, %v3011
    %v3032 = vsel %vm2932, %v2912, %v3012
    %v3033 = vsel %vm2933, %v2913, %v3013
    %v3034 = vsel %vm2934, %v2914, %v3014
    %v3035 = vsel %vm2935, %v2915, %v3015
    %v3036 = vsel %vm2936, %v2916, %v3016
    %v3037 = vsel %vm2937, %v2917, %v3017
    %v3038 = vsel %vm2938, %v2918, %v3018
    %v3039 = vpack.c.bf16 %v3020, %v3019
    %v3040 = vpack.c.bf16 %v3022, %v3021
    %v3041 = vpack.c.bf16 %v3024, %v3023
    %v3042 = vpack.c.bf16 %v3026, %v3025
    %v3043 = vpack.c.bf16 %v3028, %v3027
    %v3044 = vpack.c.bf16 %v3030, %v3029
    %v3045 = vpack.c.bf16 %v3032, %v3031
    %v3046 = vpack.c.bf16 %v3034, %v3033
    %v3047 = vpack.c.bf16 %v3036, %v3035
    %v3048 = vpack.c.bf16 %v3038, %v3037
    %v3049 = vld [vmem:[#allocation8] sm:$0xf]
    %v3050 = vld [vmem:[#allocation8 + $0x4] sm:$0xf]
    %v3051 = vld [vmem:[#allocation8 + $0x8] sm:$0xf]
    %v3052 = vld [vmem:[#allocation8 + $0xc] sm:$0xf]
    %v3053 = vld [vmem:[#allocation8 + $0x10] sm:$0xf]
    %v3054 = vld [vmem:[#allocation8 + $0x14] sm:$0xf]
    %v3055 = vld [vmem:[#allocation8 + $0x18] sm:$0xf]
    %v3056 = vld [vmem:[#allocation8 + $0x1c] sm:$0xf]
    %v3057 = vld [vmem:[#allocation8 + $0x20] sm:$0xf]
    %v3058 = vld [vmem:[#allocation8 + $0x24] sm:$0xf]
    %v3059 = vld [vmem:[#allocation8 + $0x28] sm:$0xf]
    %v3060 = vld [vmem:[#allocation8 + $0x2c] sm:$0xf]
    %v3061 = vld [vmem:[#allocation8 + $0x30] sm:$0xf]
    %v3062 = vld [vmem:[#allocation8 + $0x34] sm:$0xf]
    %v3063 = vld [vmem:[#allocation8 + $0x38] sm:$0xf]
    %v3064 = vld [vmem:[#allocation8 + $0x3c] sm:$0xf]
    %v3065 = vld [vmem:[#allocation8 + $0x40] sm:$0xf]
    %v3066 = vld [vmem:[#allocation8 + $0x44] sm:$0xf]
    %v3067 = vld [vmem:[#allocation8 + $0x48] sm:$0xf]
    %v3068 = vld [vmem:[#allocation8 + $0x4c] sm:$0xf]
    %v3069 = vld [vmem:[#allocation8 + $0x50] sm:$0xf]
    %v3070 = vld [vmem:[#allocation8 + $0x54] sm:$0xf]
    %v3071 = vld [vmem:[#allocation8 + $0x58] sm:$0xf]
    %v3072 = vld [vmem:[#allocation8 + $0x5c] sm:$0xf]
    %v3073 = vld [vmem:[#allocation8 + $0x60] sm:$0xf]
    %v3074 = vld [vmem:[#allocation8 + $0x64] sm:$0xf]
    %v3075 = vld [vmem:[#allocation8 + $0x68] sm:$0xf]
    %v3076 = vld [vmem:[#allocation8 + $0x6c] sm:$0xf]
    %v3077 = vld [vmem:[#allocation8 + $0x70] sm:$0xf]
    %v3078 = vld [vmem:[#allocation8 + $0x74] sm:$0xf]
    %v3079 = vld [vmem:[#allocation8 + $0x78] sm:$0xf]
    %v3080 = vld [vmem:[#allocation8 + $0x7c] sm:$0xf]
    %v3081 = vld [vmem:[#allocation8 + $0x80] sm:$0xf]
    %v3082 = vld [vmem:[#allocation8 + $0x84] sm:$0xf]
    %v3083 = vld [vmem:[#allocation8 + $0x88] sm:$0xf]
    %v3084 = vld [vmem:[#allocation8 + $0x8c] sm:$0xf]
    %v3085 = vld [vmem:[#allocation8 + $0x90] sm:$0xf]
    %v3086 = vld [vmem:[#allocation8 + $0x94] sm:$0xf]
    %v3087 = vld [vmem:[#allocation8 + $0x98] sm:$0xf]
    %v3088 = vld [vmem:[#allocation8 + $0x9c] sm:$0xf]
    %v3089 = vld [vmem:[#allocation8 + $0xa0] sm:$0xf]
    %v3090 = vld [vmem:[#allocation8 + $0xa4] sm:$0xf]
    %v3091 = vld [vmem:[#allocation8 + $0xa8] sm:$0xf]
    %v3092 = vld [vmem:[#allocation8 + $0xac] sm:$0xf]
    %v3093 = vld [vmem:[#allocation8 + $0xb0] sm:$0xf]
    %v3094 = vld [vmem:[#allocation8 + $0xb4] sm:$0xf]
    %v3095 = vld [vmem:[#allocation8 + $0xb8] sm:$0xf]
    %v3096 = vld [vmem:[#allocation8 + $0xbc] sm:$0xf]
    %v3097 = vld [vmem:[#allocation8 + $0xc0] sm:$0xf]
    %v3098 = vld [vmem:[#allocation8 + $0xc4] sm:$0xf]
    %v3099 = vld [vmem:[#allocation8 + $0xc8] sm:$0xf]
    %v3100 = vld [vmem:[#allocation8 + $0xcc] sm:$0xf]
    %v3101 = vld [vmem:[#allocation8 + $0xd0] sm:$0xf]
    %v3102 = vld [vmem:[#allocation8 + $0xd4] sm:$0xf]
    %v3103 = vld [vmem:[#allocation8 + $0xd8] sm:$0xf]
    %v3104 = vld [vmem:[#allocation8 + $0xdc] sm:$0xf]
    %v3105 = vld [vmem:[#allocation8 + $0xe0] sm:$0xf]
    %v3106 = vld [vmem:[#allocation8 + $0xe4] sm:$0xf]
    %v3107 = vld [vmem:[#allocation8 + $0xe8] sm:$0xf]
    %v3108 = vld [vmem:[#allocation8 + $0xec] sm:$0xf]
    %v3109 = vld [vmem:[#allocation8 + $0xf0] sm:$0xf]
    %v3110 = vld [vmem:[#allocation8 + $0xf4] sm:$0xf]
    %v3111 = vld [vmem:[#allocation8 + $0xf8] sm:$0xf]
    %v3112 = vld [vmem:[#allocation8 + $0xfc] sm:$0xf]
    %v3113 = vld [vmem:[#allocation8 + $0x100] sm:$0xf]
    %v3114 = vld [vmem:[#allocation8 + $0x104] sm:$0xf]
    %v3115 = vld [vmem:[#allocation8 + $0x108] sm:$0xf]
    %v3116 = vld [vmem:[#allocation8 + $0x10c] sm:$0xf]
    %v3117 = vld [vmem:[#allocation8 + $0x110] sm:$0xf]
    %v3118 = vld [vmem:[#allocation8 + $0x114] sm:$0xf]
    %v3119 = vld [vmem:[#allocation8 + $0x118] sm:$0xf]
    %v3120 = vld [vmem:[#allocation8 + $0x11c] sm:$0xf]
    %v3121 = vld [vmem:[#allocation8 + $0x120] sm:$0xf]
    %v3122 = vld [vmem:[#allocation8 + $0x124] sm:$0xf]
    %v3123 = vld [vmem:[#allocation8 + $0x128] sm:$0xf]
    %v3124 = vld [vmem:[#allocation8 + $0x12c] sm:$0xf]
    %v3125 = vld [vmem:[#allocation8 + $0x130] sm:$0xf]
    %v3126 = vld [vmem:[#allocation8 + $0x134] sm:$0xf]
    %v3127 = vld [vmem:[#allocation8 + $0x138] sm:$0xf]
    %v3128 = vld [vmem:[#allocation8 + $0x13c] sm:$0xf]
    %v3129 = vld [vmem:[#allocation8 + $0x140] sm:$0xf]
    %v3130 = vld [vmem:[#allocation8 + $0x144] sm:$0xf]
    %v3131 = vld [vmem:[#allocation8 + $0x148] sm:$0xf]
    %v3132 = vld [vmem:[#allocation8 + $0x14c] sm:$0xf]
    %v3133 = vld [vmem:[#allocation8 + $0x150] sm:$0xf]
    %v3134 = vld [vmem:[#allocation8 + $0x154] sm:$0xf]
    %v3135 = vld [vmem:[#allocation8 + $0x158] sm:$0xf]
    %v3136 = vld [vmem:[#allocation8 + $0x15c] sm:$0xf]
    %v3137 = vld [vmem:[#allocation8 + $0x160] sm:$0xf]
    %v3138 = vld [vmem:[#allocation8 + $0x164] sm:$0xf]
    %v3139 = vld [vmem:[#allocation8 + $0x168] sm:$0xf]
    %v3140 = vld [vmem:[#allocation8 + $0x16c] sm:$0xf]
    %v3141 = vld [vmem:[#allocation8 + $0x170] sm:$0xf]
    %v3142 = vld [vmem:[#allocation8 + $0x174] sm:$0xf]
    %v3143 = vld [vmem:[#allocation8 + $0x178] sm:$0xf]
    %v3144 = vld [vmem:[#allocation8 + $0x17c] sm:$0xf]
    %v3145 = vld [vmem:[#allocation8 + $0x180] sm:$0xf]
    %v3146 = vld [vmem:[#allocation8 + $0x184] sm:$0xf]
    %v3147 = vld [vmem:[#allocation8 + $0x188] sm:$0xf]
    %v3148 = vld [vmem:[#allocation8 + $0x18c] sm:$0xf]
    %v3149 = vld [vmem:[#allocation8 + $0x190] sm:$0xf]
    %v3150 = vld [vmem:[#allocation8 + $0x194] sm:$0xf]
    %v3151 = vld [vmem:[#allocation8 + $0x198] sm:$0xf]
    %v3152 = vld [vmem:[#allocation8 + $0x19c] sm:$0xf]
    %v3153 = vld [vmem:[#allocation8 + $0x1a0] sm:$0xf]
    %v3154 = vld [vmem:[#allocation8 + $0x1a4] sm:$0xf]
    %v3155 = vld [vmem:[#allocation8 + $0x1a8] sm:$0xf]
    %v3156 = vld [vmem:[#allocation8 + $0x1ac] sm:$0xf]
    %v3157 = vld [vmem:[#allocation8 + $0x1b0] sm:$0xf]
    %v3158 = vld [vmem:[#allocation8 + $0x1b4] sm:$0xf]
    %v3159 = vld [vmem:[#allocation8 + $0x1b8] sm:$0xf]
    %v3160 = vld [vmem:[#allocation8 + $0x1bc] sm:$0xf]
    %v3161 = vld [vmem:[#allocation8 + $0x1c0] sm:$0xf]
    %v3162 = vld [vmem:[#allocation8 + $0x1c4] sm:$0xf]
    %v3163 = vld [vmem:[#allocation8 + $0x1c8] sm:$0xf]
    %v3164 = vld [vmem:[#allocation8 + $0x1cc] sm:$0xf]
    %v3165 = vld [vmem:[#allocation8 + $0x1d0] sm:$0xf]
    %v3166 = vld [vmem:[#allocation8 + $0x1d4] sm:$0xf]
    %v3167 = vld [vmem:[#allocation8 + $0x1d8] sm:$0xf]
    %v3168 = vld [vmem:[#allocation8 + $0x1dc] sm:$0xf]
    %v3169 = vld [vmem:[#allocation8 + $0x1e0] sm:$0xf]
    %v3170 = vld [vmem:[#allocation8 + $0x1e4] sm:$0xf]
    %v3171 = vld [vmem:[#allocation8 + $0x1e8] sm:$0xf]
    %v3172 = vld [vmem:[#allocation8 + $0x1ec] sm:$0xf]
    %v3173 = vld [vmem:[#allocation8 + $0x1f0] sm:$0xf]
    %v3174 = vld [vmem:[#allocation8 + $0x1f4] sm:$0xf]
    %v3175 = vld [vmem:[#allocation8 + $0x1f8] sm:$0xf]
    %v3176 = vld [vmem:[#allocation8 + $0x1fc] sm:$0xf]
    %v3177 = vld [vmem:[#allocation8 + $0x200] sm:$0xf]
    %v3178 = vld [vmem:[#allocation8 + $0x204] sm:$0xf]
    %v3179 = vld [vmem:[#allocation8 + $0x208] sm:$0xf]
    %v3180 = vld [vmem:[#allocation8 + $0x20c] sm:$0xf]
    %v3181 = vld [vmem:[#allocation8 + $0x210] sm:$0xf]
    %v3182 = vld [vmem:[#allocation8 + $0x214] sm:$0xf]
    %v3183 = vld [vmem:[#allocation8 + $0x218] sm:$0xf]
    %v3184 = vld [vmem:[#allocation8 + $0x21c] sm:$0xf]
    %v3185 = vld [vmem:[#allocation8 + $0x220] sm:$0xf]
    %v3186 = vld [vmem:[#allocation8 + $0x224] sm:$0xf]
    %v3187 = vld [vmem:[#allocation8 + $0x228] sm:$0xf]
    %v3188 = vld [vmem:[#allocation8 + $0x22c] sm:$0xf]
    %v3189 = vld [vmem:[#allocation8 + $0x230] sm:$0xf]
    %v3190 = vld [vmem:[#allocation8 + $0x234] sm:$0xf]
    %v3191 = vld [vmem:[#allocation8 + $0x238] sm:$0xf]
    %v3192 = vld [vmem:[#allocation8 + $0x23c] sm:$0xf]
    %v3193 = vld [vmem:[#allocation8 + $0x240] sm:$0xf]
    %v3194 = vld [vmem:[#allocation8 + $0x244] sm:$0xf]
    %v3195 = vld [vmem:[#allocation8 + $0x248] sm:$0xf]
    %v3196 = vld [vmem:[#allocation8 + $0x24c] sm:$0xf]
    %v3197 = vld [vmem:[#allocation8 + $0x250] sm:$0xf]
    %v3198 = vld [vmem:[#allocation8 + $0x254] sm:$0xf]
    %v3199 = vld [vmem:[#allocation8 + $0x258] sm:$0xf]
    %v3200 = vld [vmem:[#allocation8 + $0x25c] sm:$0xf]
    %v3201 = vld [vmem:[#allocation8 + $0x260] sm:$0xf]
    %v3202 = vld [vmem:[#allocation8 + $0x264] sm:$0xf]
    %v3203 = vld [vmem:[#allocation8 + $0x268] sm:$0xf]
    %v3204 = vld [vmem:[#allocation8 + $0x26c] sm:$0xf]
    %v3205 = vld [vmem:[#allocation8 + $0x270] sm:$0xf]
    %v3206 = vld [vmem:[#allocation8 + $0x274] sm:$0xf]
    %v3207 = vld [vmem:[#allocation8 + $0x278] sm:$0xf]
    %v3208 = vld [vmem:[#allocation8 + $0x27c] sm:$0xf]
    %v3369 = vunpack.c.l.b16 %v3049
    %v3370 = vunpack.c.l.b16 %v3050
    %v3371 = vunpack.c.l.b16 %v3051
    %v3372 = vunpack.c.l.b16 %v3052
    %v3373 = vunpack.c.l.b16 %v3053
    %v3374 = vunpack.c.l.b16 %v3054
    %v3375 = vunpack.c.l.b16 %v3055
    %v3376 = vunpack.c.l.b16 %v3056
    %v3377 = vunpack.c.l.b16 %v3057
    %v3378 = vunpack.c.l.b16 %v3058
    %v3379 = vunpack.c.l.b16 %v3059
    %v3380 = vunpack.c.l.b16 %v3060
    %v3381 = vunpack.c.l.b16 %v3061
    %v3382 = vunpack.c.l.b16 %v3062
    %v3383 = vunpack.c.l.b16 %v3063
    %v3384 = vunpack.c.l.b16 %v3064
    %v3385 = vunpack.c.l.b16 %v3065
    %v3386 = vunpack.c.l.b16 %v3066
    %v3387 = vunpack.c.l.b16 %v3067
    %v3388 = vunpack.c.l.b16 %v3068
    %v3389 = vunpack.c.l.b16 %v3069
    %v3390 = vunpack.c.l.b16 %v3070
    %v3391 = vunpack.c.l.b16 %v3071
    %v3392 = vunpack.c.l.b16 %v3072
    %v3393 = vunpack.c.l.b16 %v3073
    %v3394 = vunpack.c.l.b16 %v3074
    %v3395 = vunpack.c.l.b16 %v3075
    %v3396 = vunpack.c.l.b16 %v3076
    %v3397 = vunpack.c.l.b16 %v3077
    %v3398 = vunpack.c.l.b16 %v3078
    %v3399 = vunpack.c.l.b16 %v3079
    %v3400 = vunpack.c.l.b16 %v3080
    %v3401 = vunpack.c.l.b16 %v3081
    %v3402 = vunpack.c.l.b16 %v3082
    %v3403 = vunpack.c.l.b16 %v3083
    %v3404 = vunpack.c.l.b16 %v3084
    %v3405 = vunpack.c.l.b16 %v3085
    %v3406 = vunpack.c.l.b16 %v3086
    %v3407 = vunpack.c.l.b16 %v3087
    %v3408 = vunpack.c.l.b16 %v3088
    %v3409 = vunpack.c.l.b16 %v3089
    %v3410 = vunpack.c.l.b16 %v3090
    %v3411 = vunpack.c.l.b16 %v3091
    %v3412 = vunpack.c.l.b16 %v3092
    %v3413 = vunpack.c.l.b16 %v3093
    %v3414 = vunpack.c.l.b16 %v3094
    %v3415 = vunpack.c.l.b16 %v3095
    %v3416 = vunpack.c.l.b16 %v3096
    %v3417 = vunpack.c.l.b16 %v3097
    %v3418 = vunpack.c.l.b16 %v3098
    %v3419 = vunpack.c.l.b16 %v3099
    %v3420 = vunpack.c.l.b16 %v3100
    %v3421 = vunpack.c.l.b16 %v3101
    %v3422 = vunpack.c.l.b16 %v3102
    %v3423 = vunpack.c.l.b16 %v3103
    %v3424 = vunpack.c.l.b16 %v3104
    %v3425 = vunpack.c.l.b16 %v3105
    %v3426 = vunpack.c.l.b16 %v3106
    %v3427 = vunpack.c.l.b16 %v3107
    %v3428 = vunpack.c.l.b16 %v3108
    %v3429 = vunpack.c.l.b16 %v3109
    %v3430 = vunpack.c.l.b16 %v3110
    %v3431 = vunpack.c.l.b16 %v3111
    %v3432 = vunpack.c.l.b16 %v3112
    %v3433 = vunpack.c.l.b16 %v3113
    %v3434 = vunpack.c.l.b16 %v3114
    %v3435 = vunpack.c.l.b16 %v3115
    %v3436 = vunpack.c.l.b16 %v3116
    %v3437 = vunpack.c.l.b16 %v3117
    %v3438 = vunpack.c.l.b16 %v3118
    %v3439 = vunpack.c.l.b16 %v3119
    %v3440 = vunpack.c.l.b16 %v3120
    %v3441 = vunpack.c.l.b16 %v3121
    %v3442 = vunpack.c.l.b16 %v3122
    %v3443 = vunpack.c.l.b16 %v3123
    %v3444 = vunpack.c.l.b16 %v3124
    %v3445 = vunpack.c.l.b16 %v3125
    %v3446 = vunpack.c.l.b16 %v3126
    %v3447 = vunpack.c.l.b16 %v3127
    %v3448 = vunpack.c.l.b16 %v3128
    %v3449 = vunpack.c.l.b16 %v3129
    %v3450 = vunpack.c.l.b16 %v3130
    %v3451 = vunpack.c.l.b16 %v3131
    %v3452 = vunpack.c.l.b16 %v3132
    %v3453 = vunpack.c.l.b16 %v3133
    %v3454 = vunpack.c.l.b16 %v3134
    %v3455 = vunpack.c.l.b16 %v3135
    %v3456 = vunpack.c.l.b16 %v3136
    %v3457 = vunpack.c.l.b16 %v3137
    %v3458 = vunpack.c.l.b16 %v3138
    %v3459 = vunpack.c.l.b16 %v3139
    %v3460 = vunpack.c.l.b16 %v3140
    %v3461 = vunpack.c.l.b16 %v3141
    %v3462 = vunpack.c.l.b16 %v3142
    %v3463 = vunpack.c.l.b16 %v3143
    %v3464 = vunpack.c.l.b16 %v3144
    %v3465 = vunpack.c.l.b16 %v3145
    %v3466 = vunpack.c.l.b16 %v3146
    %v3467 = vunpack.c.l.b16 %v3147
    %v3468 = vunpack.c.l.b16 %v3148
    %v3469 = vunpack.c.l.b16 %v3149
    %v3470 = vunpack.c.l.b16 %v3150
    %v3471 = vunpack.c.l.b16 %v3151
    %v3472 = vunpack.c.l.b16 %v3152
    %v3473 = vunpack.c.l.b16 %v3153
    %v3474 = vunpack.c.l.b16 %v3154
    %v3475 = vunpack.c.l.b16 %v3155
    %v3476 = vunpack.c.l.b16 %v3156
    %v3477 = vunpack.c.l.b16 %v3157
    %v3478 = vunpack.c.l.b16 %v3158
    %v3479 = vunpack.c.l.b16 %v3159
    %v3480 = vunpack.c.l.b16 %v3160
    %v3481 = vunpack.c.l.b16 %v3161
    %v3482 = vunpack.c.l.b16 %v3162
    %v3483 = vunpack.c.l.b16 %v3163
    %v3484 = vunpack.c.l.b16 %v3164
    %v3485 = vunpack.c.l.b16 %v3165
    %v3486 = vunpack.c.l.b16 %v3166
    %v3487 = vunpack.c.l.b16 %v3167
    %v3488 = vunpack.c.l.b16 %v3168
    %v3489 = vunpack.c.l.b16 %v3169
    %v3490 = vunpack.c.l.b16 %v3170
    %v3491 = vunpack.c.l.b16 %v3171
    %v3492 = vunpack.c.l.b16 %v3172
    %v3493 = vunpack.c.l.b16 %v3173
    %v3494 = vunpack.c.l.b16 %v3174
    %v3495 = vunpack.c.l.b16 %v3175
    %v3496 = vunpack.c.l.b16 %v3176
    %v3497 = vunpack.c.l.b16 %v3177
    %v3498 = vunpack.c.l.b16 %v3178
    %v3499 = vunpack.c.l.b16 %v3179
    %v3500 = vunpack.c.l.b16 %v3180
    %v3501 = vunpack.c.l.b16 %v3181
    %v3502 = vunpack.c.l.b16 %v3182
    %v3503 = vunpack.c.l.b16 %v3183
    %v3504 = vunpack.c.l.b16 %v3184
    %v3505 = vunpack.c.l.b16 %v3185
    %v3506 = vunpack.c.l.b16 %v3186
    %v3507 = vunpack.c.l.b16 %v3187
    %v3508 = vunpack.c.l.b16 %v3188
    %v3509 = vunpack.c.l.b16 %v3189
    %v3510 = vunpack.c.l.b16 %v3190
    %v3511 = vunpack.c.l.b16 %v3191
    %v3512 = vunpack.c.l.b16 %v3192
    %v3513 = vunpack.c.l.b16 %v3193
    %v3514 = vunpack.c.l.b16 %v3194
    %v3515 = vunpack.c.l.b16 %v3195
    %v3516 = vunpack.c.l.b16 %v3196
    %v3517 = vunpack.c.l.b16 %v3197
    %v3518 = vunpack.c.l.b16 %v3198
    %v3519 = vunpack.c.l.b16 %v3199
    %v3520 = vunpack.c.l.b16 %v3200
    %v3521 = vunpack.c.l.b16 %v3201
    %v3522 = vunpack.c.l.b16 %v3202
    %v3523 = vunpack.c.l.b16 %v3203
    %v3524 = vunpack.c.l.b16 %v3204
    %v3525 = vunpack.c.l.b16 %v3205
    %v3526 = vunpack.c.l.b16 %v3206
    %v3527 = vunpack.c.l.b16 %v3207
    %v3528 = vunpack.c.l.b16 %v3208
    %v3529 = vpack.c.b16 %v3370, %v3369
    %v3530 = vpack.c.b16 %v3372, %v3371
    %v3531 = vpack.c.b16 %v3374, %v3373
    %v3532 = vpack.c.b16 %v3376, %v3375
    %v3533 = vpack.c.b16 %v3378, %v3377
    %v3534 = vpack.c.b16 %v3380, %v3379
    %v3535 = vpack.c.b16 %v3382, %v3381
    %v3536 = vpack.c.b16 %v3384, %v3383
    %v3537 = vpack.c.b16 %v3386, %v3385
    %v3538 = vpack.c.b16 %v3388, %v3387
    %v3539 = vpack.c.b16 %v3390, %v3389
    %v3540 = vpack.c.b16 %v3392, %v3391
    %v3541 = vpack.c.b16 %v3394, %v3393
    %v3542 = vpack.c.b16 %v3396, %v3395
    %v3543 = vpack.c.b16 %v3398, %v3397
    %v3544 = vpack.c.b16 %v3400, %v3399
    %v3545 = vpack.c.b16 %v3402, %v3401
    %v3546 = vpack.c.b16 %v3404, %v3403
    %v3547 = vpack.c.b16 %v3406, %v3405
    %v3548 = vpack.c.b16 %v3408, %v3407
    %v3549 = vpack.c.b16 %v3410, %v3409
    %v3550 = vpack.c.b16 %v3412, %v3411
    %v3551 = vpack.c.b16 %v3414, %v3413
    %v3552 = vpack.c.b16 %v3416, %v3415
    %v3553 = vpack.c.b16 %v3418, %v3417
    %v3554 = vpack.c.b16 %v3420, %v3419
    %v3555 = vpack.c.b16 %v3422, %v3421
    %v3556 = vpack.c.b16 %v3424, %v3423
    %v3557 = vpack.c.b16 %v3426, %v3425
    %v3558 = vpack.c.b16 %v3428, %v3427
    %v3559 = vpack.c.b16 %v3430, %v3429
    %v3560 = vpack.c.b16 %v3432, %v3431
    %v3561 = vpack.c.b16 %v3434, %v3433
    %v3562 = vpack.c.b16 %v3436, %v3435
    %v3563 = vpack.c.b16 %v3438, %v3437
    %v3564 = vpack.c.b16 %v3440, %v3439
    %v3565 = vpack.c.b16 %v3442, %v3441
    %v3566 = vpack.c.b16 %v3444, %v3443
    %v3567 = vpack.c.b16 %v3446, %v3445
    %v3568 = vpack.c.b16 %v3448, %v3447
    %v3569 = vpack.c.b16 %v3450, %v3449
    %v3570 = vpack.c.b16 %v3452, %v3451
    %v3571 = vpack.c.b16 %v3454, %v3453
    %v3572 = vpack.c.b16 %v3456, %v3455
    %v3573 = vpack.c.b16 %v3458, %v3457
    %v3574 = vpack.c.b16 %v3460, %v3459
    %v3575 = vpack.c.b16 %v3462, %v3461
    %v3576 = vpack.c.b16 %v3464, %v3463
    %v3577 = vpack.c.b16 %v3466, %v3465
    %v3578 = vpack.c.b16 %v3468, %v3467
    %v3579 = vpack.c.b16 %v3470, %v3469
    %v3580 = vpack.c.b16 %v3472, %v3471
    %v3581 = vpack.c.b16 %v3474, %v3473
    %v3582 = vpack.c.b16 %v3476, %v3475
    %v3583 = vpack.c.b16 %v3478, %v3477
    %v3584 = vpack.c.b16 %v3480, %v3479
    %v3585 = vpack.c.b16 %v3482, %v3481
    %v3586 = vpack.c.b16 %v3484, %v3483
    %v3587 = vpack.c.b16 %v3486, %v3485
    %v3588 = vpack.c.b16 %v3488, %v3487
    %v3589 = vpack.c.b16 %v3490, %v3489
    %v3590 = vpack.c.b16 %v3492, %v3491
    %v3591 = vpack.c.b16 %v3494, %v3493
    %v3592 = vpack.c.b16 %v3496, %v3495
    %v3593 = vpack.c.b16 %v3498, %v3497
    %v3594 = vpack.c.b16 %v3500, %v3499
    %v3595 = vpack.c.b16 %v3502, %v3501
    %v3596 = vpack.c.b16 %v3504, %v3503
    %v3597 = vpack.c.b16 %v3506, %v3505
    %v3598 = vpack.c.b16 %v3508, %v3507
    %v3599 = vpack.c.b16 %v3510, %v3509
    %v3600 = vpack.c.b16 %v3512, %v3511
    %v3601 = vpack.c.b16 %v3514, %v3513
    %v3602 = vpack.c.b16 %v3516, %v3515
    %v3603 = vpack.c.b16 %v3518, %v3517
    %v3604 = vpack.c.b16 %v3520, %v3519
    %v3605 = vpack.c.b16 %v3522, %v3521
    %v3606 = vpack.c.b16 %v3524, %v3523
    %v3607 = vpack.c.b16 %v3526, %v3525
    %v3608 = vpack.c.b16 %v3528, %v3527
    %3689 = vmatprep.subr.bf16.mxu0 0
    %3690 = vmatpush1.bf16.msra.mxu0 %v3529
    %3691 = vmatprep.subr.bf16.mxu0 0
    %3692 = vmatpush1.bf16.msra.mxu0 %v3530
    %3693 = vmatprep.subr.bf16.mxu0 0
    %3694 = vmatpush1.bf16.msra.mxu0 %v3531
    %3695 = vmatprep.subr.bf16.mxu0 0
    %3696 = vmatpush1.bf16.msra.mxu0 %v3532
    %3697 = vmatprep.subr.bf16.mxu0 0
    %3698 = vmatpush1.bf16.msra.mxu0 %v3533
    %3699 = vmatprep.subr.bf16.mxu0 0
    %3700 = vmatpush1.bf16.msra.mxu0 %v3534
    %3701 = vmatprep.subr.bf16.mxu0 0
    %3702 = vmatpush1.bf16.msra.mxu0 %v3535
    %3703 = vmatprep.subr.bf16.mxu0 0
    %3704 = vmatpush1.bf16.msra.mxu0 %v3536
    %3705 = vmatprep.subr.bf16.mxu0 0
    %3706 = vmatpush1.bf16.msra.mxu0 %v3537
    %3707 = vmatprep.subr.bf16.mxu0 0
    %3708 = vmatpush1.bf16.msra.mxu0 %v3538
    %3709 = vmatprep.subr.bf16.mxu0 0
    %3710 = vmatpush1.bf16.msra.mxu0 %v3539
    %3711 = vmatprep.subr.bf16.mxu0 0
    %3712 = vmatpush1.bf16.msra.mxu0 %v3540
    %3713 = vmatprep.subr.bf16.mxu0 0
    %3714 = vmatpush1.bf16.msra.mxu0 %v3541
    %3715 = vmatprep.subr.bf16.mxu0 0
    %3716 = vmatpush1.bf16.msra.mxu0 %v3542
    %3717 = vmatprep.subr.bf16.mxu0 0
    %3718 = vmatpush1.bf16.msra.mxu0 %v3543
    %3719 = vmatprep.subr.bf16.mxu0 0
    %3720 = vmatpush1.bf16.msra.mxu0 %v3544
    %3721 = vmatprep.mubr.bf16.mxu0 %v3040
    %3722 = vmatmul.mubr.bf16.gmra.mrb[0].mxu0 %v3039
    %v3723 = vpop.f32.mrb[0].mxu0
    %v3724 = vadd.f32 0.0, %v3723
    %v3725 = vpop.f32.mrb[0].mxu0
    %v3726 = vpop.f32.mrb[0].mxu0
    %v3727 = vadd.f32 0.0, %v3726
    %v3728 = vpop.f32.mrb[0].mxu0
    %3729 = vdwg.mxu0
    %3730 = vmatprep.subr.bf16.mxu0 0
    %3731 = vmatpush1.bf16.msra.mxu0 %v3545
    %3732 = vmatprep.subr.bf16.mxu0 0
    %3733 = vmatpush1.bf16.msra.mxu0 %v3546
    %3734 = vmatprep.subr.bf16.mxu0 0
    %3735 = vmatpush1.bf16.msra.mxu0 %v3547
    %3736 = vmatprep.subr.bf16.mxu0 0
    %3737 = vmatpush1.bf16.msra.mxu0 %v3548
    %3738 = vmatprep.subr.bf16.mxu0 0
    %3739 = vmatpush1.bf16.msra.mxu0 %v3549
    %3740 = vmatprep.subr.bf16.mxu0 0
    %3741 = vmatpush1.bf16.msra.mxu0 %v3550
    %3742 = vmatprep.subr.bf16.mxu0 0
    %3743 = vmatpush1.bf16.msra.mxu0 %v3551
    %3744 = vmatprep.subr.bf16.mxu0 0
    %3745 = vmatpush1.bf16.msra.mxu0 %v3552
    %3746 = vmatprep.subr.bf16.mxu0 0
    %3747 = vmatpush1.bf16.msra.mxu0 %v3553
    %3748 = vmatprep.subr.bf16.mxu0 0
    %3749 = vmatpush1.bf16.msra.mxu0 %v3554
    %3750 = vmatprep.subr.bf16.mxu0 0
    %3751 = vmatpush1.bf16.msra.mxu0 %v3555
    %3752 = vmatprep.subr.bf16.mxu0 0
    %3753 = vmatpush1.bf16.msra.mxu0 %v3556
    %3754 = vmatprep.subr.bf16.mxu0 0
    %3755 = vmatpush1.bf16.msra.mxu0 %v3557
    %3756 = vmatprep.subr.bf16.mxu0 0
    %3757 = vmatpush1.bf16.msra.mxu0 %v3558
    %3758 = vmatprep.subr.bf16.mxu0 0
    %3759 = vmatpush1.bf16.msra.mxu0 %v3559
    %3760 = vmatprep.subr.bf16.mxu0 0
    %3761 = vmatpush1.bf16.msra.mxu0 %v3560
    %3762 = vmatprep.mubr.bf16.mxu0 %v3042
    %3763 = vmatmul.mubr.bf16.gmra.mrb[0].mxu0 %v3041
    %v3764 = vpop.f32.mrb[0].mxu0
    %v3765 = vadd.f32 %v3724, %v3764
    %v3766 = vpop.f32.mrb[0].mxu0
    %v3767 = vpop.f32.mrb[0].mxu0
    %v3768 = vadd.f32 %v3727, %v3767
    %v3769 = vpop.f32.mrb[0].mxu0
    %3770 = vdwg.mxu0
    %3771 = vmatprep.subr.bf16.mxu0 0
    %3772 = vmatpush1.bf16.msra.mxu0 %v3561
    %3773 = vmatprep.subr.bf16.mxu0 0
    %3774 = vmatpush1.bf16.msra.mxu0 %v3562
    %3775 = vmatprep.subr.bf16.mxu0 0
    %3776 = vmatpush1.bf16.msra.mxu0 %v3563
    %3777 = vmatprep.subr.bf16.mxu0 0
    %3778 = vmatpush1.bf16.msra.mxu0 %v3564
    %3779 = vmatprep.subr.bf16.mxu0 0
    %3780 = vmatpush1.bf16.msra.mxu0 %v3565
    %3781 = vmatprep.subr.bf16.mxu0 0
    %3782 = vmatpush1.bf16.msra.mxu0 %v3566
    %3783 = vmatprep.subr.bf16.mxu0 0
    %3784 = vmatpush1.bf16.msra.mxu0 %v3567
    %3785 = vmatprep.subr.bf16.mxu0 0
    %3786 = vmatpush1.bf16.msra.mxu0 %v3568
    %3787 = vmatprep.subr.bf16.mxu0 0
    %3788 = vmatpush1.bf16.msra.mxu0 %v3569
    %3789 = vmatprep.subr.bf16.mxu0 0
    %3790 = vmatpush1.bf16.msra.mxu0 %v3570
    %3791 = vmatprep.subr.bf16.mxu0 0
    %3792 = vmatpush1.bf16.msra.mxu0 %v3571
    %3793 = vmatprep.subr.bf16.mxu0 0
    %3794 = vmatpush1.bf16.msra.mxu0 %v3572
    %3795 = vmatprep.subr.bf16.mxu0 0
    %3796 = vmatpush1.bf16.msra.mxu0 %v3573
    %3797 = vmatprep.subr.bf16.mxu0 0
    %3798 = vmatpush1.bf16.msra.mxu0 %v3574
    %3799 = vmatprep.subr.bf16.mxu0 0
    %3800 = vmatpush1.bf16.msra.mxu0 %v3575
    %3801 = vmatprep.subr.bf16.mxu0 0
    %3802 = vmatpush1.bf16.msra.mxu0 %v3576
    %3803 = vmatprep.mubr.bf16.mxu0 %v3044
    %3804 = vmatmul.mubr.bf16.gmra.mrb[0].mxu0 %v3043
    %v3805 = vpop.f32.mrb[0].mxu0
    %v3806 = vadd.f32 %v3765, %v3805
    %v3807 = vpop.f32.mrb[0].mxu0
    %v3808 = vpop.f32.mrb[0].mxu0
    %v3809 = vadd.f32 %v3768, %v3808
    %v3810 = vpop.f32.mrb[0].mxu0
    %3811 = vdwg.mxu0
    %3812 = vmatprep.subr.bf16.mxu0 0
    %3813 = vmatpush1.bf16.msra.mxu0 %v3577
    %3814 = vmatprep.subr.bf16.mxu0 0
    %3815 = vmatpush1.bf16.msra.mxu0 %v3578
    %3816 = vmatprep.subr.bf16.mxu0 0
    %3817 = vmatpush1.bf16.msra.mxu0 %v3579
    %3818 = vmatprep.subr.bf16.mxu0 0
    %3819 = vmatpush1.bf16.msra.mxu0 %v3580
    %3820 = vmatprep.subr.bf16.mxu0 0
    %3821 = vmatpush1.bf16.msra.mxu0 %v3581
    %3822 = vmatprep.subr.bf16.mxu0 0
    %3823 = vmatpush1.bf16.msra.mxu0 %v3582
    %3824 = vmatprep.subr.bf16.mxu0 0
    %3825 = vmatpush1.bf16.msra.mxu0 %v3583
    %3826 = vmatprep.subr.bf16.mxu0 0
    %3827 = vmatpush1.bf16.msra.mxu0 %v3584
    %3828 = vmatprep.subr.bf16.mxu0 0
    %3829 = vmatpush1.bf16.msra.mxu0 %v3585
    %3830 = vmatprep.subr.bf16.mxu0 0
    %3831 = vmatpush1.bf16.msra.mxu0 %v3586
    %3832 = vmatprep.subr.bf16.mxu0 0
    %3833 = vmatpush1.bf16.msra.mxu0 %v3587
    %3834 = vmatprep.subr.bf16.mxu0 0
    %3835 = vmatpush1.bf16.msra.mxu0 %v3588
    %3836 = vmatprep.subr.bf16.mxu0 0
    %3837 = vmatpush1.bf16.msra.mxu0 %v3589
    %3838 = vmatprep.subr.bf16.mxu0 0
    %3839 = vmatpush1.bf16.msra.mxu0 %v3590
    %3840 = vmatprep.subr.bf16.mxu0 0
    %3841 = vmatpush1.bf16.msra.mxu0 %v3591
    %3842 = vmatprep.subr.bf16.mxu0 0
    %3843 = vmatpush1.bf16.msra.mxu0 %v3592
    %3844 = vmatprep.mubr.bf16.mxu0 %v3046
    %3845 = vmatmul.mubr.bf16.gmra.mrb[0].mxu0 %v3045
    %v3846 = vpop.f32.mrb[0].mxu0
    %v3847 = vadd.f32 %v3806, %v3846
    %v3848 = vpop.f32.mrb[0].mxu0
    %v3849 = vpop.f32.mrb[0].mxu0
    %v3850 = vadd.f32 %v3809, %v3849
    %v3851 = vpop.f32.mrb[0].mxu0
    %3852 = vdwg.mxu0
    %3853 = vmatprep.subr.bf16.mxu0 0
    %3854 = vmatpush1.bf16.msra.mxu0 %v3593
    %3855 = vmatprep.subr.bf16.mxu0 0
    %3856 = vmatpush1.bf16.msra.mxu0 %v3594
    %3857 = vmatprep.subr.bf16.mxu0 0
    %3858 = vmatpush1.bf16.msra.mxu0 %v3595
    %3859 = vmatprep.subr.bf16.mxu0 0
    %3860 = vmatpush1.bf16.msra.mxu0 %v3596
    %3861 = vmatprep.subr.bf16.mxu0 0
    %3862 = vmatpush1.bf16.msra.mxu0 %v3597
    %3863 = vmatprep.subr.bf16.mxu0 0
    %3864 = vmatpush1.bf16.msra.mxu0 %v3598
    %3865 = vmatprep.subr.bf16.mxu0 0
    %3866 = vmatpush1.bf16.msra.mxu0 %v3599
    %3867 = vmatprep.subr.bf16.mxu0 0
    %3868 = vmatpush1.bf16.msra.mxu0 %v3600
    %3869 = vmatprep.subr.bf16.mxu0 0
    %3870 = vmatpush1.bf16.msra.mxu0 %v3601
    %3871 = vmatprep.subr.bf16.mxu0 0
    %3872 = vmatpush1.bf16.msra.mxu0 %v3602
    %3873 = vmatprep.subr.bf16.mxu0 0
    %3874 = vmatpush1.bf16.msra.mxu0 %v3603
    %3875 = vmatprep.subr.bf16.mxu0 0
    %3876 = vmatpush1.bf16.msra.mxu0 %v3604
    %3877 = vmatprep.subr.bf16.mxu0 0
    %3878 = vmatpush1.bf16.msra.mxu0 %v3605
    %3879 = vmatprep.subr.bf16.mxu0 0
    %3880 = vmatpush1.bf16.msra.mxu0 %v3606
    %3881 = vmatprep.subr.bf16.mxu0 0
    %3882 = vmatpush1.bf16.msra.mxu0 %v3607
    %3883 = vmatprep.subr.bf16.mxu0 0
    %3884 = vmatpush1.bf16.msra.mxu0 %v3608
    %3885 = vmatprep.mubr.bf16.mxu0 %v3048
    %3886 = vmatmul.mubr.bf16.gmra.mrb[0].mxu0 %v3047
    %v3887 = vpop.f32.mrb[0].mxu0
    %v3888 = vadd.f32 %v3847, %v3887
    %v3889 = vpop.f32.mrb[0].mxu0
    %v3890 = vpop.f32.mrb[0].mxu0
    %v3891 = vadd.f32 %v3850, %v3890
    %v3892 = vpop.f32.mrb[0].mxu0
    %3893 = vdwg.mxu0
    %v3894 = vld [vmem:[%s6] sm:$0x3]
    %v3895 = vld [vmem:[%s7] sm:$0x1]
    %3896 = vmatprep.subr.mxu0 0.0
    %3897 = vmatpush1.xpose.msra.mxu0 %v3894
    %3898 = vmatprep.subr.mxu0 0.0
    %3899 = vmatpush1.xpose.msra.mxu0 0.0
    %3900 = vmatprep.subr.mxu0 0.0
    %3901 = vmatpush1.xpose.msra.mxu0 0.0
    %3902 = vmatprep.subr.mxu0 0.0
    %3903 = vmatpush1.xpose.msra.mxu0 0.0
    %3904 = vmatprep.subr.mxu0 0.0
    %3905 = vmatpush1.xpose.msra.mxu0 0.0
    %3906 = vmatprep.subr.mxu0 0.0
    %3907 = vmatpush1.xpose.msra.mxu0 0.0
    %3908 = vmatprep.subr.mxu0 0.0
    %3909 = vmatpush1.xpose.msra.mxu0 0.0
    %3910 = vmatprep.subr.mxu0 0.0
    %3911 = vmatpush1.xpose.msra.mxu0 0.0
    %3912 = vmatprep.subr.mxu0 0.0
    %3913 = vmatpush1.xpose.msra.mxu0 0.0
    %3914 = vmatprep.subr.mxu0 0.0
    %3915 = vmatpush1.xpose.msra.mxu0 0.0
    %3916 = vmatprep.subr.mxu0 0.0
    %3917 = vmatpush1.xpose.msra.mxu0 0.0
    %3918 = vmatprep.subr.mxu0 0.0
    %3919 = vmatpush1.xpose.msra.mxu0 0.0
    %3920 = vmatprep.subr.mxu0 0.0
    %3921 = vmatpush1.xpose.msra.mxu0 0.0
    %3922 = vmatprep.subr.mxu0 0.0
    %3923 = vmatpush1.xpose.msra.mxu0 0.0
    %3924 = vmatprep.subr.mxu0 0.0
    %3925 = vmatpush1.xpose.msra.mxu0 0.0
    %3926 = vmatprep.subr.mxu0 0.0
    %3927 = vmatpush1.xpose.msra.mxu0 0.0
    %3928 = vmatprep.subr.mxu0 0.0
    %3929 = vmatpush1.xpose.msra.mxu0 0.0
    %3930 = vmatprep.subr.mxu0 0.0
    %3931 = vmatpush1.xpose.msra.mxu0 0.0
    %3932 = vmatprep.subr.mxu0 0.0
    %3933 = vmatpush1.xpose.msra.mxu0 0.0
    %3934 = vmatprep.subr.mxu0 0.0
    %3935 = vmatpush1.xpose.msra.mxu0 0.0
    %3936 = vmatprep.subr.mxu0 0.0
    %3937 = vmatpush1.xpose.msra.mxu0 0.0
    %3938 = vmatprep.subr.mxu0 0.0
    %3939 = vmatpush1.xpose.msra.mxu0 0.0
    %3940 = vmatprep.subr.mxu0 0.0
    %3941 = vmatpush1.xpose.msra.mxu0 0.0
    %3942 = vmatprep.subr.mxu0 0.0
    %3943 = vmatpush1.xpose.msra.mxu0 0.0
    %3944 = vmatprep.subr.mxu0 0.0
    %3945 = vmatpush1.xpose.msra.mxu0 0.0
    %3946 = vmatprep.subr.mxu0 0.0
    %3947 = vmatpush1.xpose.msra.mxu0 0.0
    %3948 = vmatprep.subr.mxu0 0.0
    %3949 = vmatpush1.xpose.msra.mxu0 0.0
    %3950 = vmatprep.subr.mxu0 0.0
    %3951 = vmatpush1.xpose.msra.mxu0 0.0
    %3952 = vmatprep.subr.mxu0 0.0
    %3953 = vmatpush1.xpose.msra.mxu0 0.0
    %3954 = vmatprep.subr.mxu0 0.0
    %3955 = vmatpush1.xpose.msra.mxu0 0.0
    %3956 = vmatprep.subr.mxu0 0.0
    %3957 = vmatpush1.xpose.msra.mxu0 0.0
    %3958 = vmatprep.subr.mxu0 0.0
    %3959 = vmatpush1.xpose.msra.mxu0 0.0
    %3960 = vmatprep.mubr.f32.mxu0 0.0
    %3961 = vmatmul.mubr.f32.gmra.mrb[0].mxu0 %v3888
    %v3962 = vpop.f32.mrb[0].mxu0
    %v3963 = vadd.f32 0.0, %v3962
    %v3964 = vpop.f32.mrb[0].mxu0
    %3965 = vmatprep.mubr.f32.mxu0 0.0
    %3966 = vmatmul.mubr.f32.gmra.mrb[0].mxu0 %v3891
    %v3967 = vpop.f32.mrb[0].mxu0
    %v3968 = vadd.f32 0.0, %v3967
    %v3969 = vpop.f32.mrb[0].mxu0
    %3970 = vdwg.mxu0
    %3971 = vxpose.xlu0.b32.start [1/16] %v3963, 128
    %3972 = vxpose.xlu0.b32.cont [2/16] %v3968, 128
    %3973 = vxpose.xlu0.b32.cont [3/16] 0.0, 128
    %3974 = vxpose.xlu0.b32.cont [4/16] 0.0, 128
    %3975 = vxpose.xlu0.b32.cont [5/16] 0.0, 128
    %3976 = vxpose.xlu0.b32.cont [6/16] 0.0, 128
    %3977 = vxpose.xlu0.b32.cont [7/16] 0.0, 128
    %3978 = vxpose.xlu0.b32.cont [8/16] 0.0, 128
    %3979 = vxpose.xlu0.b32.cont [9/16] 0.0, 128
    %3980 = vxpose.xlu0.b32.cont [10/16] 0.0, 128
    %3981 = vxpose.xlu0.b32.cont [11/16] 0.0, 128
    %3982 = vxpose.xlu0.b32.cont [12/16] 0.0, 128
    %3983 = vxpose.xlu0.b32.cont [13/16] 0.0, 128
    %3984 = vxpose.xlu0.b32.cont [14/16] 0.0, 128
    %3985 = vxpose.xlu0.b32.cont [15/16] 0.0, 128
    %3986 = vxpose.xlu0.b32.end [16/16] 0.0, 128
    %v3987 = vpop.trf.xlu0
    %v3988 = vpop.trf.xlu0
    %v3989 = vpop.trf.xlu0
    %v3990 = vpop.trf.xlu0
    %v3991 = vpop.trf.xlu0
    %v3992 = vpop.trf.xlu0
    %v3993 = vpop.trf.xlu0
    %v3994 = vpop.trf.xlu0
    %v3995 = vpop.trf.xlu0
    %v3996 = vpop.trf.xlu0
    %v3997 = vpop.trf.xlu0
    %v3998 = vpop.trf.xlu0
    %v3999 = vpop.trf.xlu0
    %v4000 = vpop.trf.xlu0
    %v4001 = vpop.trf.xlu0
    %v4002 = vpop.trf.xlu0
    %4004 = vset.pattern.permute.xlu0 0
    %4005 = vperm.xlu0 %4004, %v3963
    %v4006 = vpop.permute.xlu0 %4005
    %4009 = vset.pattern.permute.xlu0 0
    %4010 = vperm.xlu0 %4009, %v3968
    %v4011 = vpop.permute.xlu0 %4010
    %v4013 = vlaneseq
    %v4014 = vshrl.u32 %v4013, 7
    %v4015 = vsub.s32 1, %v4014
    %v4016 = vrot.slane %v3987, %v4015
    %v4017 = vadd.f32 %v4006, %v4016
    %v4018 = vadd.f32 %v4011, %v4016
    %vm4019 = vcmp.gt.f32.partialorder %v4017, 0.0
    %vm4020 = vcmp.gt.f32.partialorder %v4018, 0.0
    %v4021 = vmul.f32 %v4017, 0.2
    %v4022 = vmul.f32 %v4018, 0.2
    %v4023 = vsel %vm4019, %v4017, %v4021
    %v4024 = vsel %vm4020, %v4018, %v4022
    %v4025 = vsel %vm2132, %v4023, -1e+30
    %v4026 = vsel %vm2133, %v4024, -1e+30
    %v4027 = vsel %vm2158, %v4025, -inf
    %4028 = vmax.xlane.f32.xlu0 %v4027
    %v4029 = vpop.xlane.xlu0 %4028
    %v4030 = vsel %vm2158, %v4026, -inf
    %4031 = vmax.xlane.f32.xlu0 %v4030
    %v4032 = vpop.xlane.xlu0 %4031
    %v4033 = vsub.f32 %v4025, %v4029
    %v4034 = vsub.f32 %v4026, %v4032
    %v4035 = vmul.f32 %v4033, 1.442695
    %v4036 = vpow.pop %v4035
    %v4037 = vmul.f32 %v4034, 1.442695
    %v4038 = vpow.pop %v4037
    %v4039 = vsel %vm2158, %v4036, 0.0
    %4040 = vadd.xlane.f32.xlu0 %v4039
    %v4041 = vpop.xlane.xlu0 %4040
    %v4042 = vsel %vm2158, %v4038, 0.0
    %4043 = vadd.xlane.f32.xlu0 %v4042
    %v4044 = vpop.xlane.xlu0 %4043
    %v4045 = vpack.c.bf16 %v4038, %v4036
    %v4046 = vpack.c.bf16 %v3891, %v3888
    %v4048 = vsel %vm2158, %v4045, 0
    %4050 = vmatprep.subr.bf16.mxu0 0
    %4051 = vmatpush1.bf16.msra.mxu0 %v4046
    %4052 = vmatprep.subr.bf16.mxu0 0
    %4053 = vmatpush1.bf16.msra.mxu0 0
    %4054 = vmatprep.subr.bf16.mxu0 0
    %4055 = vmatpush1.bf16.msra.mxu0 0
    %4056 = vmatprep.subr.bf16.mxu0 0
    %4057 = vmatpush1.bf16.msra.mxu0 0
    %4058 = vmatprep.subr.bf16.mxu0 0
    %4059 = vmatpush1.bf16.msra.mxu0 0
    %4060 = vmatprep.subr.bf16.mxu0 0
    %4061 = vmatpush1.bf16.msra.mxu0 0
    %4062 = vmatprep.subr.bf16.mxu0 0
    %4063 = vmatpush1.bf16.msra.mxu0 0
    %4064 = vmatprep.subr.bf16.mxu0 0
    %4065 = vmatpush1.bf16.msra.mxu0 0
    %4066 = vmatprep.subr.bf16.mxu0 0
    %4067 = vmatpush1.bf16.msra.mxu0 0
    %4068 = vmatprep.subr.bf16.mxu0 0
    %4069 = vmatpush1.bf16.msra.mxu0 0
    %4070 = vmatprep.subr.bf16.mxu0 0
    %4071 = vmatpush1.bf16.msra.mxu0 0
    %4072 = vmatprep.subr.bf16.mxu0 0
    %4073 = vmatpush1.bf16.msra.mxu0 0
    %4074 = vmatprep.subr.bf16.mxu0 0
    %4075 = vmatpush1.bf16.msra.mxu0 0
    %4076 = vmatprep.subr.bf16.mxu0 0
    %4077 = vmatpush1.bf16.msra.mxu0 0
    %4078 = vmatprep.subr.bf16.mxu0 0
    %4079 = vmatpush1.bf16.msra.mxu0 0
    %4080 = vmatprep.subr.bf16.mxu0 0
    %4081 = vmatpush1.bf16.msra.mxu0 0
    %4082 = vmatprep.mubr.bf16.mxu0 0
    %4083 = vmatmul.mubr.bf16.gmra.mrb[0].mxu0 %v4048
    %v4084 = vpop.f32.mrb[0].mxu0
    %v4085 = vadd.f32 0.0, %v4084
    %v4086 = vpop.f32.mrb[0].mxu0
    %v4087 = vpop.f32.mrb[0].mxu0
    %v4088 = vadd.f32 0.0, %v4087
    %v4089 = vpop.f32.mrb[0].mxu0
    %4090 = vdwg.mxu0
    %v4091 = vrcp.pop %v4041
    %v4092 = vrcp.pop %v4044
    %v4093 = vmul.f32 %v4085, %v4091
    %v4094 = vmul.f32 %v4088, %v4092
    %v4096 = vlaneseq
    %v4097 = vshrl.u32 %v4096, 7
    %v4098 = vsub.s32 0, %v4097
    %v4099 = vrot.slane %v3895, %v4098
    %v4101 = vadd.f32 %v4093, %v4099
    %v4102 = vadd.f32 %v4094, %v4099
    %v4103 = vmax.f32 %v4101, 0.0
    %v4104 = vmax.f32 %v4102, 0.0
    %v4105 = vld [vmem:[%s8] sm:$0xff]
    %v4106 = vld [vmem:[%s8 + $0x8] sm:$0xff]
    %4108 = vset.pattern.permute.xlu0 0
    %4109 = vperm.xlu0 %4108, %v4105
    %v4110 = vpop.permute.xlu0 %4109
    %4113 = vset.pattern.permute.xlu0 0
    %4114 = vperm.xlu0 %4113, %v4106
    %v4115 = vpop.permute.xlu0 %4114
    %v4117 = vmul.f32 %v4103, %v4110
    %v4118 = vmul.f32 %v4104, %v4115
    %v4119 = vmax.f32 %v4117, %v4118
    %v4120 = vrot.slane %v4119, 4
    %v4121 = vmax.f32 %v4119, %v4120
    %v4122 = vrot.slane %v4121, 2
    %v4123 = vmax.f32 %v4121, %v4122
    %v4124 = vrot.slane %v4123, 1
    %v4125 = vmax.f32 %v4123, %v4124
    %4126 = vset.pattern.permute.xlu0 1
    %4127 = vperm.xlu0 %4126, %v4105
    %v4128 = vpop.permute.xlu0 %4127
    %4130 = vset.pattern.permute.xlu0 1
    %4131 = vperm.xlu0 %4130, %v4106
    %v4132 = vpop.permute.xlu0 %4131
    %v4134 = vmul.f32 %v4103, %v4128
    %v4135 = vmul.f32 %v4104, %v4132
    %v4136 = vmax.f32 %v4134, %v4135
    %v4137 = vrot.slane %v4136, 4
    %v4138 = vmax.f32 %v4136, %v4137
    %v4139 = vrot.slane %v4138, 2
    %v4140 = vmax.f32 %v4138, %v4139
    %v4141 = vrot.slane %v4140, 1
    %v4142 = vmax.f32 %v4140, %v4141
    %4143 = vset.pattern.permute.xlu0 2
    %4144 = vperm.xlu0 %4143, %v4105
    %v4145 = vpop.permute.xlu0 %4144
    %4147 = vset.pattern.permute.xlu0 2
    %4148 = vperm.xlu0 %4147, %v4106
    %v4149 = vpop.permute.xlu0 %4148
    %v4151 = vmul.f32 %v4103, %v4145
    %v4152 = vmul.f32 %v4104, %v4149
    %v4153 = vmax.f32 %v4151, %v4152
    %v4154 = vrot.slane %v4153, 4
    %v4155 = vmax.f32 %v4153, %v4154
    %v4156 = vrot.slane %v4155, 2
    %v4157 = vmax.f32 %v4155, %v4156
    %v4158 = vrot.slane %v4157, 1
    %v4159 = vmax.f32 %v4157, %v4158
    %4160 = vset.pattern.permute.xlu0 3
    %4161 = vperm.xlu0 %4160, %v4105
    %v4162 = vpop.permute.xlu0 %4161
    %4164 = vset.pattern.permute.xlu0 3
    %4165 = vperm.xlu0 %4164, %v4106
    %v4166 = vpop.permute.xlu0 %4165
    %v4168 = vmul.f32 %v4103, %v4162
    %v4169 = vmul.f32 %v4104, %v4166
    %v4170 = vmax.f32 %v4168, %v4169
    %v4171 = vrot.slane %v4170, 4
    %v4172 = vmax.f32 %v4170, %v4171
    %v4173 = vrot.slane %v4172, 2
    %v4174 = vmax.f32 %v4172, %v4173
    %v4175 = vrot.slane %v4174, 1
    %v4176 = vmax.f32 %v4174, %v4175
    %4177 = vset.pattern.permute.xlu0 4
    %4178 = vperm.xlu0 %4177, %v4105
    %v4179 = vpop.permute.xlu0 %4178
    %4181 = vset.pattern.permute.xlu0 4
    %4182 = vperm.xlu0 %4181, %v4106
    %v4183 = vpop.permute.xlu0 %4182
    %v4185 = vmul.f32 %v4103, %v4179
    %v4186 = vmul.f32 %v4104, %v4183
    %v4187 = vmax.f32 %v4185, %v4186
    %v4188 = vrot.slane %v4187, 4
    %v4189 = vmax.f32 %v4187, %v4188
    %v4190 = vrot.slane %v4189, 2
    %v4191 = vmax.f32 %v4189, %v4190
    %v4192 = vrot.slane %v4191, 1
    %v4193 = vmax.f32 %v4191, %v4192
    %4194 = vset.pattern.permute.xlu0 5
    %4195 = vperm.xlu0 %4194, %v4105
    %v4196 = vpop.permute.xlu0 %4195
    %4198 = vset.pattern.permute.xlu0 5
    %4199 = vperm.xlu0 %4198, %v4106
    %v4200 = vpop.permute.xlu0 %4199
    %v4202 = vmul.f32 %v4103, %v4196
    %v4203 = vmul.f32 %v4104, %v4200
    %v4204 = vmax.f32 %v4202, %v4203
    %v4205 = vrot.slane %v4204, 4
    %v4206 = vmax.f32 %v4204, %v4205
    %v4207 = vrot.slane %v4206, 2
    %v4208 = vmax.f32 %v4206, %v4207
    %v4209 = vrot.slane %v4208, 1
    %v4210 = vmax.f32 %v4208, %v4209
    %4211 = vset.pattern.permute.xlu0 6
    %4212 = vperm.xlu0 %4211, %v4105
    %v4213 = vpop.permute.xlu0 %4212
    %4215 = vset.pattern.permute.xlu0 6
    %4216 = vperm.xlu0 %4215, %v4106
    %v4217 = vpop.permute.xlu0 %4216
    %v4219 = vmul.f32 %v4103, %v4213
    %v4220 = vmul.f32 %v4104, %v4217
    %v4221 = vmax.f32 %v4219, %v4220
    %v4222 = vrot.slane %v4221, 4
    %v4223 = vmax.f32 %v4221, %v4222
    %v4224 = vrot.slane %v4223, 2
    %v4225 = vmax.f32 %v4223, %v4224
    %v4226 = vrot.slane %v4225, 1
    %v4227 = vmax.f32 %v4225, %v4226
    %4228 = vset.pattern.permute.xlu0 7
    %4229 = vperm.xlu0 %4228, %v4105
    %v4230 = vpop.permute.xlu0 %4229
    %4232 = vset.pattern.permute.xlu0 7
    %4233 = vperm.xlu0 %4232, %v4106
    %v4234 = vpop.permute.xlu0 %4233
    %v4236 = vmul.f32 %v4103, %v4230
    %v4237 = vmul.f32 %v4104, %v4234
    %v4238 = vmax.f32 %v4236, %v4237
    %v4239 = vrot.slane %v4238, 4
    %v4240 = vmax.f32 %v4238, %v4239
    %v4241 = vrot.slane %v4240, 2
    %v4242 = vmax.f32 %v4240, %v4241
    %v4243 = vrot.slane %v4242, 1
    %v4244 = vmax.f32 %v4242, %v4243
    %vm4245 = vcmask 1040384
    %v4246 = vsel %vm4245, %v4125, %v4142
    %vm4247 = vcmask 1041408
    %v4248 = vsel %vm4247, %v4246, %v4159
    %vm4249 = vcmask 1042432
    %v4250 = vsel %vm4249, %v4248, %v4176
    %vm4251 = vcmask 1043456
    %v4252 = vsel %vm4251, %v4250, %v4193
    %vm4253 = vcmask 1044480
    %v4254 = vsel %vm4253, %v4252, %v4210
    %vm4255 = vcmask 1045504
    %v4256 = vsel %vm4255, %v4254, %v4227
    %vm4257 = vcmask 1046528
    %v4258 = vsel %vm4257, %v4256, %v4244
    %v4259 = vpack.c.bf16 %v4258, %v4258
    %v4260 = vld [vmem:[#allocation10] sm:$0xf]
    %v4261 = vld [vmem:[#allocation10 + $0x4] sm:$0xf]
    %v4262 = vld [vmem:[#allocation10 + $0x8] sm:$0xf]
    %v4263 = vld [vmem:[#allocation10 + $0xc] sm:$0xf]
    %v4264 = vld [vmem:[#allocation10 + $0x10] sm:$0xf]
    %v4265 = vld [vmem:[#allocation10 + $0x14] sm:$0xf]
    %v4266 = vld [vmem:[#allocation10 + $0x18] sm:$0xf]
    %v4267 = vld [vmem:[#allocation10 + $0x1c] sm:$0xf]
    %v4268 = vld [vmem:[#allocation10 + $0x20] sm:$0xf]
    %v4269 = vld [vmem:[#allocation10 + $0x24] sm:$0xf]
    %v4270 = vld [vmem:[#allocation10 + $0x28] sm:$0xf]
    %v4271 = vld [vmem:[#allocation10 + $0x2c] sm:$0xf]
    %v4272 = vld [vmem:[#allocation10 + $0x30] sm:$0xf]
    %v4273 = vld [vmem:[#allocation10 + $0x34] sm:$0xf]
    %v4274 = vld [vmem:[#allocation10 + $0x38] sm:$0xf]
    %v4275 = vld [vmem:[#allocation10 + $0x3c] sm:$0xf]
    %v4276 = vld [vmem:[%s10] sm:$0x1]
    %v4278 = vlaneseq
    %v4279 = vshrl.u32 %v4278, 7
    %v4280 = vsub.s32 0, %v4279
    %v4281 = vrot.slane %v4276, %v4280
    %v4299 = vunpack.c.l.b16 %v4260
    %v4300 = vunpack.c.l.b16 %v4261
    %v4301 = vunpack.c.l.b16 %v4262
    %v4302 = vunpack.c.l.b16 %v4263
    %v4303 = vunpack.c.l.b16 %v4264
    %v4304 = vunpack.c.l.b16 %v4265
    %v4305 = vunpack.c.l.b16 %v4266
    %v4306 = vunpack.c.l.b16 %v4267
    %v4307 = vunpack.c.l.b16 %v4268
    %v4308 = vunpack.c.l.b16 %v4269
    %v4309 = vunpack.c.l.b16 %v4270
    %v4310 = vunpack.c.l.b16 %v4271
    %v4311 = vunpack.c.l.b16 %v4272
    %v4312 = vunpack.c.l.b16 %v4273
    %v4313 = vunpack.c.l.b16 %v4274
    %v4314 = vunpack.c.l.b16 %v4275
    %v4315 = vpack.c.b16 %v4300, %v4299
    %v4316 = vpack.c.b16 %v4302, %v4301
    %v4317 = vpack.c.b16 %v4304, %v4303
    %v4318 = vpack.c.b16 %v4306, %v4305
    %v4319 = vpack.c.b16 %v4308, %v4307
    %v4320 = vpack.c.b16 %v4310, %v4309
    %v4321 = vpack.c.b16 %v4312, %v4311
    %v4322 = vpack.c.b16 %v4314, %v4313
    %4331 = vmatprep.subr.bf16.mxu0 0
    %4332 = vmatpush1.bf16.msra.mxu0 %v4315
    %4333 = vmatprep.subr.bf16.mxu0 0
    %4334 = vmatpush1.bf16.msra.mxu0 %v4316
    %4335 = vmatprep.subr.bf16.mxu0 0
    %4336 = vmatpush1.bf16.msra.mxu0 %v4317
    %4337 = vmatprep.subr.bf16.mxu0 0
    %4338 = vmatpush1.bf16.msra.mxu0 %v4318
    %4339 = vmatprep.subr.bf16.mxu0 0
    %4340 = vmatpush1.bf16.msra.mxu0 %v4319
    %4341 = vmatprep.subr.bf16.mxu0 0
    %4342 = vmatpush1.bf16.msra.mxu0 %v4320
    %4343 = vmatprep.subr.bf16.mxu0 0
    %4344 = vmatpush1.bf16.msra.mxu0 %v4321
    %4345 = vmatprep.subr.bf16.mxu0 0
    %4346 = vmatpush1.bf16.msra.mxu0 %v4322
    %4347 = vmatprep.subr.bf16.mxu0 0
    %4348 = vmatpush1.bf16.msra.mxu0 0
    %4349 = vmatprep.subr.bf16.mxu0 0
    %4350 = vmatpush1.bf16.msra.mxu0 0
    %4351 = vmatprep.subr.bf16.mxu0 0
    %4352 = vmatpush1.bf16.msra.mxu0 0
    %4353 = vmatprep.subr.bf16.mxu0 0
    %4354 = vmatpush1.bf16.msra.mxu0 0
    %4355 = vmatprep.subr.bf16.mxu0 0
    %4356 = vmatpush1.bf16.msra.mxu0 0
    %4357 = vmatprep.subr.bf16.mxu0 0
    %4358 = vmatpush1.bf16.msra.mxu0 0
    %4359 = vmatprep.subr.bf16.mxu0 0
    %4360 = vmatpush1.bf16.msra.mxu0 0
    %4361 = vmatprep.subr.bf16.mxu0 0
    %4362 = vmatpush1.bf16.msra.mxu0 0
    %4363 = vmatprep.mubr.bf16.mxu0 0
    %4364 = vmatmul.mubr.bf16.gmra.mrb[0].mxu0 %v4259
    %v4365 = vpop.f32.mrb[0].mxu0
    %v4366 = vadd.f32 %v4281, %v4365
    %v4367 = vpop.f32.mrb[0].mxu0
    %v4368 = vpop.f32.mrb[0].mxu0
    %v4369 = vpop.f32.mrb[0].mxu0
    %4370 = vdwg.mxu0
    %v4371 = vmax.f32 %v4366, 0.0
    %4372 = vst [vmem:[#allocation11] sm:$0xff] %v4371
    // Predicated region
    $region66: #{tpu_custom_call.1} parent=1 // pred_check
      _
    $region67: #{tpu_custom_call.1} parent=1 // pred_check_branch
      %4374 = sbr.rel (0) target = $region69
    $region68: #{tpu_custom_call.1} parent=1 // pred_region
      %s4376 = ssub.s32 128, 128
      %4377 = vsyncadd [#allocation4], %s4376
      %s4379 = sshll.u32 [#allocation11], 4
      %s4380 = int_to_ptr.vmem [resolvable:$true] %s4379
      %4382 = dma.vmem_to_hbm [thread:$0]  %s4380, 128, %s11, [#allocation4]
    $region69: #{tpu_custom_call.1} parent=1 // pred_fallthru
      _
    // Predicated region
    $region70: #{tpu_custom_call.1} parent=1 // pred_check
      _
    $region71: #{tpu_custom_call.1} parent=1 // pred_check_branch
      %4384 = sbr.rel (0) target = $region73
    $region72: #{tpu_custom_call.1} parent=1 // pred_region
      %4385 = dma.done [#allocation4], 128
    $region73: #{tpu_custom_call.1} parent=1 // pred_fallthru
      _
    %4386 = vsyncpa [#allocation3], 1
    %4387 = vsyncpa [#allocation6], 1
    %4388 = vsyncpa [#allocation9], 1
    %4389 = vsyncpa [#allocation4], 1

</llo_original>
